<compile_context>
chip_gen: v6e
topology: v6e:2x2x1
jax: 0.10.0
libtpu: 0.0.40
codegen_flags: <defaults>
</compile_context>

<pallas_src>
import functools
import math

import jax
import jax.numpy as jnp
from jax.experimental import pallas as pl
from jax.experimental.pallas import tpu as pltpu

BN_EPS = 1e-5
LEAKY_SLOPE = 0.01          # nn.LeakyReLU default negative_slope
OC_PAD = 128                # conv output channels padded to one full lane tile

# Real channel counts and row offsets inside the coalesced weight array.
C1_IN, C1_OUT = 4, 32
C2_IN, C2_OUT = 32, 64
C3_IN, C3_OUT = 64, 64
K1, S1 = 8, 4
K2, S2 = 4, 2
K3, S3 = 3, 1

W1_OFF, W1_ROWS = 0, C1_IN * K1 * K1                 # 0,    256
W2_OFF, W2_ROWS = W1_OFF + W1_ROWS, K2 * K2 * C2_IN  # 256,  512
W3_OFF, W3_ROWS = W2_OFF + W2_ROWS, K3 * K3 * C3_IN  # 768,  576
WH2_OFF, WH2_ROWS = W3_OFF + W3_ROWS, 256            # 1344, 256
W_ALL_ROWS = WH2_OFF + WH2_ROWS                      # 1600


# ---------------------------------------------------------------------------
# In-kernel helpers
# ---------------------------------------------------------------------------
def _bn_relu(y, gamma, beta):
    """Training-mode BatchNorm2d (per-channel stats over rows) + ReLU.

    Shifted two-pass variance (sum((y-mean)^2)) for numerical robustness;
    affine folded to one scale/shift.  Padded channels (gamma=beta=0, zero
    weights) stay exactly zero.
    """
    inv_m = 1.0 / y.shape[0]
    mean = jnp.sum(y, axis=0, keepdims=True) * inv_m
    centered = y - mean
    var = jnp.sum(centered * centered, axis=0, keepdims=True) * inv_m
    scale = gamma * jax.lax.rsqrt(var + BN_EPS)
    return jnp.maximum(centered * scale + beta, 0.0)


def _conv_taps(img, w_all_ref, *, base, k, s, oh, ow, cin):
    """Conv as a sum over the k*k kernel taps of [M, cin] x [cin, 128] matmuls.

    img: NHWC value [N, H, W, cin] (real channels only, f32).
    Weight rows for tap (kh, kw) live at base + (kh*k + kw)*cin in the
    coalesced bf16 weight array (all offsets multiples of 16 — bf16 tile rows).
    Avoids building (and lane-concatenating) a padded im2col patch matrix.
    """
    n = img.shape[0]
    m = n * oh * ow
    acc = None
    for kh in range(k):
        if oh == 1:
            hsel = img[:, kh:kh + 1]
        else:
            hsel = jnp.concatenate(
                [img[:, kh + s * i: kh + s * i + 1] for i in range(oh)], axis=1)
        for kw in range(k):
            if ow == 1:
                wsel = hsel[:, :, kw:kw + 1, :]
            else:
                wsel = jnp.concatenate(
                    [hsel[:, :, kw + s * j: kw + s * j + 1, :] for j in range(ow)],
                    axis=2)
            piece = wsel.reshape(m, cin).astype(jnp.bfloat16)   # [M, cin]
            off = base + (kh * k + kw) * cin
            w_tap = w_all_ref[off:off + cin, :]                 # [cin, 128] bf16
            contrib = jnp.dot(piece, w_tap, preferred_element_type=jnp.float32)
            acc = contrib if acc is None else acc + contrib
    return acc                                                  # [M, 128] f32


# ---------------------------------------------------------------------------
# The fused kernel
# ---------------------------------------------------------------------------
def fused_dddqn_kernel(p1_ref, w_all_ref, wh1_ref, sp_ref, q_ref,
                       *, n, oh1, ow1, oh2, ow2, out_size):
    # Packed small params: one 8 KiB DMA instead of eight tiny ones.
    sp = sp_ref[...]                                  # [8, 256] f32
    g1, b1 = sp[0:1, :OC_PAD], sp[1:2, :OC_PAD]
    g2, b2 = sp[2:3, :OC_PAD], sp[3:4, :OC_PAD]
    g3, b3 = sp[4:5, :OC_PAD], sp[5:6, :OC_PAD]
    bh1 = sp[6:7, :]                                  # [1, 256]
    bh2 = sp[7:8, :OC_PAD]                            # [1, 128]

    # conv1: patch matrix from glue, one bf16 matmul + BN(train) + ReLU.
    y1 = jnp.dot(p1_ref[...], w_all_ref[W1_OFF:W1_OFF + W1_ROWS, :],
                 preferred_element_type=jnp.float32)            # [M1, 128]
    a1 = _bn_relu(y1, g1, b1)
    a1 = a1[:, :C1_OUT].reshape(n, oh1, ow1, C1_OUT)            # real channels only

    # conv2: k=4, s=2 — 16 taps, contraction over the real 32 channels.
    y2 = _conv_taps(a1, w_all_ref, base=W2_OFF, k=K2, s=S2,
                    oh=oh2, ow=ow2, cin=C2_IN)
    a2 = _bn_relu(y2, g2, b2)
    a2 = a2[:, :C2_OUT].reshape(n, oh2, ow2, C2_OUT)

    # conv3: k=3, s=1, 1x1 spatial output — 9 taps over 64 real channels.
    y3 = _conv_taps(a2, w_all_ref, base=W3_OFF, k=K3, s=S3,
                    oh=1, ow=1, cin=C3_IN)
    a3 = _bn_relu(y3, g3, b3)                                   # [N, 128]; lanes>=64 == 0
    # conv3 output is 1x1 spatial, so torch's x.view(N, -1) == the channel vector.

    # Dueling head, fused: hidden 256 = 128(A)||128(V); output 128 lanes:
    # lanes [0,out) = Ax, lane out = Vx, remaining weight columns are zero.
    h = jnp.dot(a3[:, :C3_OUT].astype(jnp.bfloat16), wh1_ref[...],
                preferred_element_type=jnp.float32) + bh1       # [N, 256]
    h = jnp.where(h > 0, h, LEAKY_SLOPE * h)                    # LeakyReLU
    z = jnp.dot(h.astype(jnp.bfloat16), w_all_ref[WH2_OFF:WH2_OFF + WH2_ROWS, :],
                preferred_element_type=jnp.float32) + bh2       # [N, 128]

    lane = jax.lax.broadcasted_iota(jnp.int32, z.shape, dimension=1)
    adv_mask = (lane < out_size).astype(jnp.float32)
    val_mask = (lane == out_size).astype(jnp.float32)
    # torch reference: q = Vx + (Ax - Ax.mean())  -> GLOBAL scalar mean of Ax.
    mean_ax = jnp.sum(z * adv_mask) * (1.0 / (n * out_size))
    vx = jnp.sum(z * val_mask, axis=1, keepdims=True)           # [N, 1]
    q_ref[...] = (z + vx - mean_ax) * adv_mask                  # padded lanes -> 0


# ---------------------------------------------------------------------------
# Glue: conv sizing, conv1 im2col (input prep), init, forward
# ---------------------------------------------------------------------------
def conv_out(w, h, kernel_size, stride):
    nw = (w - (kernel_size - 1) - 1) // stride + 1
    nh = (h - (kernel_size - 1) - 1) // stride + 1
    return nw, nh


def _im2col_nchw(x, k, s):
    """x: [N,C,H,W] -> patches [N*OH*OW, C*k*k]; rows (n,oh,ow), cols (c,kh,kw)."""
    n, c, h, w = x.shape
    oh = (h - k) // s + 1
    ow = (w - k) // s + 1
    cols = []
    for kh in range(k):
        for kw in range(k):
            cols.append(x[:, :, kh:kh + s * (oh - 1) + 1:s, kw:kw + s * (ow - 1) + 1:s])
    p = jnp.stack(cols, axis=2)                  # [N, C, k*k, OH, OW]
    p = p.reshape(n, c * k * k, oh, ow)
    p = p.transpose(0, 2, 3, 1).reshape(n * oh * ow, c * k * k)
    return p, oh, ow


def _uniform(key, shape, bound):
    return jax.random.uniform(key, shape, jnp.float32, minval=-bound, maxval=bound)


def init_params(key, h, w, output_size):
    assert output_size + 1 <= OC_PAD
    w1s, h1s = conv_out(w, h, K1, S1)
    w2s, h2s = conv_out(w1s, h1s, K2, S2)
    w3s, h3s = conv_out(w2s, h2s, K3, S3)
    # TODO(synk): general spatial flatten ordering for >1x1 conv3 outputs.
    assert w3s == 1 and h3s == 1, "fused head assumes conv3 output is 1x1 spatial"
    lin_in = w3s * h3s * 64                      # = 64

    keys = jax.random.split(key, 11)

    # conv1: Conv2d(4, 32, k=8, s=4); rows (c, kh, kw) to match glue im2col.
    fan1 = C1_IN * K1 * K1
    w1 = jnp.zeros((W1_ROWS, OC_PAD), jnp.float32).at[:, :C1_OUT].set(
        _uniform(keys[0], (W1_ROWS, C1_OUT), 1.0 / math.sqrt(fan1)))

    # conv2: Conv2d(32, 64, k=4, s=2); rows (kh, kw, c_real) — un-padded fan-in.
    fan2 = C2_IN * K2 * K2
    w2 = jnp.zeros((K2, K2, C2_IN, OC_PAD), jnp.float32).at[..., :C2_OUT].set(
        _uniform(keys[1], (K2, K2, C2_IN, C2_OUT), 1.0 / math.sqrt(fan2)))
    w2 = w2.reshape(W2_ROWS, OC_PAD)

    # conv3: Conv2d(64, 64, k=3, s=1); rows (kh, kw, c_real).
    fan3 = C3_IN * K3 * K3
    w3 = jnp.zeros((K3, K3, C3_IN, OC_PAD), jnp.float32).at[..., :C3_OUT].set(
        _uniform(keys[2], (K3, K3, C3_IN, C3_OUT), 1.0 / math.sqrt(fan3)))
    w3 = w3.reshape(W3_ROWS, OC_PAD)

    # Dueling head: Linear(64,128)+LeakyReLU+Linear(128,out) for A,
    #               Linear(64,128)+LeakyReLU+Linear(128,1)   for V.
    bnd1 = 1.0 / math.sqrt(lin_in)
    wa1 = _uniform(keys[3], (lin_in, 128), bnd1)
    ba1 = _uniform(keys[4], (1, 128), bnd1)
    wv1 = _uniform(keys[5], (lin_in, 128), bnd1)
    bv1 = _uniform(keys[6], (1, 128), bnd1)
    bnd2 = 1.0 / math.sqrt(128)
    wa2 = _uniform(keys[7], (128, output_size), bnd2)
    ba2 = _uniform(keys[8], (1, output_size), bnd2)
    wv2 = _uniform(keys[9], (128, 1), bnd2)
    bv2 = _uniform(keys[10], (1, 1), bnd2)

    wh1 = jnp.concatenate([wa1, wv1], axis=1)                    # [64, 256]
    wh2 = jnp.zeros((WH2_ROWS, OC_PAD), jnp.float32)
    wh2 = wh2.at[:128, :output_size].set(wa2)
    wh2 = wh2.at[128:, output_size:output_size + 1].set(wv2)

    # Coalesced 128-lane weights: one 400 KiB bf16 DMA, static in-kernel slices.
    w_all = jnp.concatenate([w1, w2, w3, wh2], axis=0).astype(jnp.bfloat16)
    assert w_all.shape == (W_ALL_ROWS, OC_PAD)

    # Packed small params (BN gamma/beta + head biases): one [8,256] f32 DMA.
    sp = jnp.zeros((8, 256), jnp.float32)
    sp = sp.at[0, :C1_OUT].set(1.0)                              # g1 (b1 = row 1 = 0)
    sp = sp.at[2, :C2_OUT].set(1.0)                              # g2 (b2 = row 3 = 0)
    sp = sp.at[4, :C3_OUT].set(1.0)                              # g3 (b3 = row 5 = 0)
    sp = sp.at[6, :128].set(ba1[0])                              # bh1 = ba1 || bv1
    sp = sp.at[6, 128:].set(bv1[0])
    sp = sp.at[7, :output_size].set(ba2[0])                      # bh2: A biases ...
    sp = sp.at[7, output_size].set(bv2[0, 0])                    # ... then V bias

    params = dict(w_all=w_all, wh1=wh1.astype(jnp.bfloat16), sp=sp)
    meta = dict(oh1=h1s, ow1=w1s, oh2=h2s, ow2=w2s, out_size=output_size)
    return params, meta


def cnn_forward(x, params, *, meta):
    """x: [N, 4, H, W] float32 (NCHW, matching the PyTorch module)."""
    n = x.shape[0]
    # TODO(synk): move conv1's im2col in-kernel (strided gather from x) at
    # Atari scale, where the 4x patch blow-up dominates HBM traffic.
    p1, oh1, ow1 = _im2col_nchw(x, K1, S1)          # input prep (one XLA fusion)
    assert oh1 == meta["oh1"] and ow1 == meta["ow1"]
    p1 = p1.astype(jnp.bfloat16)                    # bf16 MXU operand, halves DMA

    kernel = functools.partial(
        fused_dddqn_kernel, n=n,
        oh1=meta["oh1"], ow1=meta["ow1"],
        oh2=meta["oh2"], ow2=meta["ow2"],
        out_size=meta["out_size"])

    operands = (p1, params["w_all"], params["wh1"], params["sp"])
    out_shape = jax.ShapeDtypeStruct((n, OC_PAD), jnp.float32)

    # Explicit VMEM budget: double-buffered operands + output + headroom for the
    # (small) in-kernel intermediates; never rely on the 16/32 MiB default.
    op_bytes = sum(a.size * a.dtype.itemsize for a in operands)
    op_bytes += out_shape.size * out_shape.dtype.itemsize
    vmem_limit = int(min(128 * 1024 * 1024,
                         max(16 * 1024 * 1024, 4 * op_bytes + (8 << 20))))

    q_pad = pl.pallas_call(
        kernel,
        out_shape=out_shape,
        in_specs=[pl.BlockSpec(memory_space=pltpu.MemorySpace.VMEM)] * len(operands),
        out_specs=pl.BlockSpec(memory_space=pltpu.MemorySpace.VMEM),
        compiler_params=pltpu.CompilerParams(vmem_limit_bytes=vmem_limit),
    )(*operands)
    return q_pad[:, :meta["out_size"]]              # padded lanes are exactly zero


# ---------------------------------------------------------------------------
if __name__ == "__main__":
    key = jax.random.PRNGKey(0)
    key_p, key_x = jax.random.split(key)

    # 36x36 is the smallest spatial size valid for the 8/4 -> 4/2 -> 3/1 stack.
    N, C, H, W = 2, 4, 36, 36
    OUTPUT_SIZE = 6

    params, meta = init_params(key_p, H, W, OUTPUT_SIZE)
    x = jax.random.normal(key_x, (N, C, H, W), jnp.float32)

    fwd = jax.jit(functools.partial(cnn_forward, meta=meta))
    q = fwd(x, params)
    q = jax.block_until_ready(q)

    assert q.shape == (N, OUTPUT_SIZE) and q.dtype == jnp.float32
    assert bool(jnp.all(jnp.isfinite(q)))
    print("KERNEL_OK")
</pallas_src>

<mosaic_0001>
module attributes {stable_mosaic.version = 11 : i64} {
  func.func @fused_dddqn_kernel(%arg0: memref<128x256xbf16, #tpu.memory_space<vmem>>, %arg1: memref<1600x128xbf16, #tpu.memory_space<vmem>>, %arg2: memref<64x256xbf16, #tpu.memory_space<vmem>>, %arg3: memref<8x256xf32, #tpu.memory_space<vmem>>, %arg4: memref<2x128xf32, #tpu.memory_space<vmem>>) attributes {dimension_semantics = [], scalar_prefetch = 0 : i64, scratch_operands = 0 : i64, tpu.core_type = #tpu.core_type<tc>} {
    %c0 = arith.constant 0 : index
    %c0_0 = arith.constant 0 : index
    %0 = vector.load %arg3[%c0, %c0_0] : memref<8x256xf32, #tpu.memory_space<vmem>>, vector<8x256xf32>
    %1 = vector.extract_strided_slice %0 {offsets = [0, 0], sizes = [1, 128], strides = [1, 1]} : vector<8x256xf32> to vector<1x128xf32>
    %2 = vector.extract_strided_slice %0 {offsets = [1, 0], sizes = [1, 128], strides = [1, 1]} : vector<8x256xf32> to vector<1x128xf32>
    %3 = vector.extract_strided_slice %0 {offsets = [2, 0], sizes = [1, 128], strides = [1, 1]} : vector<8x256xf32> to vector<1x128xf32>
    %4 = vector.extract_strided_slice %0 {offsets = [3, 0], sizes = [1, 128], strides = [1, 1]} : vector<8x256xf32> to vector<1x128xf32>
    %5 = vector.extract_strided_slice %0 {offsets = [4, 0], sizes = [1, 128], strides = [1, 1]} : vector<8x256xf32> to vector<1x128xf32>
    %6 = vector.extract_strided_slice %0 {offsets = [5, 0], sizes = [1, 128], strides = [1, 1]} : vector<8x256xf32> to vector<1x128xf32>
    %7 = vector.extract_strided_slice %0 {offsets = [6, 0], sizes = [1, 256], strides = [1, 1]} : vector<8x256xf32> to vector<1x256xf32>
    %8 = vector.extract_strided_slice %0 {offsets = [7, 0], sizes = [1, 128], strides = [1, 1]} : vector<8x256xf32> to vector<1x128xf32>
    %c0_1 = arith.constant 0 : index
    %c0_2 = arith.constant 0 : index
    %9 = vector.load %arg0[%c0_1, %c0_2] : memref<128x256xbf16, #tpu.memory_space<vmem>>, vector<128x256xbf16>
    %c0_3 = arith.constant 0 : index
    %c0_4 = arith.constant 0 : index
    %10 = vector.load %arg1[%c0_3, %c0_4] : memref<1600x128xbf16, #tpu.memory_space<vmem>>, vector<256x128xbf16>
    %cst = arith.constant dense<0.000000e+00> : vector<128x128xf32>
    %11 = tpu.matmul %9, %10, %cst {dimension_numbers = #tpu.dot_dimension_numbers<[1], [0], [0], [1], [0, 0, 1, 1], [], []>} : vector<128x256xbf16>, vector<256x128xbf16>, vector<128x128xf32> -> vector<128x128xf32>
    %cst_5 = arith.constant dense<0.000000e+00> : vector<128xf32>
    %12 = vector.multi_reduction <add>, %11, %cst_5 [0] : vector<128x128xf32> to vector<128xf32>
    %13 = vector.shape_cast %12 : vector<128xf32> to vector<1x128xf32>
    %cst_6 = arith.constant 7.812500e-03 : f32
    %14 = vector.broadcast %cst_6 : f32 to vector<1x128xf32>
    %15 = arith.mulf %13, %14 : vector<1x128xf32>
    %16 = vector.broadcast %15 : vector<1x128xf32> to vector<128x128xf32>
    %17 = arith.subf %11, %16 : vector<128x128xf32>
    %18 = arith.mulf %17, %17 : vector<128x128xf32>
    %cst_7 = arith.constant dense<0.000000e+00> : vector<128xf32>
    %19 = vector.multi_reduction <add>, %18, %cst_7 [0] : vector<128x128xf32> to vector<128xf32>
    %20 = vector.shape_cast %19 : vector<128xf32> to vector<1x128xf32>
    %cst_8 = arith.constant 7.812500e-03 : f32
    %21 = vector.broadcast %cst_8 : f32 to vector<1x128xf32>
    %22 = arith.mulf %20, %21 : vector<1x128xf32>
    %cst_9 = arith.constant 9.99999974E-6 : f32
    %23 = vector.broadcast %cst_9 : f32 to vector<1x128xf32>
    %24 = arith.addf %22, %23 : vector<1x128xf32>
    %25 = math.rsqrt %24 : vector<1x128xf32>
    %26 = arith.mulf %1, %25 : vector<1x128xf32>
    %27 = vector.broadcast %26 : vector<1x128xf32> to vector<128x128xf32>
    %28 = arith.mulf %17, %27 : vector<128x128xf32>
    %29 = vector.broadcast %2 : vector<1x128xf32> to vector<128x128xf32>
    %30 = arith.addf %28, %29 : vector<128x128xf32>
    %cst_10 = arith.constant 0.000000e+00 : f32
    %31 = vector.broadcast %cst_10 : f32 to vector<128x128xf32>
    %32 = arith.maximumf %30, %31 : vector<128x128xf32>
    %33 = vector.extract_strided_slice %32 {offsets = [0, 0], sizes = [128, 32], strides = [1, 1]} : vector<128x128xf32> to vector<128x32xf32>
    %34 = vector.shape_cast %33 : vector<128x32xf32> to vector<2x8x8x32xf32>
    %35 = vector.extract_strided_slice %34 {offsets = [0, 0, 0, 0], sizes = [2, 1, 8, 32], strides = [1, 1, 1, 1]} : vector<2x8x8x32xf32> to vector<2x1x8x32xf32>
    %36 = vector.extract_strided_slice %34 {offsets = [0, 2, 0, 0], sizes = [2, 1, 8, 32], strides = [1, 1, 1, 1]} : vector<2x8x8x32xf32> to vector<2x1x8x32xf32>
    %37 = vector.extract_strided_slice %34 {offsets = [0, 4, 0, 0], sizes = [2, 1, 8, 32], strides = [1, 1, 1, 1]} : vector<2x8x8x32xf32> to vector<2x1x8x32xf32>
    %38 = tpu.concatenate %35, %36, %37 in 1 : vector<2x1x8x32xf32>, vector<2x1x8x32xf32>, vector<2x1x8x32xf32> -> vector<2x3x8x32xf32>
    %39 = vector.extract_strided_slice %38 {offsets = [0, 0, 0, 0], sizes = [2, 3, 1, 32], strides = [1, 1, 1, 1]} : vector<2x3x8x32xf32> to vector<2x3x1x32xf32>
    %40 = vector.extract_strided_slice %38 {offsets = [0, 0, 2, 0], sizes = [2, 3, 1, 32], strides = [1, 1, 1, 1]} : vector<2x3x8x32xf32> to vector<2x3x1x32xf32>
    %41 = vector.extract_strided_slice %38 {offsets = [0, 0, 4, 0], sizes = [2, 3, 1, 32], strides = [1, 1, 1, 1]} : vector<2x3x8x32xf32> to vector<2x3x1x32xf32>
    %42 = tpu.concatenate %39, %40, %41 in 2 : vector<2x3x1x32xf32>, vector<2x3x1x32xf32>, vector<2x3x1x32xf32> -> vector<2x3x3x32xf32>
    %43 = vector.shape_cast %42 : vector<2x3x3x32xf32> to vector<18x32xf32>
    %44 = arith.truncf %43 : vector<18x32xf32> to vector<18x32xbf16>
    %c256 = arith.constant 256 : index
    %c0_11 = arith.constant 0 : index
    %45 = vector.load %arg1[%c256, %c0_11] : memref<1600x128xbf16, #tpu.memory_space<vmem>>, vector<32x128xbf16>
    %cst_12 = arith.constant dense<0.000000e+00> : vector<18x128xf32>
    %46 = tpu.matmul %44, %45, %cst_12 {dimension_numbers = #tpu.dot_dimension_numbers<[1], [0], [0], [1], [0, 0, 1, 1], [], []>} : vector<18x32xbf16>, vector<32x128xbf16>, vector<18x128xf32> -> vector<18x128xf32>
    %47 = vector.extract_strided_slice %38 {offsets = [0, 0, 1, 0], sizes = [2, 3, 1, 32], strides = [1, 1, 1, 1]} : vector<2x3x8x32xf32> to vector<2x3x1x32xf32>
    %48 = vector.extract_strided_slice %38 {offsets = [0, 0, 3, 0], sizes = [2, 3, 1, 32], strides = [1, 1, 1, 1]} : vector<2x3x8x32xf32> to vector<2x3x1x32xf32>
    %49 = vector.extract_strided_slice %38 {offsets = [0, 0, 5, 0], sizes = [2, 3, 1, 32], strides = [1, 1, 1, 1]} : vector<2x3x8x32xf32> to vector<2x3x1x32xf32>
    %50 = tpu.concatenate %47, %48, %49 in 2 : vector<2x3x1x32xf32>, vector<2x3x1x32xf32>, vector<2x3x1x32xf32> -> vector<2x3x3x32xf32>
    %51 = vector.shape_cast %50 : vector<2x3x3x32xf32> to vector<18x32xf32>
    %52 = arith.truncf %51 : vector<18x32xf32> to vector<18x32xbf16>
    %c288 = arith.constant 288 : index
    %c0_13 = arith.constant 0 : index
    %53 = vector.load %arg1[%c288, %c0_13] : memref<1600x128xbf16, #tpu.memory_space<vmem>>, vector<32x128xbf16>
    %cst_14 = arith.constant dense<0.000000e+00> : vector<18x128xf32>
    %54 = tpu.matmul %52, %53, %cst_14 {dimension_numbers = #tpu.dot_dimension_numbers<[1], [0], [0], [1], [0, 0, 1, 1], [], []>} : vector<18x32xbf16>, vector<32x128xbf16>, vector<18x128xf32> -> vector<18x128xf32>
    %55 = arith.addf %46, %54 : vector<18x128xf32>
    %56 = vector.extract_strided_slice %38 {offsets = [0, 0, 2, 0], sizes = [2, 3, 1, 32], strides = [1, 1, 1, 1]} : vector<2x3x8x32xf32> to vector<2x3x1x32xf32>
    %57 = vector.extract_strided_slice %38 {offsets = [0, 0, 4, 0], sizes = [2, 3, 1, 32], strides = [1, 1, 1, 1]} : vector<2x3x8x32xf32> to vector<2x3x1x32xf32>
    %58 = vector.extract_strided_slice %38 {offsets = [0, 0, 6, 0], sizes = [2, 3, 1, 32], strides = [1, 1, 1, 1]} : vector<2x3x8x32xf32> to vector<2x3x1x32xf32>
    %59 = tpu.concatenate %56, %57, %58 in 2 : vector<2x3x1x32xf32>, vector<2x3x1x32xf32>, vector<2x3x1x32xf32> -> vector<2x3x3x32xf32>
    %60 = vector.shape_cast %59 : vector<2x3x3x32xf32> to vector<18x32xf32>
    %61 = arith.truncf %60 : vector<18x32xf32> to vector<18x32xbf16>
    %c320 = arith.constant 320 : index
    %c0_15 = arith.constant 0 : index
    %62 = vector.load %arg1[%c320, %c0_15] : memref<1600x128xbf16, #tpu.memory_space<vmem>>, vector<32x128xbf16>
    %cst_16 = arith.constant dense<0.000000e+00> : vector<18x128xf32>
    %63 = tpu.matmul %61, %62, %cst_16 {dimension_numbers = #tpu.dot_dimension_numbers<[1], [0], [0], [1], [0, 0, 1, 1], [], []>} : vector<18x32xbf16>, vector<32x128xbf16>, vector<18x128xf32> -> vector<18x128xf32>
    %64 = arith.addf %55, %63 : vector<18x128xf32>
    %65 = vector.extract_strided_slice %38 {offsets = [0, 0, 3, 0], sizes = [2, 3, 1, 32], strides = [1, 1, 1, 1]} : vector<2x3x8x32xf32> to vector<2x3x1x32xf32>
    %66 = vector.extract_strided_slice %38 {offsets = [0, 0, 5, 0], sizes = [2, 3, 1, 32], strides = [1, 1, 1, 1]} : vector<2x3x8x32xf32> to vector<2x3x1x32xf32>
    %67 = vector.extract_strided_slice %38 {offsets = [0, 0, 7, 0], sizes = [2, 3, 1, 32], strides = [1, 1, 1, 1]} : vector<2x3x8x32xf32> to vector<2x3x1x32xf32>
    %68 = tpu.concatenate %65, %66, %67 in 2 : vector<2x3x1x32xf32>, vector<2x3x1x32xf32>, vector<2x3x1x32xf32> -> vector<2x3x3x32xf32>
    %69 = vector.shape_cast %68 : vector<2x3x3x32xf32> to vector<18x32xf32>
    %70 = arith.truncf %69 : vector<18x32xf32> to vector<18x32xbf16>
    %c352 = arith.constant 352 : index
    %c0_17 = arith.constant 0 : index
    %71 = vector.load %arg1[%c352, %c0_17] : memref<1600x128xbf16, #tpu.memory_space<vmem>>, vector<32x128xbf16>
    %cst_18 = arith.constant dense<0.000000e+00> : vector<18x128xf32>
    %72 = tpu.matmul %70, %71, %cst_18 {dimension_numbers = #tpu.dot_dimension_numbers<[1], [0], [0], [1], [0, 0, 1, 1], [], []>} : vector<18x32xbf16>, vector<32x128xbf16>, vector<18x128xf32> -> vector<18x128xf32>
    %73 = arith.addf %64, %72 : vector<18x128xf32>
    %74 = vector.extract_strided_slice %34 {offsets = [0, 1, 0, 0], sizes = [2, 1, 8, 32], strides = [1, 1, 1, 1]} : vector<2x8x8x32xf32> to vector<2x1x8x32xf32>
    %75 = vector.extract_strided_slice %34 {offsets = [0, 3, 0, 0], sizes = [2, 1, 8, 32], strides = [1, 1, 1, 1]} : vector<2x8x8x32xf32> to vector<2x1x8x32xf32>
    %76 = vector.extract_strided_slice %34 {offsets = [0, 5, 0, 0], sizes = [2, 1, 8, 32], strides = [1, 1, 1, 1]} : vector<2x8x8x32xf32> to vector<2x1x8x32xf32>
    %77 = tpu.concatenate %74, %75, %76 in 1 : vector<2x1x8x32xf32>, vector<2x1x8x32xf32>, vector<2x1x8x32xf32> -> vector<2x3x8x32xf32>
    %78 = vector.extract_strided_slice %77 {offsets = [0, 0, 0, 0], sizes = [2, 3, 1, 32], strides = [1, 1, 1, 1]} : vector<2x3x8x32xf32> to vector<2x3x1x32xf32>
    %79 = vector.extract_strided_slice %77 {offsets = [0, 0, 2, 0], sizes = [2, 3, 1, 32], strides = [1, 1, 1, 1]} : vector<2x3x8x32xf32> to vector<2x3x1x32xf32>
    %80 = vector.extract_strided_slice %77 {offsets = [0, 0, 4, 0], sizes = [2, 3, 1, 32], strides = [1, 1, 1, 1]} : vector<2x3x8x32xf32> to vector<2x3x1x32xf32>
    %81 = tpu.concatenate %78, %79, %80 in 2 : vector<2x3x1x32xf32>, vector<2x3x1x32xf32>, vector<2x3x1x32xf32> -> vector<2x3x3x32xf32>
    %82 = vector.shape_cast %81 : vector<2x3x3x32xf32> to vector<18x32xf32>
    %83 = arith.truncf %82 : vector<18x32xf32> to vector<18x32xbf16>
    %c384 = arith.constant 384 : index
    %c0_19 = arith.constant 0 : index
    %84 = vector.load %arg1[%c384, %c0_19] : memref<1600x128xbf16, #tpu.memory_space<vmem>>, vector<32x128xbf16>
    %cst_20 = arith.constant dense<0.000000e+00> : vector<18x128xf32>
    %85 = tpu.matmul %83, %84, %cst_20 {dimension_numbers = #tpu.dot_dimension_numbers<[1], [0], [0], [1], [0, 0, 1, 1], [], []>} : vector<18x32xbf16>, vector<32x128xbf16>, vector<18x128xf32> -> vector<18x128xf32>
    %86 = arith.addf %73, %85 : vector<18x128xf32>
    %87 = vector.extract_strided_slice %77 {offsets = [0, 0, 1, 0], sizes = [2, 3, 1, 32], strides = [1, 1, 1, 1]} : vector<2x3x8x32xf32> to vector<2x3x1x32xf32>
    %88 = vector.extract_strided_slice %77 {offsets = [0, 0, 3, 0], sizes = [2, 3, 1, 32], strides = [1, 1, 1, 1]} : vector<2x3x8x32xf32> to vector<2x3x1x32xf32>
    %89 = vector.extract_strided_slice %77 {offsets = [0, 0, 5, 0], sizes = [2, 3, 1, 32], strides = [1, 1, 1, 1]} : vector<2x3x8x32xf32> to vector<2x3x1x32xf32>
    %90 = tpu.concatenate %87, %88, %89 in 2 : vector<2x3x1x32xf32>, vector<2x3x1x32xf32>, vector<2x3x1x32xf32> -> vector<2x3x3x32xf32>
    %91 = vector.shape_cast %90 : vector<2x3x3x32xf32> to vector<18x32xf32>
    %92 = arith.truncf %91 : vector<18x32xf32> to vector<18x32xbf16>
    %c416 = arith.constant 416 : index
    %c0_21 = arith.constant 0 : index
    %93 = vector.load %arg1[%c416, %c0_21] : memref<1600x128xbf16, #tpu.memory_space<vmem>>, vector<32x128xbf16>
    %cst_22 = arith.constant dense<0.000000e+00> : vector<18x128xf32>
    %94 = tpu.matmul %92, %93, %cst_22 {dimension_numbers = #tpu.dot_dimension_numbers<[1], [0], [0], [1], [0, 0, 1, 1], [], []>} : vector<18x32xbf16>, vector<32x128xbf16>, vector<18x128xf32> -> vector<18x128xf32>
    %95 = arith.addf %86, %94 : vector<18x128xf32>
    %96 = vector.extract_strided_slice %77 {offsets = [0, 0, 2, 0], sizes = [2, 3, 1, 32], strides = [1, 1, 1, 1]} : vector<2x3x8x32xf32> to vector<2x3x1x32xf32>
    %97 = vector.extract_strided_slice %77 {offsets = [0, 0, 4, 0], sizes = [2, 3, 1, 32], strides = [1, 1, 1, 1]} : vector<2x3x8x32xf32> to vector<2x3x1x32xf32>
    %98 = vector.extract_strided_slice %77 {offsets = [0, 0, 6, 0], sizes = [2, 3, 1, 32], strides = [1, 1, 1, 1]} : vector<2x3x8x32xf32> to vector<2x3x1x32xf32>
    %99 = tpu.concatenate %96, %97, %98 in 2 : vector<2x3x1x32xf32>, vector<2x3x1x32xf32>, vector<2x3x1x32xf32> -> vector<2x3x3x32xf32>
    %100 = vector.shape_cast %99 : vector<2x3x3x32xf32> to vector<18x32xf32>
    %101 = arith.truncf %100 : vector<18x32xf32> to vector<18x32xbf16>
    %c448 = arith.constant 448 : index
    %c0_23 = arith.constant 0 : index
    %102 = vector.load %arg1[%c448, %c0_23] : memref<1600x128xbf16, #tpu.memory_space<vmem>>, vector<32x128xbf16>
    %cst_24 = arith.constant dense<0.000000e+00> : vector<18x128xf32>
    %103 = tpu.matmul %101, %102, %cst_24 {dimension_numbers = #tpu.dot_dimension_numbers<[1], [0], [0], [1], [0, 0, 1, 1], [], []>} : vector<18x32xbf16>, vector<32x128xbf16>, vector<18x128xf32> -> vector<18x128xf32>
    %104 = arith.addf %95, %103 : vector<18x128xf32>
    %105 = vector.extract_strided_slice %77 {offsets = [0, 0, 3, 0], sizes = [2, 3, 1, 32], strides = [1, 1, 1, 1]} : vector<2x3x8x32xf32> to vector<2x3x1x32xf32>
    %106 = vector.extract_strided_slice %77 {offsets = [0, 0, 5, 0], sizes = [2, 3, 1, 32], strides = [1, 1, 1, 1]} : vector<2x3x8x32xf32> to vector<2x3x1x32xf32>
    %107 = vector.extract_strided_slice %77 {offsets = [0, 0, 7, 0], sizes = [2, 3, 1, 32], strides = [1, 1, 1, 1]} : vector<2x3x8x32xf32> to vector<2x3x1x32xf32>
    %108 = tpu.concatenate %105, %106, %107 in 2 : vector<2x3x1x32xf32>, vector<2x3x1x32xf32>, vector<2x3x1x32xf32> -> vector<2x3x3x32xf32>
    %109 = vector.shape_cast %108 : vector<2x3x3x32xf32> to vector<18x32xf32>
    %110 = arith.truncf %109 : vector<18x32xf32> to vector<18x32xbf16>
    %c480 = arith.constant 480 : index
    %c0_25 = arith.constant 0 : index
    %111 = vector.load %arg1[%c480, %c0_25] : memref<1600x128xbf16, #tpu.memory_space<vmem>>, vector<32x128xbf16>
    %cst_26 = arith.constant dense<0.000000e+00> : vector<18x128xf32>
    %112 = tpu.matmul %110, %111, %cst_26 {dimension_numbers = #tpu.dot_dimension_numbers<[1], [0], [0], [1], [0, 0, 1, 1], [], []>} : vector<18x32xbf16>, vector<32x128xbf16>, vector<18x128xf32> -> vector<18x128xf32>
    %113 = arith.addf %104, %112 : vector<18x128xf32>
    %114 = vector.extract_strided_slice %34 {offsets = [0, 2, 0, 0], sizes = [2, 1, 8, 32], strides = [1, 1, 1, 1]} : vector<2x8x8x32xf32> to vector<2x1x8x32xf32>
    %115 = vector.extract_strided_slice %34 {offsets = [0, 4, 0, 0], sizes = [2, 1, 8, 32], strides = [1, 1, 1, 1]} : vector<2x8x8x32xf32> to vector<2x1x8x32xf32>
    %116 = vector.extract_strided_slice %34 {offsets = [0, 6, 0, 0], sizes = [2, 1, 8, 32], strides = [1, 1, 1, 1]} : vector<2x8x8x32xf32> to vector<2x1x8x32xf32>
    %117 = tpu.concatenate %114, %115, %116 in 1 : vector<2x1x8x32xf32>, vector<2x1x8x32xf32>, vector<2x1x8x32xf32> -> vector<2x3x8x32xf32>
    %118 = vector.extract_strided_slice %117 {offsets = [0, 0, 0, 0], sizes = [2, 3, 1, 32], strides = [1, 1, 1, 1]} : vector<2x3x8x32xf32> to vector<2x3x1x32xf32>
    %119 = vector.extract_strided_slice %117 {offsets = [0, 0, 2, 0], sizes = [2, 3, 1, 32], strides = [1, 1, 1, 1]} : vector<2x3x8x32xf32> to vector<2x3x1x32xf32>
    %120 = vector.extract_strided_slice %117 {offsets = [0, 0, 4, 0], sizes = [2, 3, 1, 32], strides = [1, 1, 1, 1]} : vector<2x3x8x32xf32> to vector<2x3x1x32xf32>
    %121 = tpu.concatenate %118, %119, %120 in 2 : vector<2x3x1x32xf32>, vector<2x3x1x32xf32>, vector<2x3x1x32xf32> -> vector<2x3x3x32xf32>
    %122 = vector.shape_cast %121 : vector<2x3x3x32xf32> to vector<18x32xf32>
    %123 = arith.truncf %122 : vector<18x32xf32> to vector<18x32xbf16>
    %c512 = arith.constant 512 : index
    %c0_27 = arith.constant 0 : index
    %124 = vector.load %arg1[%c512, %c0_27] : memref<1600x128xbf16, #tpu.memory_space<vmem>>, vector<32x128xbf16>
    %cst_28 = arith.constant dense<0.000000e+00> : vector<18x128xf32>
    %125 = tpu.matmul %123, %124, %cst_28 {dimension_numbers = #tpu.dot_dimension_numbers<[1], [0], [0], [1], [0, 0, 1, 1], [], []>} : vector<18x32xbf16>, vector<32x128xbf16>, vector<18x128xf32> -> vector<18x128xf32>
    %126 = arith.addf %113, %125 : vector<18x128xf32>
    %127 = vector.extract_strided_slice %117 {offsets = [0, 0, 1, 0], sizes = [2, 3, 1, 32], strides = [1, 1, 1, 1]} : vector<2x3x8x32xf32> to vector<2x3x1x32xf32>
    %128 = vector.extract_strided_slice %117 {offsets = [0, 0, 3, 0], sizes = [2, 3, 1, 32], strides = [1, 1, 1, 1]} : vector<2x3x8x32xf32> to vector<2x3x1x32xf32>
    %129 = vector.extract_strided_slice %117 {offsets = [0, 0, 5, 0], sizes = [2, 3, 1, 32], strides = [1, 1, 1, 1]} : vector<2x3x8x32xf32> to vector<2x3x1x32xf32>
    %130 = tpu.concatenate %127, %128, %129 in 2 : vector<2x3x1x32xf32>, vector<2x3x1x32xf32>, vector<2x3x1x32xf32> -> vector<2x3x3x32xf32>
    %131 = vector.shape_cast %130 : vector<2x3x3x32xf32> to vector<18x32xf32>
    %132 = arith.truncf %131 : vector<18x32xf32> to vector<18x32xbf16>
    %c544 = arith.constant 544 : index
    %c0_29 = arith.constant 0 : index
    %133 = vector.load %arg1[%c544, %c0_29] : memref<1600x128xbf16, #tpu.memory_space<vmem>>, vector<32x128xbf16>
    %cst_30 = arith.constant dense<0.000000e+00> : vector<18x128xf32>
    %134 = tpu.matmul %132, %133, %cst_30 {dimension_numbers = #tpu.dot_dimension_numbers<[1], [0], [0], [1], [0, 0, 1, 1], [], []>} : vector<18x32xbf16>, vector<32x128xbf16>, vector<18x128xf32> -> vector<18x128xf32>
    %135 = arith.addf %126, %134 : vector<18x128xf32>
    %136 = vector.extract_strided_slice %117 {offsets = [0, 0, 2, 0], sizes = [2, 3, 1, 32], strides = [1, 1, 1, 1]} : vector<2x3x8x32xf32> to vector<2x3x1x32xf32>
    %137 = vector.extract_strided_slice %117 {offsets = [0, 0, 4, 0], sizes = [2, 3, 1, 32], strides = [1, 1, 1, 1]} : vector<2x3x8x32xf32> to vector<2x3x1x32xf32>
    %138 = vector.extract_strided_slice %117 {offsets = [0, 0, 6, 0], sizes = [2, 3, 1, 32], strides = [1, 1, 1, 1]} : vector<2x3x8x32xf32> to vector<2x3x1x32xf32>
    %139 = tpu.concatenate %136, %137, %138 in 2 : vector<2x3x1x32xf32>, vector<2x3x1x32xf32>, vector<2x3x1x32xf32> -> vector<2x3x3x32xf32>
    %140 = vector.shape_cast %139 : vector<2x3x3x32xf32> to vector<18x32xf32>
    %141 = arith.truncf %140 : vector<18x32xf32> to vector<18x32xbf16>
    %c576 = arith.constant 576 : index
    %c0_31 = arith.constant 0 : index
    %142 = vector.load %arg1[%c576, %c0_31] : memref<1600x128xbf16, #tpu.memory_space<vmem>>, vector<32x128xbf16>
    %cst_32 = arith.constant dense<0.000000e+00> : vector<18x128xf32>
    %143 = tpu.matmul %141, %142, %cst_32 {dimension_numbers = #tpu.dot_dimension_numbers<[1], [0], [0], [1], [0, 0, 1, 1], [], []>} : vector<18x32xbf16>, vector<32x128xbf16>, vector<18x128xf32> -> vector<18x128xf32>
    %144 = arith.addf %135, %143 : vector<18x128xf32>
    %145 = vector.extract_strided_slice %117 {offsets = [0, 0, 3, 0], sizes = [2, 3, 1, 32], strides = [1, 1, 1, 1]} : vector<2x3x8x32xf32> to vector<2x3x1x32xf32>
    %146 = vector.extract_strided_slice %117 {offsets = [0, 0, 5, 0], sizes = [2, 3, 1, 32], strides = [1, 1, 1, 1]} : vector<2x3x8x32xf32> to vector<2x3x1x32xf32>
    %147 = vector.extract_strided_slice %117 {offsets = [0, 0, 7, 0], sizes = [2, 3, 1, 32], strides = [1, 1, 1, 1]} : vector<2x3x8x32xf32> to vector<2x3x1x32xf32>
    %148 = tpu.concatenate %145, %146, %147 in 2 : vector<2x3x1x32xf32>, vector<2x3x1x32xf32>, vector<2x3x1x32xf32> -> vector<2x3x3x32xf32>
    %149 = vector.shape_cast %148 : vector<2x3x3x32xf32> to vector<18x32xf32>
    %150 = arith.truncf %149 : vector<18x32xf32> to vector<18x32xbf16>
    %c608 = arith.constant 608 : index
    %c0_33 = arith.constant 0 : index
    %151 = vector.load %arg1[%c608, %c0_33] : memref<1600x128xbf16, #tpu.memory_space<vmem>>, vector<32x128xbf16>
    %cst_34 = arith.constant dense<0.000000e+00> : vector<18x128xf32>
    %152 = tpu.matmul %150, %151, %cst_34 {dimension_numbers = #tpu.dot_dimension_numbers<[1], [0], [0], [1], [0, 0, 1, 1], [], []>} : vector<18x32xbf16>, vector<32x128xbf16>, vector<18x128xf32> -> vector<18x128xf32>
    %153 = arith.addf %144, %152 : vector<18x128xf32>
    %154 = vector.extract_strided_slice %34 {offsets = [0, 3, 0, 0], sizes = [2, 1, 8, 32], strides = [1, 1, 1, 1]} : vector<2x8x8x32xf32> to vector<2x1x8x32xf32>
    %155 = vector.extract_strided_slice %34 {offsets = [0, 5, 0, 0], sizes = [2, 1, 8, 32], strides = [1, 1, 1, 1]} : vector<2x8x8x32xf32> to vector<2x1x8x32xf32>
    %156 = vector.extract_strided_slice %34 {offsets = [0, 7, 0, 0], sizes = [2, 1, 8, 32], strides = [1, 1, 1, 1]} : vector<2x8x8x32xf32> to vector<2x1x8x32xf32>
    %157 = tpu.concatenate %154, %155, %156 in 1 : vector<2x1x8x32xf32>, vector<2x1x8x32xf32>, vector<2x1x8x32xf32> -> vector<2x3x8x32xf32>
    %158 = vector.extract_strided_slice %157 {offsets = [0, 0, 0, 0], sizes = [2, 3, 1, 32], strides = [1, 1, 1, 1]} : vector<2x3x8x32xf32> to vector<2x3x1x32xf32>
    %159 = vector.extract_strided_slice %157 {offsets = [0, 0, 2, 0], sizes = [2, 3, 1, 32], strides = [1, 1, 1, 1]} : vector<2x3x8x32xf32> to vector<2x3x1x32xf32>
    %160 = vector.extract_strided_slice %157 {offsets = [0, 0, 4, 0], sizes = [2, 3, 1, 32], strides = [1, 1, 1, 1]} : vector<2x3x8x32xf32> to vector<2x3x1x32xf32>
    %161 = tpu.concatenate %158, %159, %160 in 2 : vector<2x3x1x32xf32>, vector<2x3x1x32xf32>, vector<2x3x1x32xf32> -> vector<2x3x3x32xf32>
    %162 = vector.shape_cast %161 : vector<2x3x3x32xf32> to vector<18x32xf32>
    %163 = arith.truncf %162 : vector<18x32xf32> to vector<18x32xbf16>
    %c640 = arith.constant 640 : index
    %c0_35 = arith.constant 0 : index
    %164 = vector.load %arg1[%c640, %c0_35] : memref<1600x128xbf16, #tpu.memory_space<vmem>>, vector<32x128xbf16>
    %cst_36 = arith.constant dense<0.000000e+00> : vector<18x128xf32>
    %165 = tpu.matmul %163, %164, %cst_36 {dimension_numbers = #tpu.dot_dimension_numbers<[1], [0], [0], [1], [0, 0, 1, 1], [], []>} : vector<18x32xbf16>, vector<32x128xbf16>, vector<18x128xf32> -> vector<18x128xf32>
    %166 = arith.addf %153, %165 : vector<18x128xf32>
    %167 = vector.extract_strided_slice %157 {offsets = [0, 0, 1, 0], sizes = [2, 3, 1, 32], strides = [1, 1, 1, 1]} : vector<2x3x8x32xf32> to vector<2x3x1x32xf32>
    %168 = vector.extract_strided_slice %157 {offsets = [0, 0, 3, 0], sizes = [2, 3, 1, 32], strides = [1, 1, 1, 1]} : vector<2x3x8x32xf32> to vector<2x3x1x32xf32>
    %169 = vector.extract_strided_slice %157 {offsets = [0, 0, 5, 0], sizes = [2, 3, 1, 32], strides = [1, 1, 1, 1]} : vector<2x3x8x32xf32> to vector<2x3x1x32xf32>
    %170 = tpu.concatenate %167, %168, %169 in 2 : vector<2x3x1x32xf32>, vector<2x3x1x32xf32>, vector<2x3x1x32xf32> -> vector<2x3x3x32xf32>
    %171 = vector.shape_cast %170 : vector<2x3x3x32xf32> to vector<18x32xf32>
    %172 = arith.truncf %171 : vector<18x32xf32> to vector<18x32xbf16>
    %c672 = arith.constant 672 : index
    %c0_37 = arith.constant 0 : index
    %173 = vector.load %arg1[%c672, %c0_37] : memref<1600x128xbf16, #tpu.memory_space<vmem>>, vector<32x128xbf16>
    %cst_38 = arith.constant dense<0.000000e+00> : vector<18x128xf32>
    %174 = tpu.matmul %172, %173, %cst_38 {dimension_numbers = #tpu.dot_dimension_numbers<[1], [0], [0], [1], [0, 0, 1, 1], [], []>} : vector<18x32xbf16>, vector<32x128xbf16>, vector<18x128xf32> -> vector<18x128xf32>
    %175 = arith.addf %166, %174 : vector<18x128xf32>
    %176 = vector.extract_strided_slice %157 {offsets = [0, 0, 2, 0], sizes = [2, 3, 1, 32], strides = [1, 1, 1, 1]} : vector<2x3x8x32xf32> to vector<2x3x1x32xf32>
    %177 = vector.extract_strided_slice %157 {offsets = [0, 0, 4, 0], sizes = [2, 3, 1, 32], strides = [1, 1, 1, 1]} : vector<2x3x8x32xf32> to vector<2x3x1x32xf32>
    %178 = vector.extract_strided_slice %157 {offsets = [0, 0, 6, 0], sizes = [2, 3, 1, 32], strides = [1, 1, 1, 1]} : vector<2x3x8x32xf32> to vector<2x3x1x32xf32>
    %179 = tpu.concatenate %176, %177, %178 in 2 : vector<2x3x1x32xf32>, vector<2x3x1x32xf32>, vector<2x3x1x32xf32> -> vector<2x3x3x32xf32>
    %180 = vector.shape_cast %179 : vector<2x3x3x32xf32> to vector<18x32xf32>
    %181 = arith.truncf %180 : vector<18x32xf32> to vector<18x32xbf16>
    %c704 = arith.constant 704 : index
    %c0_39 = arith.constant 0 : index
    %182 = vector.load %arg1[%c704, %c0_39] : memref<1600x128xbf16, #tpu.memory_space<vmem>>, vector<32x128xbf16>
    %cst_40 = arith.constant dense<0.000000e+00> : vector<18x128xf32>
    %183 = tpu.matmul %181, %182, %cst_40 {dimension_numbers = #tpu.dot_dimension_numbers<[1], [0], [0], [1], [0, 0, 1, 1], [], []>} : vector<18x32xbf16>, vector<32x128xbf16>, vector<18x128xf32> -> vector<18x128xf32>
    %184 = arith.addf %175, %183 : vector<18x128xf32>
    %185 = vector.extract_strided_slice %157 {offsets = [0, 0, 3, 0], sizes = [2, 3, 1, 32], strides = [1, 1, 1, 1]} : vector<2x3x8x32xf32> to vector<2x3x1x32xf32>
    %186 = vector.extract_strided_slice %157 {offsets = [0, 0, 5, 0], sizes = [2, 3, 1, 32], strides = [1, 1, 1, 1]} : vector<2x3x8x32xf32> to vector<2x3x1x32xf32>
    %187 = vector.extract_strided_slice %157 {offsets = [0, 0, 7, 0], sizes = [2, 3, 1, 32], strides = [1, 1, 1, 1]} : vector<2x3x8x32xf32> to vector<2x3x1x32xf32>
    %188 = tpu.concatenate %185, %186, %187 in 2 : vector<2x3x1x32xf32>, vector<2x3x1x32xf32>, vector<2x3x1x32xf32> -> vector<2x3x3x32xf32>
    %189 = vector.shape_cast %188 : vector<2x3x3x32xf32> to vector<18x32xf32>
    %190 = arith.truncf %189 : vector<18x32xf32> to vector<18x32xbf16>
    %c736 = arith.constant 736 : index
    %c0_41 = arith.constant 0 : index
    %191 = vector.load %arg1[%c736, %c0_41] : memref<1600x128xbf16, #tpu.memory_space<vmem>>, vector<32x128xbf16>
    %cst_42 = arith.constant dense<0.000000e+00> : vector<18x128xf32>
    %192 = tpu.matmul %190, %191, %cst_42 {dimension_numbers = #tpu.dot_dimension_numbers<[1], [0], [0], [1], [0, 0, 1, 1], [], []>} : vector<18x32xbf16>, vector<32x128xbf16>, vector<18x128xf32> -> vector<18x128xf32>
    %193 = arith.addf %184, %192 : vector<18x128xf32>
    %cst_43 = arith.constant dense<0.000000e+00> : vector<128xf32>
    %194 = vector.multi_reduction <add>, %193, %cst_43 [0] : vector<18x128xf32> to vector<128xf32>
    %195 = vector.shape_cast %194 : vector<128xf32> to vector<1x128xf32>
    %cst_44 = arith.constant 0.055555556 : f32
    %196 = vector.broadcast %cst_44 : f32 to vector<1x128xf32>
    %197 = arith.mulf %195, %196 : vector<1x128xf32>
    %198 = vector.broadcast %197 : vector<1x128xf32> to vector<18x128xf32>
    %199 = arith.subf %193, %198 : vector<18x128xf32>
    %200 = arith.mulf %199, %199 : vector<18x128xf32>
    %cst_45 = arith.constant dense<0.000000e+00> : vector<128xf32>
    %201 = vector.multi_reduction <add>, %200, %cst_45 [0] : vector<18x128xf32> to vector<128xf32>
    %202 = vector.shape_cast %201 : vector<128xf32> to vector<1x128xf32>
    %cst_46 = arith.constant 0.055555556 : f32
    %203 = vector.broadcast %cst_46 : f32 to vector<1x128xf32>
    %204 = arith.mulf %202, %203 : vector<1x128xf32>
    %cst_47 = arith.constant 9.99999974E-6 : f32
    %205 = vector.broadcast %cst_47 : f32 to vector<1x128xf32>
    %206 = arith.addf %204, %205 : vector<1x128xf32>
    %207 = math.rsqrt %206 : vector<1x128xf32>
    %208 = arith.mulf %3, %207 : vector<1x128xf32>
    %209 = vector.broadcast %208 : vector<1x128xf32> to vector<18x128xf32>
    %210 = arith.mulf %199, %209 : vector<18x128xf32>
    %211 = vector.broadcast %4 : vector<1x128xf32> to vector<18x128xf32>
    %212 = arith.addf %210, %211 : vector<18x128xf32>
    %cst_48 = arith.constant 0.000000e+00 : f32
    %213 = vector.broadcast %cst_48 : f32 to vector<18x128xf32>
    %214 = arith.maximumf %212, %213 : vector<18x128xf32>
    %215 = vector.extract_strided_slice %214 {offsets = [0, 0], sizes = [18, 64], strides = [1, 1]} : vector<18x128xf32> to vector<18x64xf32>
    %216 = vector.shape_cast %215 : vector<18x64xf32> to vector<2x3x3x64xf32>
    %217 = vector.extract_strided_slice %216 {offsets = [0, 0, 0, 0], sizes = [2, 1, 3, 64], strides = [1, 1, 1, 1]} : vector<2x3x3x64xf32> to vector<2x1x3x64xf32>
    %218 = vector.extract_strided_slice %217 {offsets = [0, 0, 0, 0], sizes = [2, 1, 1, 64], strides = [1, 1, 1, 1]} : vector<2x1x3x64xf32> to vector<2x1x1x64xf32>
    %219 = vector.shape_cast %218 : vector<2x1x1x64xf32> to vector<2x64xf32>
    %220 = arith.truncf %219 : vector<2x64xf32> to vector<2x64xbf16>
    %c768 = arith.constant 768 : index
    %c0_49 = arith.constant 0 : index
    %221 = vector.load %arg1[%c768, %c0_49] : memref<1600x128xbf16, #tpu.memory_space<vmem>>, vector<64x128xbf16>
    %cst_50 = arith.constant dense<0.000000e+00> : vector<2x128xf32>
    %222 = tpu.matmul %220, %221, %cst_50 {dimension_numbers = #tpu.dot_dimension_numbers<[1], [0], [0], [1], [0, 0, 1, 1], [], []>} : vector<2x64xbf16>, vector<64x128xbf16>, vector<2x128xf32> -> vector<2x128xf32>
    %223 = vector.extract_strided_slice %217 {offsets = [0, 0, 1, 0], sizes = [2, 1, 1, 64], strides = [1, 1, 1, 1]} : vector<2x1x3x64xf32> to vector<2x1x1x64xf32>
    %224 = vector.shape_cast %223 : vector<2x1x1x64xf32> to vector<2x64xf32>
    %225 = arith.truncf %224 : vector<2x64xf32> to vector<2x64xbf16>
    %c832 = arith.constant 832 : index
    %c0_51 = arith.constant 0 : index
    %226 = vector.load %arg1[%c832, %c0_51] : memref<1600x128xbf16, #tpu.memory_space<vmem>>, vector<64x128xbf16>
    %cst_52 = arith.constant dense<0.000000e+00> : vector<2x128xf32>
    %227 = tpu.matmul %225, %226, %cst_52 {dimension_numbers = #tpu.dot_dimension_numbers<[1], [0], [0], [1], [0, 0, 1, 1], [], []>} : vector<2x64xbf16>, vector<64x128xbf16>, vector<2x128xf32> -> vector<2x128xf32>
    %228 = arith.addf %222, %227 : vector<2x128xf32>
    %229 = vector.extract_strided_slice %217 {offsets = [0, 0, 2, 0], sizes = [2, 1, 1, 64], strides = [1, 1, 1, 1]} : vector<2x1x3x64xf32> to vector<2x1x1x64xf32>
    %230 = vector.shape_cast %229 : vector<2x1x1x64xf32> to vector<2x64xf32>
    %231 = arith.truncf %230 : vector<2x64xf32> to vector<2x64xbf16>
    %c896 = arith.constant 896 : index
    %c0_53 = arith.constant 0 : index
    %232 = vector.load %arg1[%c896, %c0_53] : memref<1600x128xbf16, #tpu.memory_space<vmem>>, vector<64x128xbf16>
    %cst_54 = arith.constant dense<0.000000e+00> : vector<2x128xf32>
    %233 = tpu.matmul %231, %232, %cst_54 {dimension_numbers = #tpu.dot_dimension_numbers<[1], [0], [0], [1], [0, 0, 1, 1], [], []>} : vector<2x64xbf16>, vector<64x128xbf16>, vector<2x128xf32> -> vector<2x128xf32>
    %234 = arith.addf %228, %233 : vector<2x128xf32>
    %235 = vector.extract_strided_slice %216 {offsets = [0, 1, 0, 0], sizes = [2, 1, 3, 64], strides = [1, 1, 1, 1]} : vector<2x3x3x64xf32> to vector<2x1x3x64xf32>
    %236 = vector.extract_strided_slice %235 {offsets = [0, 0, 0, 0], sizes = [2, 1, 1, 64], strides = [1, 1, 1, 1]} : vector<2x1x3x64xf32> to vector<2x1x1x64xf32>
    %237 = vector.shape_cast %236 : vector<2x1x1x64xf32> to vector<2x64xf32>
    %238 = arith.truncf %237 : vector<2x64xf32> to vector<2x64xbf16>
    %c960 = arith.constant 960 : index
    %c0_55 = arith.constant 0 : index
    %239 = vector.load %arg1[%c960, %c0_55] : memref<1600x128xbf16, #tpu.memory_space<vmem>>, vector<64x128xbf16>
    %cst_56 = arith.constant dense<0.000000e+00> : vector<2x128xf32>
    %240 = tpu.matmul %238, %239, %cst_56 {dimension_numbers = #tpu.dot_dimension_numbers<[1], [0], [0], [1], [0, 0, 1, 1], [], []>} : vector<2x64xbf16>, vector<64x128xbf16>, vector<2x128xf32> -> vector<2x128xf32>
    %241 = arith.addf %234, %240 : vector<2x128xf32>
    %242 = vector.extract_strided_slice %235 {offsets = [0, 0, 1, 0], sizes = [2, 1, 1, 64], strides = [1, 1, 1, 1]} : vector<2x1x3x64xf32> to vector<2x1x1x64xf32>
    %243 = vector.shape_cast %242 : vector<2x1x1x64xf32> to vector<2x64xf32>
    %244 = arith.truncf %243 : vector<2x64xf32> to vector<2x64xbf16>
    %c1024 = arith.constant 1024 : index
    %c0_57 = arith.constant 0 : index
    %245 = vector.load %arg1[%c1024, %c0_57] : memref<1600x128xbf16, #tpu.memory_space<vmem>>, vector<64x128xbf16>
    %cst_58 = arith.constant dense<0.000000e+00> : vector<2x128xf32>
    %246 = tpu.matmul %244, %245, %cst_58 {dimension_numbers = #tpu.dot_dimension_numbers<[1], [0], [0], [1], [0, 0, 1, 1], [], []>} : vector<2x64xbf16>, vector<64x128xbf16>, vector<2x128xf32> -> vector<2x128xf32>
    %247 = arith.addf %241, %246 : vector<2x128xf32>
    %248 = vector.extract_strided_slice %235 {offsets = [0, 0, 2, 0], sizes = [2, 1, 1, 64], strides = [1, 1, 1, 1]} : vector<2x1x3x64xf32> to vector<2x1x1x64xf32>
    %249 = vector.shape_cast %248 : vector<2x1x1x64xf32> to vector<2x64xf32>
    %250 = arith.truncf %249 : vector<2x64xf32> to vector<2x64xbf16>
    %c1088 = arith.constant 1088 : index
    %c0_59 = arith.constant 0 : index
    %251 = vector.load %arg1[%c1088, %c0_59] : memref<1600x128xbf16, #tpu.memory_space<vmem>>, vector<64x128xbf16>
    %cst_60 = arith.constant dense<0.000000e+00> : vector<2x128xf32>
    %252 = tpu.matmul %250, %251, %cst_60 {dimension_numbers = #tpu.dot_dimension_numbers<[1], [0], [0], [1], [0, 0, 1, 1], [], []>} : vector<2x64xbf16>, vector<64x128xbf16>, vector<2x128xf32> -> vector<2x128xf32>
    %253 = arith.addf %247, %252 : vector<2x128xf32>
    %254 = vector.extract_strided_slice %216 {offsets = [0, 2, 0, 0], sizes = [2, 1, 3, 64], strides = [1, 1, 1, 1]} : vector<2x3x3x64xf32> to vector<2x1x3x64xf32>
    %255 = vector.extract_strided_slice %254 {offsets = [0, 0, 0, 0], sizes = [2, 1, 1, 64], strides = [1, 1, 1, 1]} : vector<2x1x3x64xf32> to vector<2x1x1x64xf32>
    %256 = vector.shape_cast %255 : vector<2x1x1x64xf32> to vector<2x64xf32>
    %257 = arith.truncf %256 : vector<2x64xf32> to vector<2x64xbf16>
    %c1152 = arith.constant 1152 : index
    %c0_61 = arith.constant 0 : index
    %258 = vector.load %arg1[%c1152, %c0_61] : memref<1600x128xbf16, #tpu.memory_space<vmem>>, vector<64x128xbf16>
    %cst_62 = arith.constant dense<0.000000e+00> : vector<2x128xf32>
    %259 = tpu.matmul %257, %258, %cst_62 {dimension_numbers = #tpu.dot_dimension_numbers<[1], [0], [0], [1], [0, 0, 1, 1], [], []>} : vector<2x64xbf16>, vector<64x128xbf16>, vector<2x128xf32> -> vector<2x128xf32>
    %260 = arith.addf %253, %259 : vector<2x128xf32>
    %261 = vector.extract_strided_slice %254 {offsets = [0, 0, 1, 0], sizes = [2, 1, 1, 64], strides = [1, 1, 1, 1]} : vector<2x1x3x64xf32> to vector<2x1x1x64xf32>
    %262 = vector.shape_cast %261 : vector<2x1x1x64xf32> to vector<2x64xf32>
    %263 = arith.truncf %262 : vector<2x64xf32> to vector<2x64xbf16>
    %c1216 = arith.constant 1216 : index
    %c0_63 = arith.constant 0 : index
    %264 = vector.load %arg1[%c1216, %c0_63] : memref<1600x128xbf16, #tpu.memory_space<vmem>>, vector<64x128xbf16>
    %cst_64 = arith.constant dense<0.000000e+00> : vector<2x128xf32>
    %265 = tpu.matmul %263, %264, %cst_64 {dimension_numbers = #tpu.dot_dimension_numbers<[1], [0], [0], [1], [0, 0, 1, 1], [], []>} : vector<2x64xbf16>, vector<64x128xbf16>, vector<2x128xf32> -> vector<2x128xf32>
    %266 = arith.addf %260, %265 : vector<2x128xf32>
    %267 = vector.extract_strided_slice %254 {offsets = [0, 0, 2, 0], sizes = [2, 1, 1, 64], strides = [1, 1, 1, 1]} : vector<2x1x3x64xf32> to vector<2x1x1x64xf32>
    %268 = vector.shape_cast %267 : vector<2x1x1x64xf32> to vector<2x64xf32>
    %269 = arith.truncf %268 : vector<2x64xf32> to vector<2x64xbf16>
    %c1280 = arith.constant 1280 : index
    %c0_65 = arith.constant 0 : index
    %270 = vector.load %arg1[%c1280, %c0_65] : memref<1600x128xbf16, #tpu.memory_space<vmem>>, vector<64x128xbf16>
    %cst_66 = arith.constant dense<0.000000e+00> : vector<2x128xf32>
    %271 = tpu.matmul %269, %270, %cst_66 {dimension_numbers = #tpu.dot_dimension_numbers<[1], [0], [0], [1], [0, 0, 1, 1], [], []>} : vector<2x64xbf16>, vector<64x128xbf16>, vector<2x128xf32> -> vector<2x128xf32>
    %272 = arith.addf %266, %271 : vector<2x128xf32>
    %cst_67 = arith.constant dense<0.000000e+00> : vector<128xf32>
    %273 = vector.multi_reduction <add>, %272, %cst_67 [0] : vector<2x128xf32> to vector<128xf32>
    %274 = vector.shape_cast %273 : vector<128xf32> to vector<1x128xf32>
    %cst_68 = arith.constant 5.000000e-01 : f32
    %275 = vector.broadcast %cst_68 : f32 to vector<1x128xf32>
    %276 = arith.mulf %274, %275 : vector<1x128xf32>
    %277 = vector.broadcast %276 : vector<1x128xf32> to vector<2x128xf32>
    %278 = arith.subf %272, %277 : vector<2x128xf32>
    %279 = arith.mulf %278, %278 : vector<2x128xf32>
    %cst_69 = arith.constant dense<0.000000e+00> : vector<128xf32>
    %280 = vector.multi_reduction <add>, %279, %cst_69 [0] : vector<2x128xf32> to vector<128xf32>
    %281 = vector.shape_cast %280 : vector<128xf32> to vector<1x128xf32>
    %cst_70 = arith.constant 5.000000e-01 : f32
    %282 = vector.broadcast %cst_70 : f32 to vector<1x128xf32>
    %283 = arith.mulf %281, %282 : vector<1x128xf32>
    %cst_71 = arith.constant 9.99999974E-6 : f32
    %284 = vector.broadcast %cst_71 : f32 to vector<1x128xf32>
    %285 = arith.addf %283, %284 : vector<1x128xf32>
    %286 = math.rsqrt %285 : vector<1x128xf32>
    %287 = arith.mulf %5, %286 : vector<1x128xf32>
    %288 = vector.broadcast %287 : vector<1x128xf32> to vector<2x128xf32>
    %289 = arith.mulf %278, %288 : vector<2x128xf32>
    %290 = vector.broadcast %6 : vector<1x128xf32> to vector<2x128xf32>
    %291 = arith.addf %289, %290 : vector<2x128xf32>
    %cst_72 = arith.constant 0.000000e+00 : f32
    %292 = vector.broadcast %cst_72 : f32 to vector<2x128xf32>
    %293 = arith.maximumf %291, %292 : vector<2x128xf32>
    %294 = vector.extract_strided_slice %293 {offsets = [0, 0], sizes = [2, 64], strides = [1, 1]} : vector<2x128xf32> to vector<2x64xf32>
    %295 = arith.truncf %294 : vector<2x64xf32> to vector<2x64xbf16>
    %c0_73 = arith.constant 0 : index
    %c0_74 = arith.constant 0 : index
    %296 = vector.load %arg2[%c0_73, %c0_74] : memref<64x256xbf16, #tpu.memory_space<vmem>>, vector<64x256xbf16>
    %cst_75 = arith.constant dense<0.000000e+00> : vector<2x256xf32>
    %297 = tpu.matmul %295, %296, %cst_75 {dimension_numbers = #tpu.dot_dimension_numbers<[1], [0], [0], [1], [0, 0, 1, 1], [], []>} : vector<2x64xbf16>, vector<64x256xbf16>, vector<2x256xf32> -> vector<2x256xf32>
    %298 = vector.broadcast %7 : vector<1x256xf32> to vector<2x256xf32>
    %299 = arith.addf %297, %298 : vector<2x256xf32>
    %cst_76 = arith.constant 0.000000e+00 : f32
    %300 = vector.broadcast %cst_76 : f32 to vector<2x256xf32>
    %301 = arith.cmpf ogt, %299, %300 : vector<2x256xf32>
    %cst_77 = arith.constant 0.00999999977 : f32
    %302 = vector.broadcast %cst_77 : f32 to vector<2x256xf32>
    %303 = arith.mulf %302, %299 : vector<2x256xf32>
    %304 = arith.select %301, %299, %303 : vector<2x256xi1>, vector<2x256xf32>
    %305 = arith.truncf %304 : vector<2x256xf32> to vector<2x256xbf16>
    %c1344 = arith.constant 1344 : index
    %c0_78 = arith.constant 0 : index
    %306 = vector.load %arg1[%c1344, %c0_78] : memref<1600x128xbf16, #tpu.memory_space<vmem>>, vector<256x128xbf16>
    %cst_79 = arith.constant dense<0.000000e+00> : vector<2x128xf32>
    %307 = tpu.matmul %305, %306, %cst_79 {dimension_numbers = #tpu.dot_dimension_numbers<[1], [0], [0], [1], [0, 0, 1, 1], [], []>} : vector<2x256xbf16>, vector<256x128xbf16>, vector<2x128xf32> -> vector<2x128xf32>
    %308 = vector.broadcast %8 : vector<1x128xf32> to vector<2x128xf32>
    %309 = arith.addf %307, %308 : vector<2x128xf32>
    %310 = tpu.iota {dimensions = array<i32: 1>} : vector<2x128xi32>
    %c6_i32 = arith.constant 6 : i32
    %311 = vector.broadcast %c6_i32 : i32 to vector<2x128xi32>
    %312 = arith.cmpi slt, %310, %311 : vector<2x128xi32>
    %313 = arith.extui %312 : vector<2x128xi1> to vector<2x128xi32>
    %314 = arith.sitofp %313 : vector<2x128xi32> to vector<2x128xf32>
    %c6_i32_80 = arith.constant 6 : i32
    %315 = vector.broadcast %c6_i32_80 : i32 to vector<2x128xi32>
    %316 = arith.cmpi eq, %310, %315 : vector<2x128xi32>
    %317 = arith.extui %316 : vector<2x128xi1> to vector<2x128xi32>
    %318 = arith.sitofp %317 : vector<2x128xi32> to vector<2x128xf32>
    %319 = arith.mulf %309, %314 : vector<2x128xf32>
    %320 = vector.shape_cast %319 : vector<2x128xf32> to vector<1x2x128xf32>
    %cst_81 = arith.constant dense<0.000000e+00> : vector<1xf32>
    %321 = vector.multi_reduction <add>, %320, %cst_81 [1, 2] : vector<1x2x128xf32> to vector<1xf32>
    %322 = vector.shape_cast %321 : vector<1xf32> to vector<1x1x1xf32>
    %323 = vector.extract %322[0, 0, 0] : f32 from vector<1x1x1xf32>
    %cst_82 = arith.constant 0.0833333358 : f32
    %324 = arith.mulf %323, %cst_82 : f32
    %325 = arith.mulf %309, %318 : vector<2x128xf32>
    %cst_83 = arith.constant dense<0.000000e+00> : vector<2xf32>
    %326 = vector.multi_reduction <add>, %325, %cst_83 [1] : vector<2x128xf32> to vector<2xf32>
    %327 = vector.shape_cast %326 : vector<2xf32> to vector<2x1xf32>
    %328 = vector.broadcast %327 : vector<2x1xf32> to vector<2x128xf32>
    %329 = arith.addf %309, %328 : vector<2x128xf32>
    %330 = vector.broadcast %324 : f32 to vector<2x128xf32>
    %331 = arith.subf %329, %330 : vector<2x128xf32>
    %332 = arith.mulf %331, %314 : vector<2x128xf32>
    %c0_84 = arith.constant 0 : index
    %c0_85 = arith.constant 0 : index
    %333 = vector.load %arg4[%c0_84, %c0_85] : memref<2x128xf32, #tpu.memory_space<vmem>>, vector<2x128xf32>
    tpu.vector_store %arg4[%c0_84, %c0_85], %332 {strides = array<i32>} : memref<2x128xf32, #tpu.memory_space<vmem>>, vector<2x128xf32>,
    return
  }
}

</mosaic_0001>

<llo_original>
// kernel: cnn_forward.1
$region0: #{cnn_forward.1}
  #allocation0 [shape = 'u32[]', space=smem, size = 0x4, offset = 0x4, fixed_abs, tag = 'smem constant byte address 0x4 - core index']
  #allocation1 [shape = 'u32[144,128]{1,0:T(1,128)}', space=vmem, size = 0x12000, scoped, tag = 'internal scratch']
  %s0 = inlined_call_operand.vmem [shape: bf16[128,256], index: 0, kind: input, shape index: {}]
  %s1 = inlined_call_operand.vmem [shape: bf16[1600,128], index: 1, kind: input, shape index: {}]
  %s2 = inlined_call_operand.vmem [shape: bf16[64,256], index: 2, kind: input, shape index: {}]
  %s3 = inlined_call_operand.vmem [shape: f32[8,256], index: 3, kind: input, shape index: {}]
  %s4 = inlined_call_operand.hbm [shape: f32[2,128], index: 4, kind: output, shape index: {}]
  %s5 = sld [smem:[#allocation0]]
  $region26: #{cnn_forward.1} parent=0
    _
  %s7 = ssub.s32 1, %s5
  %s8 = scalar_select 0, %s7, %s5
  $region1: #{cnn_forward.1} parent=0
    #allocation2 [shape = 'u8[1024]{0}', space=vmem, size = 0x400, scoped, tag = 'output window, operand 0, single buffered']
    #allocation3 [shape = 's32[1]{0}', space=sflag, size = 0x4, scoped, tag = 'scoped memory for cnn_forward.1']
    %9 = vsyncpa [#allocation3], 0
    // Predicated region
    $region2: #{cnn_forward.1} parent=1 // pred_check
      _
    $region3: #{cnn_forward.1} parent=1 // pred_check_branch
      %11 = sbr.rel (0) target = $region5
    $region4: #{cnn_forward.1} parent=1 // pred_region
      _
    $region5: #{cnn_forward.1} parent=1 // pred_fallthru
      _
    // Predicated region
    $region6: #{cnn_forward.1} parent=1 // pred_check
      _
    $region7: #{cnn_forward.1} parent=1 // pred_check_branch
      %13 = sbr.rel (0) target = $region9
    $region8: #{cnn_forward.1} parent=1 // pred_region
      _
    $region9: #{cnn_forward.1} parent=1 // pred_fallthru
      _
    // Predicated region
    $region10: #{cnn_forward.1} parent=1 // pred_check
      _
    $region11: #{cnn_forward.1} parent=1 // pred_check_branch
      %15 = sbr.rel (0) target = $region13
    $region12: #{cnn_forward.1} parent=1 // pred_region
      _
    $region13: #{cnn_forward.1} parent=1 // pred_fallthru
      _
    // Predicated region
    $region14: #{cnn_forward.1} parent=1 // pred_check
      _
    $region15: #{cnn_forward.1} parent=1 // pred_check_branch
      %17 = sbr.rel (0) target = $region17
    $region16: #{cnn_forward.1} parent=1 // pred_region
      _
    $region17: #{cnn_forward.1} parent=1 // pred_fallthru
      _
    %v19 = vld [vmem:[%s3] sm:$0xff]
    %v20 = vld [vmem:[%s3 + $0x8] sm:$0xff]
    %v21 = vld [vmem:[%s0] sm:$0xff]
    %v22 = vld [vmem:[%s0 + $0x8] sm:$0xff]
    %v23 = vld [vmem:[%s0 + $0x10] sm:$0xff]
    %v24 = vld [vmem:[%s0 + $0x18] sm:$0xff]
    %v25 = vld [vmem:[%s0 + $0x20] sm:$0xff]
    %v26 = vld [vmem:[%s0 + $0x28] sm:$0xff]
    %v27 = vld [vmem:[%s0 + $0x30] sm:$0xff]
    %v28 = vld [vmem:[%s0 + $0x38] sm:$0xff]
    %v29 = vld [vmem:[%s0 + $0x40] sm:$0xff]
    %v30 = vld [vmem:[%s0 + $0x48] sm:$0xff]
    %v31 = vld [vmem:[%s0 + $0x50] sm:$0xff]
    %v32 = vld [vmem:[%s0 + $0x58] sm:$0xff]
    %v33 = vld [vmem:[%s0 + $0x60] sm:$0xff]
    %v34 = vld [vmem:[%s0 + $0x68] sm:$0xff]
    %v35 = vld [vmem:[%s0 + $0x70] sm:$0xff]
    %v36 = vld [vmem:[%s0 + $0x78] sm:$0xff]
    %v37 = vld [vmem:[%s1] sm:$0xf]
    %v38 = vld [vmem:[%s1 + $0x4] sm:$0xf]
    %v39 = vld [vmem:[%s1 + $0x8] sm:$0xf]
    %v40 = vld [vmem:[%s1 + $0xc] sm:$0xf]
    %v41 = vld [vmem:[%s1 + $0x10] sm:$0xf]
    %v42 = vld [vmem:[%s1 + $0x14] sm:$0xf]
    %v43 = vld [vmem:[%s1 + $0x18] sm:$0xf]
    %v44 = vld [vmem:[%s1 + $0x1c] sm:$0xf]
    %v45 = vld [vmem:[%s1 + $0x20] sm:$0xf]
    %v46 = vld [vmem:[%s1 + $0x24] sm:$0xf]
    %v47 = vld [vmem:[%s1 + $0x28] sm:$0xf]
    %v48 = vld [vmem:[%s1 + $0x2c] sm:$0xf]
    %v49 = vld [vmem:[%s1 + $0x30] sm:$0xf]
    %v50 = vld [vmem:[%s1 + $0x34] sm:$0xf]
    %v51 = vld [vmem:[%s1 + $0x38] sm:$0xf]
    %v52 = vld [vmem:[%s1 + $0x3c] sm:$0xf]
    %v53 = vld [vmem:[%s1 + $0x40] sm:$0xf]
    %v54 = vld [vmem:[%s1 + $0x44] sm:$0xf]
    %v55 = vld [vmem:[%s1 + $0x48] sm:$0xf]
    %v56 = vld [vmem:[%s1 + $0x4c] sm:$0xf]
    %v57 = vld [vmem:[%s1 + $0x50] sm:$0xf]
    %v58 = vld [vmem:[%s1 + $0x54] sm:$0xf]
    %v59 = vld [vmem:[%s1 + $0x58] sm:$0xf]
    %v60 = vld [vmem:[%s1 + $0x5c] sm:$0xf]
    %v61 = vld [vmem:[%s1 + $0x60] sm:$0xf]
    %v62 = vld [vmem:[%s1 + $0x64] sm:$0xf]
    %v63 = vld [vmem:[%s1 + $0x68] sm:$0xf]
    %v64 = vld [vmem:[%s1 + $0x6c] sm:$0xf]
    %v65 = vld [vmem:[%s1 + $0x70] sm:$0xf]
    %v66 = vld [vmem:[%s1 + $0x74] sm:$0xf]
    %v67 = vld [vmem:[%s1 + $0x78] sm:$0xf]
    %v68 = vld [vmem:[%s1 + $0x7c] sm:$0xf]
    %v85 = vunpack.c.l.b16 %v21
    %v86 = vunpack.c.h.b16 %v21
    %v87 = vunpack.c.l.b16 %v22
    %v88 = vunpack.c.h.b16 %v22
    %v89 = vunpack.c.l.b16 %v23
    %v90 = vunpack.c.h.b16 %v23
    %v91 = vunpack.c.l.b16 %v24
    %v92 = vunpack.c.h.b16 %v24
    %v93 = vunpack.c.l.b16 %v25
    %v94 = vunpack.c.h.b16 %v25
    %v95 = vunpack.c.l.b16 %v26
    %v96 = vunpack.c.h.b16 %v26
    %v97 = vunpack.c.l.b16 %v27
    %v98 = vunpack.c.h.b16 %v27
    %v99 = vunpack.c.l.b16 %v28
    %v100 = vunpack.c.h.b16 %v28
    %v101 = vunpack.c.l.b16 %v29
    %v102 = vunpack.c.h.b16 %v29
    %v103 = vunpack.c.l.b16 %v30
    %v104 = vunpack.c.h.b16 %v30
    %v105 = vunpack.c.l.b16 %v31
    %v106 = vunpack.c.h.b16 %v31
    %v107 = vunpack.c.l.b16 %v32
    %v108 = vunpack.c.h.b16 %v32
    %v109 = vunpack.c.l.b16 %v33
    %v110 = vunpack.c.h.b16 %v33
    %v111 = vunpack.c.l.b16 %v34
    %v112 = vunpack.c.h.b16 %v34
    %v113 = vunpack.c.l.b16 %v35
    %v114 = vunpack.c.h.b16 %v35
    %v115 = vunpack.c.l.b16 %v36
    %v116 = vunpack.c.h.b16 %v36
    %v117 = vpack.c.b16 %v87, %v85
    %v118 = vpack.c.b16 %v88, %v86
    %v119 = vpack.c.b16 %v91, %v89
    %v120 = vpack.c.b16 %v92, %v90
    %v121 = vpack.c.b16 %v95, %v93
    %v122 = vpack.c.b16 %v96, %v94
    %v123 = vpack.c.b16 %v99, %v97
    %v124 = vpack.c.b16 %v100, %v98
    %v125 = vpack.c.b16 %v103, %v101
    %v126 = vpack.c.b16 %v104, %v102
    %v127 = vpack.c.b16 %v107, %v105
    %v128 = vpack.c.b16 %v108, %v106
    %v129 = vpack.c.b16 %v111, %v109
    %v130 = vpack.c.b16 %v112, %v110
    %v131 = vpack.c.b16 %v115, %v113
    %v132 = vpack.c.b16 %v116, %v114
    %v181 = vunpack.c.l.b16 %v37
    %v182 = vunpack.c.l.b16 %v38
    %v183 = vunpack.c.l.b16 %v39
    %v184 = vunpack.c.l.b16 %v40
    %v185 = vunpack.c.l.b16 %v41
    %v186 = vunpack.c.l.b16 %v42
    %v187 = vunpack.c.l.b16 %v43
    %v188 = vunpack.c.l.b16 %v44
    %v189 = vunpack.c.l.b16 %v45
    %v190 = vunpack.c.l.b16 %v46
    %v191 = vunpack.c.l.b16 %v47
    %v192 = vunpack.c.l.b16 %v48
    %v193 = vunpack.c.l.b16 %v49
    %v194 = vunpack.c.l.b16 %v50
    %v195 = vunpack.c.l.b16 %v51
    %v196 = vunpack.c.l.b16 %v52
    %v197 = vunpack.c.l.b16 %v53
    %v198 = vunpack.c.l.b16 %v54
    %v199 = vunpack.c.l.b16 %v55
    %v200 = vunpack.c.l.b16 %v56
    %v201 = vunpack.c.l.b16 %v57
    %v202 = vunpack.c.l.b16 %v58
    %v203 = vunpack.c.l.b16 %v59
    %v204 = vunpack.c.l.b16 %v60
    %v205 = vunpack.c.l.b16 %v61
    %v206 = vunpack.c.l.b16 %v62
    %v207 = vunpack.c.l.b16 %v63
    %v208 = vunpack.c.l.b16 %v64
    %v209 = vunpack.c.l.b16 %v65
    %v210 = vunpack.c.l.b16 %v66
    %v211 = vunpack.c.l.b16 %v67
    %v212 = vunpack.c.l.b16 %v68
    %v213 = vpack.c.b16 %v182, %v181
    %v214 = vpack.c.b16 %v184, %v183
    %v215 = vpack.c.b16 %v186, %v185
    %v216 = vpack.c.b16 %v188, %v187
    %v217 = vpack.c.b16 %v190, %v189
    %v218 = vpack.c.b16 %v192, %v191
    %v219 = vpack.c.b16 %v194, %v193
    %v220 = vpack.c.b16 %v196, %v195
    %v221 = vpack.c.b16 %v198, %v197
    %v222 = vpack.c.b16 %v200, %v199
    %v223 = vpack.c.b16 %v202, %v201
    %v224 = vpack.c.b16 %v204, %v203
    %v225 = vpack.c.b16 %v206, %v205
    %v226 = vpack.c.b16 %v208, %v207
    %v227 = vpack.c.b16 %v210, %v209
    %v228 = vpack.c.b16 %v212, %v211
    %245 = vmatprep.subr.bf16.mxu0 0
    %246 = vmatpush1.bf16.msra.mxu0 %v220
    %247 = vmatprep.subr.bf16.mxu0 0
    %248 = vmatpush1.bf16.msra.mxu0 %v219
    %249 = vmatprep.subr.bf16.mxu0 0
    %250 = vmatpush1.bf16.msra.mxu0 %v218
    %251 = vmatprep.subr.bf16.mxu0 0
    %252 = vmatpush1.bf16.msra.mxu0 %v217
    %253 = vmatprep.subr.bf16.mxu0 0
    %254 = vmatpush1.bf16.msra.mxu0 %v216
    %255 = vmatprep.subr.bf16.mxu0 0
    %256 = vmatpush1.bf16.msra.mxu0 %v215
    %257 = vmatprep.subr.bf16.mxu0 0
    %258 = vmatpush1.bf16.msra.mxu0 %v214
    %259 = vmatprep.subr.bf16.mxu0 0
    %260 = vmatpush1.bf16.msra.mxu0 %v213
    %261 = vmatprep.subr.bf16.mxu0 0
    %262 = vmatpush2.bf16.msra.mxu0 %v228
    %263 = vmatprep.subr.bf16.mxu0 0
    %264 = vmatpush2.bf16.msra.mxu0 %v227
    %265 = vmatprep.subr.bf16.mxu0 0
    %266 = vmatpush2.bf16.msra.mxu0 %v226
    %267 = vmatprep.subr.bf16.mxu0 0
    %268 = vmatpush2.bf16.msra.mxu0 %v225
    %269 = vmatprep.subr.bf16.mxu0 0
    %270 = vmatpush2.bf16.msra.mxu0 %v224
    %271 = vmatprep.subr.bf16.mxu0 0
    %272 = vmatpush2.bf16.msra.mxu0 %v223
    %273 = vmatprep.subr.bf16.mxu0 0
    %274 = vmatpush2.bf16.msra.mxu0 %v222
    %275 = vmatprep.subr.bf16.mxu0 0
    %276 = vmatpush2.bf16.msra.mxu0 %v221
    %277 = vmatprep.mubr.bf16.mxu0 %v118
    %278 = vmatmul.mubr.bf16.gmra.mxu0 %v117
    %v279 = vpop.f32.mrf.mxu0
    %v280 = vadd.f32 0.0, %v279
    %v281 = vpop.f32.mrf.mxu0
    %v282 = vpop.f32.mrf.mxu0
    %v283 = vadd.f32 0.0, %v282
    %v284 = vpop.f32.mrf.mxu0
    %285 = vmatprep.mubr.bf16.mxu0 %v120
    %286 = vmatmul.mubr.bf16.gmra.mxu0 %v119
    %v287 = vpop.f32.mrf.mxu0
    %v288 = vadd.f32 0.0, %v287
    %v289 = vpop.f32.mrf.mxu0
    %v290 = vpop.f32.mrf.mxu0
    %v291 = vadd.f32 0.0, %v290
    %v292 = vpop.f32.mrf.mxu0
    %293 = vmatprep.mubr.bf16.mxu0 %v122
    %294 = vmatmul.mubr.bf16.gmra.mxu0 %v121
    %v295 = vpop.f32.mrf.mxu0
    %v296 = vadd.f32 0.0, %v295
    %v297 = vpop.f32.mrf.mxu0
    %v298 = vpop.f32.mrf.mxu0
    %v299 = vadd.f32 0.0, %v298
    %v300 = vpop.f32.mrf.mxu0
    %301 = vmatprep.mubr.bf16.mxu0 %v124
    %302 = vmatmul.mubr.bf16.gmra.mxu0 %v123
    %v303 = vpop.f32.mrf.mxu0
    %v304 = vadd.f32 0.0, %v303
    %v305 = vpop.f32.mrf.mxu0
    %v306 = vpop.f32.mrf.mxu0
    %v307 = vadd.f32 0.0, %v306
    %v308 = vpop.f32.mrf.mxu0
    %309 = vmatprep.mubr.bf16.mxu0 %v126
    %310 = vmatmul.mubr.bf16.gmra.mxu0 %v125
    %v311 = vpop.f32.mrf.mxu0
    %v312 = vadd.f32 0.0, %v311
    %v313 = vpop.f32.mrf.mxu0
    %v314 = vpop.f32.mrf.mxu0
    %v315 = vadd.f32 0.0, %v314
    %v316 = vpop.f32.mrf.mxu0
    %317 = vmatprep.mubr.bf16.mxu0 %v128
    %318 = vmatmul.mubr.bf16.gmra.mxu0 %v127
    %v319 = vpop.f32.mrf.mxu0
    %v320 = vadd.f32 0.0, %v319
    %v321 = vpop.f32.mrf.mxu0
    %v322 = vpop.f32.mrf.mxu0
    %v323 = vadd.f32 0.0, %v322
    %v324 = vpop.f32.mrf.mxu0
    %325 = vmatprep.mubr.bf16.mxu0 %v130
    %326 = vmatmul.mubr.bf16.gmra.mxu0 %v129
    %v327 = vpop.f32.mrf.mxu0
    %v328 = vadd.f32 0.0, %v327
    %v329 = vpop.f32.mrf.mxu0
    %v330 = vpop.f32.mrf.mxu0
    %v331 = vadd.f32 0.0, %v330
    %v332 = vpop.f32.mrf.mxu0
    %333 = vmatprep.mubr.bf16.mxu0 %v132
    %334 = vmatmul.mubr.bf16.gmra.mxu0 %v131
    %v335 = vpop.f32.mrf.mxu0
    %v336 = vadd.f32 0.0, %v335
    %v337 = vpop.f32.mrf.mxu0
    %v338 = vpop.f32.mrf.mxu0
    %v339 = vadd.f32 0.0, %v338
    %v340 = vpop.f32.mrf.mxu0
    %341 = vdwg.mxu0
    %v342 = vadd.f32 %v280, %v283
    %v343 = vadd.f32 %v342, %v288
    %v344 = vadd.f32 %v343, %v291
    %v345 = vadd.f32 %v344, %v296
    %v346 = vadd.f32 %v345, %v299
    %v347 = vadd.f32 %v346, %v304
    %v348 = vadd.f32 %v347, %v307
    %v349 = vadd.f32 %v348, %v312
    %v350 = vadd.f32 %v349, %v315
    %v351 = vadd.f32 %v350, %v320
    %v352 = vadd.f32 %v351, %v323
    %v353 = vadd.f32 %v352, %v328
    %v354 = vadd.f32 %v353, %v331
    %v355 = vadd.f32 %v354, %v336
    %v356 = vadd.f32 %v355, %v339
    %v357 = vrot.slane %v356, 4
    %v358 = vadd.f32 %v356, %v357
    %v359 = vrot.slane %v358, 2
    %v360 = vadd.f32 %v358, %v359
    %v361 = vrot.slane %v360, 1
    %v362 = vadd.f32 %v360, %v361
    %v363 = vmul.f32 %v362, 0.0078125
    %v364 = vsub.f32 %v280, %v363
    %v365 = vsub.f32 %v283, %v363
    %v366 = vsub.f32 %v288, %v363
    %v367 = vsub.f32 %v291, %v363
    %v368 = vsub.f32 %v296, %v363
    %v369 = vsub.f32 %v299, %v363
    %v370 = vsub.f32 %v304, %v363
    %v371 = vsub.f32 %v307, %v363
    %v372 = vsub.f32 %v312, %v363
    %v373 = vsub.f32 %v315, %v363
    %v374 = vsub.f32 %v320, %v363
    %v375 = vsub.f32 %v323, %v363
    %v376 = vsub.f32 %v328, %v363
    %v377 = vsub.f32 %v331, %v363
    %v378 = vsub.f32 %v336, %v363
    %v379 = vsub.f32 %v339, %v363
    %v380 = vmul.f32 %v364, %v364
    %v381 = vmul.f32 %v365, %v365
    %v382 = vmul.f32 %v366, %v366
    %v383 = vmul.f32 %v367, %v367
    %v384 = vmul.f32 %v368, %v368
    %v385 = vmul.f32 %v369, %v369
    %v386 = vmul.f32 %v370, %v370
    %v387 = vmul.f32 %v371, %v371
    %v388 = vmul.f32 %v372, %v372
    %v389 = vmul.f32 %v373, %v373
    %v390 = vmul.f32 %v374, %v374
    %v391 = vmul.f32 %v375, %v375
    %v392 = vmul.f32 %v376, %v376
    %v393 = vmul.f32 %v377, %v377
    %v394 = vmul.f32 %v378, %v378
    %v395 = vmul.f32 %v379, %v379
    %v396 = vadd.f32 %v380, %v381
    %v397 = vadd.f32 %v396, %v382
    %v398 = vadd.f32 %v397, %v383
    %v399 = vadd.f32 %v398, %v384
    %v400 = vadd.f32 %v399, %v385
    %v401 = vadd.f32 %v400, %v386
    %v402 = vadd.f32 %v401, %v387
    %v403 = vadd.f32 %v402, %v388
    %v404 = vadd.f32 %v403, %v389
    %v405 = vadd.f32 %v404, %v390
    %v406 = vadd.f32 %v405, %v391
    %v407 = vadd.f32 %v406, %v392
    %v408 = vadd.f32 %v407, %v393
    %v409 = vadd.f32 %v408, %v394
    %v410 = vadd.f32 %v409, %v395
    %v411 = vrot.slane %v410, 4
    %v412 = vadd.f32 %v410, %v411
    %v413 = vrot.slane %v412, 2
    %v414 = vadd.f32 %v412, %v413
    %v415 = vrot.slane %v414, 1
    %v416 = vadd.f32 %v414, %v415
    %v417 = vmul.f32 %v416, 0.0078125
    %v418 = vadd.f32 %v417, 1e-05
    %v419 = vrsqrt.pop %v418
    %v420 = vmul.f32 %v19, %v419
    %v421 = vlaneseq
    %v422 = vshrl.u32 %v421, 7
    %v423 = vsub.s32 0, %v422
    %v424 = vrot.slane %v420, %v423
    %v425 = vmul.f32 %v364, %v424
    %v426 = vmul.f32 %v365, %v424
    %v427 = vmul.f32 %v366, %v424
    %v428 = vmul.f32 %v367, %v424
    %v429 = vmul.f32 %v368, %v424
    %v430 = vmul.f32 %v369, %v424
    %v431 = vmul.f32 %v370, %v424
    %v432 = vmul.f32 %v371, %v424
    %v433 = vmul.f32 %v372, %v424
    %v434 = vmul.f32 %v373, %v424
    %v435 = vmul.f32 %v374, %v424
    %v436 = vmul.f32 %v375, %v424
    %v437 = vmul.f32 %v376, %v424
    %v438 = vmul.f32 %v377, %v424
    %v439 = vmul.f32 %v378, %v424
    %v440 = vmul.f32 %v379, %v424
    %v441 = vlaneseq
    %v442 = vshrl.u32 %v441, 7
    %v443 = vsub.s32 1, %v442
    %v444 = vrot.slane %v19, %v443
    %v445 = vadd.f32 %v425, %v444
    %v446 = vadd.f32 %v426, %v444
    %v447 = vadd.f32 %v427, %v444
    %v448 = vadd.f32 %v428, %v444
    %v449 = vadd.f32 %v429, %v444
    %v450 = vadd.f32 %v430, %v444
    %v451 = vadd.f32 %v431, %v444
    %v452 = vadd.f32 %v432, %v444
    %v453 = vadd.f32 %v433, %v444
    %v454 = vadd.f32 %v434, %v444
    %v455 = vadd.f32 %v435, %v444
    %v456 = vadd.f32 %v436, %v444
    %v457 = vadd.f32 %v437, %v444
    %v458 = vadd.f32 %v438, %v444
    %v459 = vadd.f32 %v439, %v444
    %v460 = vadd.f32 %v440, %v444
    %v461 = vmax.f32 %v445, 0.0
    %v462 = vmax.f32 %v446, 0.0
    %v463 = vmax.f32 %v447, 0.0
    %v464 = vmax.f32 %v448, 0.0
    %v465 = vmax.f32 %v449, 0.0
    %v466 = vmax.f32 %v450, 0.0
    %v467 = vmax.f32 %v451, 0.0
    %v468 = vmax.f32 %v452, 0.0
    %v469 = vmax.f32 %v453, 0.0
    %v470 = vmax.f32 %v454, 0.0
    %v471 = vmax.f32 %v455, 0.0
    %v472 = vmax.f32 %v456, 0.0
    %v473 = vmax.f32 %v457, 0.0
    %v474 = vmax.f32 %v458, 0.0
    %v475 = vmax.f32 %v459, 0.0
    %v476 = vmax.f32 %v460, 0.0
    %v483 = vrot.slane %v461, 1
    %v484 = vrot.slane %v463, 1
    %v485 = vrot.slane %v465, 1
    %v486 = vrot.slane %v469, 1
    %v487 = vrot.slane %v471, 1
    %v488 = vrot.slane %v473, 1
    %v495 = vrot.slane %v461, 2
    %v496 = vrot.slane %v463, 2
    %v497 = vrot.slane %v465, 2
    %v498 = vrot.slane %v469, 2
    %v499 = vrot.slane %v471, 2
    %v500 = vrot.slane %v473, 2
    %vm507 = vcmask 1040384
    %v508 = vsel %vm507, %v461, %v483
    %v509 = vsel %vm507, %v463, %v484
    %v510 = vsel %vm507, %v465, %v485
    %v511 = vsel %vm507, %v469, %v486
    %v512 = vsel %vm507, %v471, %v487
    %v513 = vsel %vm507, %v473, %v488
    %vm514 = vcmask 1041408
    %v515 = vsel %vm514, %v508, %v495
    %v516 = vsel %vm514, %v509, %v496
    %v517 = vsel %vm514, %v510, %v497
    %v518 = vsel %vm514, %v511, %v498
    %v519 = vsel %vm514, %v512, %v499
    %v520 = vsel %vm514, %v513, %v500
    %v528 = vunpack.c.l.s4 1966171168
    %v529 = vunpack.c.0.s8 %v528
    %v530 = vlaneseq
    %v531 = vshrl.u32 %v530, 7
    %v532 = vsub.s32 %v529, %v531
    %v533 = vrot.slane %v515, %v532
    %v534 = vcombine.high %v533, %v533
    %v536 = vunpack.c.l.s4 1966171168
    %v537 = vunpack.c.0.s8 %v536
    %v538 = vlaneseq
    %v539 = vshrl.u32 %v538, 7
    %v540 = vsub.s32 %v537, %v539
    %v541 = vrot.slane %v533, %v540
    %v543 = vunpack.c.l.s4 1966171168
    %v544 = vunpack.c.0.s8 %v543
    %v545 = vlaneseq
    %v546 = vshrl.u32 %v545, 7
    %v547 = vsub.s32 %v544, %v546
    %v548 = vrot.slane %v534, %v547
    %v549 = vcombine.high %v541, %v541
    %v551 = vunpack.c.l.s4 1966171168
    %v552 = vunpack.c.0.s8 %v551
    %v553 = vlaneseq
    %v554 = vshrl.u32 %v553, 7
    %v555 = vsub.s32 %v552, %v554
    %v556 = vrot.slane %v516, %v555
    %v557 = vcombine.high %v556, %v556
    %v559 = vunpack.c.l.s4 1966171168
    %v560 = vunpack.c.0.s8 %v559
    %v561 = vlaneseq
    %v562 = vshrl.u32 %v561, 7
    %v563 = vsub.s32 %v560, %v562
    %v564 = vrot.slane %v556, %v563
    %v566 = vunpack.c.l.s4 1966171168
    %v567 = vunpack.c.0.s8 %v566
    %v568 = vlaneseq
    %v569 = vshrl.u32 %v568, 7
    %v570 = vsub.s32 %v567, %v569
    %v571 = vrot.slane %v557, %v570
    %v572 = vcombine.high %v564, %v564
    %v574 = vunpack.c.l.s4 1966171168
    %v575 = vunpack.c.0.s8 %v574
    %v576 = vlaneseq
    %v577 = vshrl.u32 %v576, 7
    %v578 = vsub.s32 %v575, %v577
    %v579 = vrot.slane %v517, %v578
    %v580 = vcombine.high %v579, %v579
    %v582 = vunpack.c.l.s4 1966171168
    %v583 = vunpack.c.0.s8 %v582
    %v584 = vlaneseq
    %v585 = vshrl.u32 %v584, 7
    %v586 = vsub.s32 %v583, %v585
    %v587 = vrot.slane %v579, %v586
    %v589 = vunpack.c.l.s4 1966171168
    %v590 = vunpack.c.0.s8 %v589
    %v591 = vlaneseq
    %v592 = vshrl.u32 %v591, 7
    %v593 = vsub.s32 %v590, %v592
    %v594 = vrot.slane %v580, %v593
    %v595 = vcombine.high %v587, %v587
    %v597 = vunpack.c.l.s4 1966171168
    %v598 = vunpack.c.0.s8 %v597
    %v599 = vlaneseq
    %v600 = vshrl.u32 %v599, 7
    %v601 = vsub.s32 %v598, %v600
    %v602 = vrot.slane %v518, %v601
    %v603 = vcombine.high %v602, %v602
    %v605 = vunpack.c.l.s4 1966171168
    %v606 = vunpack.c.0.s8 %v605
    %v607 = vlaneseq
    %v608 = vshrl.u32 %v607, 7
    %v609 = vsub.s32 %v606, %v608
    %v610 = vrot.slane %v602, %v609
    %v612 = vunpack.c.l.s4 1966171168
    %v613 = vunpack.c.0.s8 %v612
    %v614 = vlaneseq
    %v615 = vshrl.u32 %v614, 7
    %v616 = vsub.s32 %v613, %v615
    %v617 = vrot.slane %v603, %v616
    %v618 = vcombine.high %v610, %v610
    %v620 = vunpack.c.l.s4 1966171168
    %v621 = vunpack.c.0.s8 %v620
    %v622 = vlaneseq
    %v623 = vshrl.u32 %v622, 7
    %v624 = vsub.s32 %v621, %v623
    %v625 = vrot.slane %v519, %v624
    %v626 = vcombine.high %v625, %v625
    %v628 = vunpack.c.l.s4 1966171168
    %v629 = vunpack.c.0.s8 %v628
    %v630 = vlaneseq
    %v631 = vshrl.u32 %v630, 7
    %v632 = vsub.s32 %v629, %v631
    %v633 = vrot.slane %v625, %v632
    %v635 = vunpack.c.l.s4 1966171168
    %v636 = vunpack.c.0.s8 %v635
    %v637 = vlaneseq
    %v638 = vshrl.u32 %v637, 7
    %v639 = vsub.s32 %v636, %v638
    %v640 = vrot.slane %v626, %v639
    %v641 = vcombine.high %v633, %v633
    %v643 = vunpack.c.l.s4 1966171168
    %v644 = vunpack.c.0.s8 %v643
    %v645 = vlaneseq
    %v646 = vshrl.u32 %v645, 7
    %v647 = vsub.s32 %v644, %v646
    %v648 = vrot.slane %v520, %v647
    %v649 = vcombine.high %v648, %v648
    %v651 = vunpack.c.l.s4 1966171168
    %v652 = vunpack.c.0.s8 %v651
    %v653 = vlaneseq
    %v654 = vshrl.u32 %v653, 7
    %v655 = vsub.s32 %v652, %v654
    %v656 = vrot.slane %v648, %v655
    %v658 = vunpack.c.l.s4 1966171168
    %v659 = vunpack.c.0.s8 %v658
    %v660 = vlaneseq
    %v661 = vshrl.u32 %v660, 7
    %v662 = vsub.s32 %v659, %v661
    %v663 = vrot.slane %v649, %v662
    %v664 = vcombine.high %v656, %v656
    %v665 = vcombine.low %v541, %v548
    %v666 = vcombine.low %v549, %v564
    %v667 = vcombine.low %v571, %v572
    %v668 = vcombine.low %v587, %v594
    %v670 = vunpack.c.l.s4 1966171168
    %v671 = vunpack.c.0.s8 %v670
    %v672 = vlaneseq
    %v673 = vshrl.u32 %v672, 7
    %v674 = vsub.s32 %v671, %v673
    %v675 = vrot.slane %v665, %v674
    %v677 = vunpack.c.l.s4 1966171168
    %v678 = vunpack.c.0.s8 %v677
    %v679 = vlaneseq
    %v680 = vshrl.u32 %v679, 7
    %v681 = vsub.s32 %v678, %v680
    %v682 = vrot.slane %v666, %v681
    %v684 = vunpack.c.l.s4 1966171168
    %v685 = vunpack.c.0.s8 %v684
    %v686 = vlaneseq
    %v687 = vshrl.u32 %v686, 7
    %v688 = vsub.s32 %v685, %v687
    %v689 = vrot.slane %v667, %v688
    %v691 = vunpack.c.l.s4 1966171168
    %v692 = vunpack.c.0.s8 %v691
    %v693 = vlaneseq
    %v694 = vshrl.u32 %v693, 7
    %v695 = vsub.s32 %v692, %v694
    %v696 = vrot.slane %v668, %v695
    %v697 = vcombine.low %v675, %v682
    %v698 = vcombine.low %v689, %v696
    %v700 = vunpack.c.l.s4 1966171168
    %v701 = vunpack.c.0.s8 %v700
    %v702 = vlaneseq
    %v703 = vshrl.u32 %v702, 7
    %v704 = vsub.s32 %v701, %v703
    %v705 = vrot.slane %v697, %v704
    %v707 = vunpack.c.l.s4 1966171168
    %v708 = vunpack.c.0.s8 %v707
    %v709 = vlaneseq
    %v710 = vshrl.u32 %v709, 7
    %v711 = vsub.s32 %v708, %v710
    %v712 = vrot.slane %v698, %v711
    %v713 = vcombine.low %v705, %v712
    %v714 = vcombine.low %v595, %v610
    %v715 = vcombine.low %v617, %v618
    %v716 = vcombine.low %v633, %v640
    %v717 = vcombine.low %v641, %v656
    %v719 = vunpack.c.l.s4 1966171168
    %v720 = vunpack.c.0.s8 %v719
    %v721 = vlaneseq
    %v722 = vshrl.u32 %v721, 7
    %v723 = vsub.s32 %v720, %v722
    %v724 = vrot.slane %v714, %v723
    %v726 = vunpack.c.l.s4 1966171168
    %v727 = vunpack.c.0.s8 %v726
    %v728 = vlaneseq
    %v729 = vshrl.u32 %v728, 7
    %v730 = vsub.s32 %v727, %v729
    %v731 = vrot.slane %v715, %v730
    %v733 = vunpack.c.l.s4 1966171168
    %v734 = vunpack.c.0.s8 %v733
    %v735 = vlaneseq
    %v736 = vshrl.u32 %v735, 7
    %v737 = vsub.s32 %v734, %v736
    %v738 = vrot.slane %v716, %v737
    %v740 = vunpack.c.l.s4 1966171168
    %v741 = vunpack.c.0.s8 %v740
    %v742 = vlaneseq
    %v743 = vshrl.u32 %v742, 7
    %v744 = vsub.s32 %v741, %v743
    %v745 = vrot.slane %v717, %v744
    %v746 = vcombine.low %v724, %v731
    %v747 = vcombine.low %v738, %v745
    %v749 = vunpack.c.l.s4 1966171168
    %v750 = vunpack.c.0.s8 %v749
    %v751 = vlaneseq
    %v752 = vshrl.u32 %v751, 7
    %v753 = vsub.s32 %v750, %v752
    %v754 = vrot.slane %v746, %v753
    %v756 = vunpack.c.l.s4 1966171168
    %v757 = vunpack.c.0.s8 %v756
    %v758 = vlaneseq
    %v759 = vshrl.u32 %v758, 7
    %v760 = vsub.s32 %v757, %v759
    %v761 = vrot.slane %v747, %v760
    %v762 = vcombine.low %v754, %v761
    %v763 = vcombine.low %v663, %v664
    %v765 = vunpack.c.l.s4 1966171168
    %v766 = vunpack.c.0.s8 %v765
    %v767 = vlaneseq
    %v768 = vshrl.u32 %v767, 7
    %v769 = vsub.s32 %v766, %v768
    %v770 = vrot.slane %v763, %v769
    %v772 = vunpack.c.l.s4 1966171168
    %v773 = vunpack.c.0.s8 %v772
    %v774 = vlaneseq
    %v775 = vshrl.u32 %v774, 7
    %v776 = vsub.s32 %v773, %v775
    %v777 = vrot.slane %v770, %v776
    %v781 = vpack.c.bf16 %v762, %v713
    %v782 = vpack.c.bf16 %v777, %v777
    %v783 = vld [vmem:[%s1 + $0x80] sm:$0xf]
    %v784 = vld [vmem:[%s1 + $0x84] sm:$0xf]
    %v785 = vld [vmem:[%s1 + $0x88] sm:$0xf]
    %v786 = vld [vmem:[%s1 + $0x8c] sm:$0xf]
    %v787 = vrot.slane %v461, 3
    %v788 = vrot.slane %v463, 3
    %v789 = vrot.slane %v465, 3
    %v790 = vrot.slane %v469, 3
    %v791 = vrot.slane %v471, 3
    %v792 = vrot.slane %v473, 3
    %v799 = vsel %vm507, %v483, %v495
    %v800 = vsel %vm507, %v484, %v496
    %v801 = vsel %vm507, %v485, %v497
    %v802 = vsel %vm507, %v486, %v498
    %v803 = vsel %vm507, %v487, %v499
    %v804 = vsel %vm507, %v488, %v500
    %v805 = vsel %vm514, %v799, %v787
    %v806 = vsel %vm514, %v800, %v788
    %v807 = vsel %vm514, %v801, %v789
    %v808 = vsel %vm514, %v802, %v790
    %v809 = vsel %vm514, %v803, %v791
    %v810 = vsel %vm514, %v804, %v792
    %v818 = vunpack.c.l.s4 1966171168
    %v819 = vunpack.c.0.s8 %v818
    %v820 = vlaneseq
    %v821 = vshrl.u32 %v820, 7
    %v822 = vsub.s32 %v819, %v821
    %v823 = vrot.slane %v805, %v822
    %v824 = vcombine.high %v823, %v823
    %v826 = vunpack.c.l.s4 1966171168
    %v827 = vunpack.c.0.s8 %v826
    %v828 = vlaneseq
    %v829 = vshrl.u32 %v828, 7
    %v830 = vsub.s32 %v827, %v829
    %v831 = vrot.slane %v823, %v830
    %v833 = vunpack.c.l.s4 1966171168
    %v834 = vunpack.c.0.s8 %v833
    %v835 = vlaneseq
    %v836 = vshrl.u32 %v835, 7
    %v837 = vsub.s32 %v834, %v836
    %v838 = vrot.slane %v824, %v837
    %v839 = vcombine.high %v831, %v831
    %v841 = vunpack.c.l.s4 1966171168
    %v842 = vunpack.c.0.s8 %v841
    %v843 = vlaneseq
    %v844 = vshrl.u32 %v843, 7
    %v845 = vsub.s32 %v842, %v844
    %v846 = vrot.slane %v806, %v845
    %v847 = vcombine.high %v846, %v846
    %v849 = vunpack.c.l.s4 1966171168
    %v850 = vunpack.c.0.s8 %v849
    %v851 = vlaneseq
    %v852 = vshrl.u32 %v851, 7
    %v853 = vsub.s32 %v850, %v852
    %v854 = vrot.slane %v846, %v853
    %v856 = vunpack.c.l.s4 1966171168
    %v857 = vunpack.c.0.s8 %v856
    %v858 = vlaneseq
    %v859 = vshrl.u32 %v858, 7
    %v860 = vsub.s32 %v857, %v859
    %v861 = vrot.slane %v847, %v860
    %v862 = vcombine.high %v854, %v854
    %v864 = vunpack.c.l.s4 1966171168
    %v865 = vunpack.c.0.s8 %v864
    %v866 = vlaneseq
    %v867 = vshrl.u32 %v866, 7
    %v868 = vsub.s32 %v865, %v867
    %v869 = vrot.slane %v807, %v868
    %v870 = vcombine.high %v869, %v869
    %v872 = vunpack.c.l.s4 1966171168
    %v873 = vunpack.c.0.s8 %v872
    %v874 = vlaneseq
    %v875 = vshrl.u32 %v874, 7
    %v876 = vsub.s32 %v873, %v875
    %v877 = vrot.slane %v869, %v876
    %v879 = vunpack.c.l.s4 1966171168
    %v880 = vunpack.c.0.s8 %v879
    %v881 = vlaneseq
    %v882 = vshrl.u32 %v881, 7
    %v883 = vsub.s32 %v880, %v882
    %v884 = vrot.slane %v870, %v883
    %v885 = vcombine.high %v877, %v877
    %v887 = vunpack.c.l.s4 1966171168
    %v888 = vunpack.c.0.s8 %v887
    %v889 = vlaneseq
    %v890 = vshrl.u32 %v889, 7
    %v891 = vsub.s32 %v888, %v890
    %v892 = vrot.slane %v808, %v891
    %v893 = vcombine.high %v892, %v892
    %v895 = vunpack.c.l.s4 1966171168
    %v896 = vunpack.c.0.s8 %v895
    %v897 = vlaneseq
    %v898 = vshrl.u32 %v897, 7
    %v899 = vsub.s32 %v896, %v898
    %v900 = vrot.slane %v892, %v899
    %v902 = vunpack.c.l.s4 1966171168
    %v903 = vunpack.c.0.s8 %v902
    %v904 = vlaneseq
    %v905 = vshrl.u32 %v904, 7
    %v906 = vsub.s32 %v903, %v905
    %v907 = vrot.slane %v893, %v906
    %v908 = vcombine.high %v900, %v900
    %v910 = vunpack.c.l.s4 1966171168
    %v911 = vunpack.c.0.s8 %v910
    %v912 = vlaneseq
    %v913 = vshrl.u32 %v912, 7
    %v914 = vsub.s32 %v911, %v913
    %v915 = vrot.slane %v809, %v914
    %v916 = vcombine.high %v915, %v915
    %v918 = vunpack.c.l.s4 1966171168
    %v919 = vunpack.c.0.s8 %v918
    %v920 = vlaneseq
    %v921 = vshrl.u32 %v920, 7
    %v922 = vsub.s32 %v919, %v921
    %v923 = vrot.slane %v915, %v922
    %v925 = vunpack.c.l.s4 1966171168
    %v926 = vunpack.c.0.s8 %v925
    %v927 = vlaneseq
    %v928 = vshrl.u32 %v927, 7
    %v929 = vsub.s32 %v926, %v928
    %v930 = vrot.slane %v916, %v929
    %v931 = vcombine.high %v923, %v923
    %v933 = vunpack.c.l.s4 1966171168
    %v934 = vunpack.c.0.s8 %v933
    %v935 = vlaneseq
    %v936 = vshrl.u32 %v935, 7
    %v937 = vsub.s32 %v934, %v936
    %v938 = vrot.slane %v810, %v937
    %v939 = vcombine.high %v938, %v938
    %v941 = vunpack.c.l.s4 1966171168
    %v942 = vunpack.c.0.s8 %v941
    %v943 = vlaneseq
    %v944 = vshrl.u32 %v943, 7
    %v945 = vsub.s32 %v942, %v944
    %v946 = vrot.slane %v938, %v945
    %v948 = vunpack.c.l.s4 1966171168
    %v949 = vunpack.c.0.s8 %v948
    %v950 = vlaneseq
    %v951 = vshrl.u32 %v950, 7
    %v952 = vsub.s32 %v949, %v951
    %v953 = vrot.slane %v939, %v952
    %v954 = vcombine.high %v946, %v946
    %v955 = vcombine.low %v831, %v838
    %v956 = vcombine.low %v839, %v854
    %v957 = vcombine.low %v861, %v862
    %v958 = vcombine.low %v877, %v884
    %v960 = vunpack.c.l.s4 1966171168
    %v961 = vunpack.c.0.s8 %v960
    %v962 = vlaneseq
    %v963 = vshrl.u32 %v962, 7
    %v964 = vsub.s32 %v961, %v963
    %v965 = vrot.slane %v955, %v964
    %v967 = vunpack.c.l.s4 1966171168
    %v968 = vunpack.c.0.s8 %v967
    %v969 = vlaneseq
    %v970 = vshrl.u32 %v969, 7
    %v971 = vsub.s32 %v968, %v970
    %v972 = vrot.slane %v956, %v971
    %v974 = vunpack.c.l.s4 1966171168
    %v975 = vunpack.c.0.s8 %v974
    %v976 = vlaneseq
    %v977 = vshrl.u32 %v976, 7
    %v978 = vsub.s32 %v975, %v977
    %v979 = vrot.slane %v957, %v978
    %v981 = vunpack.c.l.s4 1966171168
    %v982 = vunpack.c.0.s8 %v981
    %v983 = vlaneseq
    %v984 = vshrl.u32 %v983, 7
    %v985 = vsub.s32 %v982, %v984
    %v986 = vrot.slane %v958, %v985
    %v987 = vcombine.low %v965, %v972
    %v988 = vcombine.low %v979, %v986
    %v990 = vunpack.c.l.s4 1966171168
    %v991 = vunpack.c.0.s8 %v990
    %v992 = vlaneseq
    %v993 = vshrl.u32 %v992, 7
    %v994 = vsub.s32 %v991, %v993
    %v995 = vrot.slane %v987, %v994
    %v997 = vunpack.c.l.s4 1966171168
    %v998 = vunpack.c.0.s8 %v997
    %v999 = vlaneseq
    %v1000 = vshrl.u32 %v999, 7
    %v1001 = vsub.s32 %v998, %v1000
    %v1002 = vrot.slane %v988, %v1001
    %v1003 = vcombine.low %v995, %v1002
    %v1004 = vcombine.low %v885, %v900
    %v1005 = vcombine.low %v907, %v908
    %v1006 = vcombine.low %v923, %v930
    %v1007 = vcombine.low %v931, %v946
    %v1009 = vunpack.c.l.s4 1966171168
    %v1010 = vunpack.c.0.s8 %v1009
    %v1011 = vlaneseq
    %v1012 = vshrl.u32 %v1011, 7
    %v1013 = vsub.s32 %v1010, %v1012
    %v1014 = vrot.slane %v1004, %v1013
    %v1016 = vunpack.c.l.s4 1966171168
    %v1017 = vunpack.c.0.s8 %v1016
    %v1018 = vlaneseq
    %v1019 = vshrl.u32 %v1018, 7
    %v1020 = vsub.s32 %v1017, %v1019
    %v1021 = vrot.slane %v1005, %v1020
    %v1023 = vunpack.c.l.s4 1966171168
    %v1024 = vunpack.c.0.s8 %v1023
    %v1025 = vlaneseq
    %v1026 = vshrl.u32 %v1025, 7
    %v1027 = vsub.s32 %v1024, %v1026
    %v1028 = vrot.slane %v1006, %v1027
    %v1030 = vunpack.c.l.s4 1966171168
    %v1031 = vunpack.c.0.s8 %v1030
    %v1032 = vlaneseq
    %v1033 = vshrl.u32 %v1032, 7
    %v1034 = vsub.s32 %v1031, %v1033
    %v1035 = vrot.slane %v1007, %v1034
    %v1036 = vcombine.low %v1014, %v1021
    %v1037 = vcombine.low %v1028, %v1035
    %v1039 = vunpack.c.l.s4 1966171168
    %v1040 = vunpack.c.0.s8 %v1039
    %v1041 = vlaneseq
    %v1042 = vshrl.u32 %v1041, 7
    %v1043 = vsub.s32 %v1040, %v1042
    %v1044 = vrot.slane %v1036, %v1043
    %v1046 = vunpack.c.l.s4 1966171168
    %v1047 = vunpack.c.0.s8 %v1046
    %v1048 = vlaneseq
    %v1049 = vshrl.u32 %v1048, 7
    %v1050 = vsub.s32 %v1047, %v1049
    %v1051 = vrot.slane %v1037, %v1050
    %v1052 = vcombine.low %v1044, %v1051
    %v1053 = vcombine.low %v953, %v954
    %v1055 = vunpack.c.l.s4 1966171168
    %v1056 = vunpack.c.0.s8 %v1055
    %v1057 = vlaneseq
    %v1058 = vshrl.u32 %v1057, 7
    %v1059 = vsub.s32 %v1056, %v1058
    %v1060 = vrot.slane %v1053, %v1059
    %v1062 = vunpack.c.l.s4 1966171168
    %v1063 = vunpack.c.0.s8 %v1062
    %v1064 = vlaneseq
    %v1065 = vshrl.u32 %v1064, 7
    %v1066 = vsub.s32 %v1063, %v1065
    %v1067 = vrot.slane %v1060, %v1066
    %v1071 = vpack.c.bf16 %v1052, %v1003
    %v1072 = vpack.c.bf16 %v1067, %v1067
    %v1073 = vld [vmem:[%s1 + $0x90] sm:$0xf]
    %v1074 = vld [vmem:[%s1 + $0x94] sm:$0xf]
    %v1075 = vld [vmem:[%s1 + $0x98] sm:$0xf]
    %v1076 = vld [vmem:[%s1 + $0x9c] sm:$0xf]
    %v1081 = vunpack.c.l.b16 %v1073
    %v1082 = vunpack.c.l.b16 %v1074
    %v1083 = vunpack.c.l.b16 %v1075
    %v1084 = vunpack.c.l.b16 %v1076
    %v1085 = vpack.c.b16 %v1082, %v1081
    %v1086 = vpack.c.b16 %v1084, %v1083
    %vm1089 = vcmask 261120
    %v1091 = vsel %vm1089, %v1071, 0
    %v1094 = vsel %vm1089, %v1072, 0
    %1096 = vmatprep.subr.bf16.mxu0 0
    %1097 = vmatpush1.bf16.msra.mxu0 0
    %1098 = vmatprep.subr.bf16.mxu0 0
    %1099 = vmatpush1.bf16.msra.mxu0 0
    %1100 = vmatprep.subr.bf16.mxu0 0
    %1101 = vmatpush1.bf16.msra.mxu0 0
    %1102 = vmatprep.subr.bf16.mxu0 0
    %1103 = vmatpush1.bf16.msra.mxu0 0
    %1104 = vmatprep.subr.bf16.mxu0 0
    %1105 = vmatpush1.bf16.msra.mxu0 0
    %1106 = vmatprep.subr.bf16.mxu0 0
    %1107 = vmatpush1.bf16.msra.mxu0 0
    %1108 = vmatprep.subr.bf16.mxu0 0
    %1109 = vmatpush1.bf16.msra.mxu0 %v1086
    %1110 = vmatprep.subr.bf16.mxu0 0
    %1111 = vmatpush1.bf16.msra.mxu0 %v1085
    %1112 = vmatprep.subr.bf16.mxu0 0
    %1113 = vmatpush2.bf16.msra.mxu0 0
    %1114 = vmatprep.subr.bf16.mxu0 0
    %1115 = vmatpush2.bf16.msra.mxu0 0
    %1116 = vmatprep.subr.bf16.mxu0 0
    %1117 = vmatpush2.bf16.msra.mxu0 0
    %1118 = vmatprep.subr.bf16.mxu0 0
    %1119 = vmatpush2.bf16.msra.mxu0 0
    %1120 = vmatprep.subr.bf16.mxu0 0
    %1121 = vmatpush2.bf16.msra.mxu0 0
    %1122 = vmatprep.subr.bf16.mxu0 0
    %1123 = vmatpush2.bf16.msra.mxu0 0
    %1124 = vmatprep.subr.bf16.mxu0 0
    %1125 = vmatpush2.bf16.msra.mxu0 0
    %1126 = vmatprep.subr.bf16.mxu0 0
    %1127 = vmatpush2.bf16.msra.mxu0 0
    %1128 = vmatprep.mubr.bf16.mxu0 0
    %1129 = vmatmul.mubr.bf16.gmra.mxu0 %v1091
    %v1130 = vpop.f32.mrf.mxu0
    %v1131 = vadd.f32 0.0, %v1130
    %v1132 = vpop.f32.mrf.mxu0
    %v1133 = vpop.f32.mrf.mxu0
    %v1134 = vadd.f32 0.0, %v1133
    %v1135 = vpop.f32.mrf.mxu0
    %1136 = vmatprep.mubr.bf16.mxu0 0
    %1137 = vmatmul.mubr.bf16.gmra.mxu0 %v1094
    %v1138 = vpop.f32.mrf.mxu0
    %v1139 = vadd.f32 0.0, %v1138
    %v1140 = vpop.f32.mrf.mxu0
    %v1141 = vpop.f32.mrf.mxu0
    %v1142 = vpop.f32.mrf.mxu0
    %1143 = vdwg.mxu0
    %v1148 = vunpack.c.l.b16 %v783
    %v1149 = vunpack.c.l.b16 %v784
    %v1150 = vunpack.c.l.b16 %v785
    %v1151 = vunpack.c.l.b16 %v786
    %v1152 = vpack.c.b16 %v1149, %v1148
    %v1153 = vpack.c.b16 %v1151, %v1150
    %v1157 = vsel %vm1089, %v781, 0
    %v1160 = vsel %vm1089, %v782, 0
    %1162 = vmatprep.subr.bf16.mxu0 0
    %1163 = vmatpush1.bf16.msra.mxu0 0
    %1164 = vmatprep.subr.bf16.mxu0 0
    %1165 = vmatpush1.bf16.msra.mxu0 0
    %1166 = vmatprep.subr.bf16.mxu0 0
    %1167 = vmatpush1.bf16.msra.mxu0 0
    %1168 = vmatprep.subr.bf16.mxu0 0
    %1169 = vmatpush1.bf16.msra.mxu0 0
    %1170 = vmatprep.subr.bf16.mxu0 0
    %1171 = vmatpush1.bf16.msra.mxu0 0
    %1172 = vmatprep.subr.bf16.mxu0 0
    %1173 = vmatpush1.bf16.msra.mxu0 0
    %1174 = vmatprep.subr.bf16.mxu0 0
    %1175 = vmatpush1.bf16.msra.mxu0 %v1153
    %1176 = vmatprep.subr.bf16.mxu0 0
    %1177 = vmatpush1.bf16.msra.mxu0 %v1152
    %1178 = vmatprep.subr.bf16.mxu0 0
    %1179 = vmatpush2.bf16.msra.mxu0 0
    %1180 = vmatprep.subr.bf16.mxu0 0
    %1181 = vmatpush2.bf16.msra.mxu0 0
    %1182 = vmatprep.subr.bf16.mxu0 0
    %1183 = vmatpush2.bf16.msra.mxu0 0
    %1184 = vmatprep.subr.bf16.mxu0 0
    %1185 = vmatpush2.bf16.msra.mxu0 0
    %1186 = vmatprep.subr.bf16.mxu0 0
    %1187 = vmatpush2.bf16.msra.mxu0 0
    %1188 = vmatprep.subr.bf16.mxu0 0
    %1189 = vmatpush2.bf16.msra.mxu0 0
    %1190 = vmatprep.subr.bf16.mxu0 0
    %1191 = vmatpush2.bf16.msra.mxu0 0
    %1192 = vmatprep.subr.bf16.mxu0 0
    %1193 = vmatpush2.bf16.msra.mxu0 0
    %1194 = vmatprep.mubr.bf16.mxu0 0
    %1195 = vmatmul.mubr.bf16.gmra.mxu0 %v1157
    %v1196 = vpop.f32.mrf.mxu0
    %v1197 = vadd.f32 %v1131, %v1196
    %v1198 = vpop.f32.mrf.mxu0
    %v1199 = vpop.f32.mrf.mxu0
    %v1200 = vadd.f32 %v1134, %v1199
    %v1201 = vpop.f32.mrf.mxu0
    %1202 = vmatprep.mubr.bf16.mxu0 0
    %1203 = vmatmul.mubr.bf16.gmra.mxu0 %v1160
    %v1204 = vpop.f32.mrf.mxu0
    %v1205 = vadd.f32 %v1139, %v1204
    %v1206 = vpop.f32.mrf.mxu0
    %v1207 = vpop.f32.mrf.mxu0
    %v1208 = vpop.f32.mrf.mxu0
    %1209 = vdwg.mxu0
    %v1210 = vrot.slane %v461, 4
    %v1211 = vrot.slane %v463, 4
    %v1212 = vrot.slane %v465, 4
    %v1213 = vrot.slane %v469, 4
    %v1214 = vrot.slane %v471, 4
    %v1215 = vrot.slane %v473, 4
    %v1222 = vsel %vm507, %v495, %v787
    %v1223 = vsel %vm507, %v496, %v788
    %v1224 = vsel %vm507, %v497, %v789
    %v1225 = vsel %vm507, %v498, %v790
    %v1226 = vsel %vm507, %v499, %v791
    %v1227 = vsel %vm507, %v500, %v792
    %v1228 = vsel %vm514, %v1222, %v1210
    %v1229 = vsel %vm514, %v1223, %v1211
    %v1230 = vsel %vm514, %v1224, %v1212
    %v1231 = vsel %vm514, %v1225, %v1213
    %v1232 = vsel %vm514, %v1226, %v1214
    %v1233 = vsel %vm514, %v1227, %v1215
    %v1241 = vunpack.c.l.s4 1966171168
    %v1242 = vunpack.c.0.s8 %v1241
    %v1243 = vlaneseq
    %v1244 = vshrl.u32 %v1243, 7
    %v1245 = vsub.s32 %v1242, %v1244
    %v1246 = vrot.slane %v1228, %v1245
    %v1247 = vcombine.high %v1246, %v1246
    %v1249 = vunpack.c.l.s4 1966171168
    %v1250 = vunpack.c.0.s8 %v1249
    %v1251 = vlaneseq
    %v1252 = vshrl.u32 %v1251, 7
    %v1253 = vsub.s32 %v1250, %v1252
    %v1254 = vrot.slane %v1246, %v1253
    %v1256 = vunpack.c.l.s4 1966171168
    %v1257 = vunpack.c.0.s8 %v1256
    %v1258 = vlaneseq
    %v1259 = vshrl.u32 %v1258, 7
    %v1260 = vsub.s32 %v1257, %v1259
    %v1261 = vrot.slane %v1247, %v1260
    %v1262 = vcombine.high %v1254, %v1254
    %v1264 = vunpack.c.l.s4 1966171168
    %v1265 = vunpack.c.0.s8 %v1264
    %v1266 = vlaneseq
    %v1267 = vshrl.u32 %v1266, 7
    %v1268 = vsub.s32 %v1265, %v1267
    %v1269 = vrot.slane %v1229, %v1268
    %v1270 = vcombine.high %v1269, %v1269
    %v1272 = vunpack.c.l.s4 1966171168
    %v1273 = vunpack.c.0.s8 %v1272
    %v1274 = vlaneseq
    %v1275 = vshrl.u32 %v1274, 7
    %v1276 = vsub.s32 %v1273, %v1275
    %v1277 = vrot.slane %v1269, %v1276
    %v1279 = vunpack.c.l.s4 1966171168
    %v1280 = vunpack.c.0.s8 %v1279
    %v1281 = vlaneseq
    %v1282 = vshrl.u32 %v1281, 7
    %v1283 = vsub.s32 %v1280, %v1282
    %v1284 = vrot.slane %v1270, %v1283
    %v1285 = vcombine.high %v1277, %v1277
    %v1287 = vunpack.c.l.s4 1966171168
    %v1288 = vunpack.c.0.s8 %v1287
    %v1289 = vlaneseq
    %v1290 = vshrl.u32 %v1289, 7
    %v1291 = vsub.s32 %v1288, %v1290
    %v1292 = vrot.slane %v1230, %v1291
    %v1293 = vcombine.high %v1292, %v1292
    %v1295 = vunpack.c.l.s4 1966171168
    %v1296 = vunpack.c.0.s8 %v1295
    %v1297 = vlaneseq
    %v1298 = vshrl.u32 %v1297, 7
    %v1299 = vsub.s32 %v1296, %v1298
    %v1300 = vrot.slane %v1292, %v1299
    %v1302 = vunpack.c.l.s4 1966171168
    %v1303 = vunpack.c.0.s8 %v1302
    %v1304 = vlaneseq
    %v1305 = vshrl.u32 %v1304, 7
    %v1306 = vsub.s32 %v1303, %v1305
    %v1307 = vrot.slane %v1293, %v1306
    %v1308 = vcombine.high %v1300, %v1300
    %v1310 = vunpack.c.l.s4 1966171168
    %v1311 = vunpack.c.0.s8 %v1310
    %v1312 = vlaneseq
    %v1313 = vshrl.u32 %v1312, 7
    %v1314 = vsub.s32 %v1311, %v1313
    %v1315 = vrot.slane %v1231, %v1314
    %v1316 = vcombine.high %v1315, %v1315
    %v1318 = vunpack.c.l.s4 1966171168
    %v1319 = vunpack.c.0.s8 %v1318
    %v1320 = vlaneseq
    %v1321 = vshrl.u32 %v1320, 7
    %v1322 = vsub.s32 %v1319, %v1321
    %v1323 = vrot.slane %v1315, %v1322
    %v1325 = vunpack.c.l.s4 1966171168
    %v1326 = vunpack.c.0.s8 %v1325
    %v1327 = vlaneseq
    %v1328 = vshrl.u32 %v1327, 7
    %v1329 = vsub.s32 %v1326, %v1328
    %v1330 = vrot.slane %v1316, %v1329
    %v1331 = vcombine.high %v1323, %v1323
    %v1333 = vunpack.c.l.s4 1966171168
    %v1334 = vunpack.c.0.s8 %v1333
    %v1335 = vlaneseq
    %v1336 = vshrl.u32 %v1335, 7
    %v1337 = vsub.s32 %v1334, %v1336
    %v1338 = vrot.slane %v1232, %v1337
    %v1339 = vcombine.high %v1338, %v1338
    %v1341 = vunpack.c.l.s4 1966171168
    %v1342 = vunpack.c.0.s8 %v1341
    %v1343 = vlaneseq
    %v1344 = vshrl.u32 %v1343, 7
    %v1345 = vsub.s32 %v1342, %v1344
    %v1346 = vrot.slane %v1338, %v1345
    %v1348 = vunpack.c.l.s4 1966171168
    %v1349 = vunpack.c.0.s8 %v1348
    %v1350 = vlaneseq
    %v1351 = vshrl.u32 %v1350, 7
    %v1352 = vsub.s32 %v1349, %v1351
    %v1353 = vrot.slane %v1339, %v1352
    %v1354 = vcombine.high %v1346, %v1346
    %v1356 = vunpack.c.l.s4 1966171168
    %v1357 = vunpack.c.0.s8 %v1356
    %v1358 = vlaneseq
    %v1359 = vshrl.u32 %v1358, 7
    %v1360 = vsub.s32 %v1357, %v1359
    %v1361 = vrot.slane %v1233, %v1360
    %v1362 = vcombine.high %v1361, %v1361
    %v1364 = vunpack.c.l.s4 1966171168
    %v1365 = vunpack.c.0.s8 %v1364
    %v1366 = vlaneseq
    %v1367 = vshrl.u32 %v1366, 7
    %v1368 = vsub.s32 %v1365, %v1367
    %v1369 = vrot.slane %v1361, %v1368
    %v1371 = vunpack.c.l.s4 1966171168
    %v1372 = vunpack.c.0.s8 %v1371
    %v1373 = vlaneseq
    %v1374 = vshrl.u32 %v1373, 7
    %v1375 = vsub.s32 %v1372, %v1374
    %v1376 = vrot.slane %v1362, %v1375
    %v1377 = vcombine.high %v1369, %v1369
    %v1378 = vcombine.low %v1254, %v1261
    %v1379 = vcombine.low %v1262, %v1277
    %v1380 = vcombine.low %v1284, %v1285
    %v1381 = vcombine.low %v1300, %v1307
    %v1383 = vunpack.c.l.s4 1966171168
    %v1384 = vunpack.c.0.s8 %v1383
    %v1385 = vlaneseq
    %v1386 = vshrl.u32 %v1385, 7
    %v1387 = vsub.s32 %v1384, %v1386
    %v1388 = vrot.slane %v1378, %v1387
    %v1390 = vunpack.c.l.s4 1966171168
    %v1391 = vunpack.c.0.s8 %v1390
    %v1392 = vlaneseq
    %v1393 = vshrl.u32 %v1392, 7
    %v1394 = vsub.s32 %v1391, %v1393
    %v1395 = vrot.slane %v1379, %v1394
    %v1397 = vunpack.c.l.s4 1966171168
    %v1398 = vunpack.c.0.s8 %v1397
    %v1399 = vlaneseq
    %v1400 = vshrl.u32 %v1399, 7
    %v1401 = vsub.s32 %v1398, %v1400
    %v1402 = vrot.slane %v1380, %v1401
    %v1404 = vunpack.c.l.s4 1966171168
    %v1405 = vunpack.c.0.s8 %v1404
    %v1406 = vlaneseq
    %v1407 = vshrl.u32 %v1406, 7
    %v1408 = vsub.s32 %v1405, %v1407
    %v1409 = vrot.slane %v1381, %v1408
    %v1410 = vcombine.low %v1388, %v1395
    %v1411 = vcombine.low %v1402, %v1409
    %v1413 = vunpack.c.l.s4 1966171168
    %v1414 = vunpack.c.0.s8 %v1413
    %v1415 = vlaneseq
    %v1416 = vshrl.u32 %v1415, 7
    %v1417 = vsub.s32 %v1414, %v1416
    %v1418 = vrot.slane %v1410, %v1417
    %v1420 = vunpack.c.l.s4 1966171168
    %v1421 = vunpack.c.0.s8 %v1420
    %v1422 = vlaneseq
    %v1423 = vshrl.u32 %v1422, 7
    %v1424 = vsub.s32 %v1421, %v1423
    %v1425 = vrot.slane %v1411, %v1424
    %v1426 = vcombine.low %v1418, %v1425
    %v1427 = vcombine.low %v1308, %v1323
    %v1428 = vcombine.low %v1330, %v1331
    %v1429 = vcombine.low %v1346, %v1353
    %v1430 = vcombine.low %v1354, %v1369
    %v1432 = vunpack.c.l.s4 1966171168
    %v1433 = vunpack.c.0.s8 %v1432
    %v1434 = vlaneseq
    %v1435 = vshrl.u32 %v1434, 7
    %v1436 = vsub.s32 %v1433, %v1435
    %v1437 = vrot.slane %v1427, %v1436
    %v1439 = vunpack.c.l.s4 1966171168
    %v1440 = vunpack.c.0.s8 %v1439
    %v1441 = vlaneseq
    %v1442 = vshrl.u32 %v1441, 7
    %v1443 = vsub.s32 %v1440, %v1442
    %v1444 = vrot.slane %v1428, %v1443
    %v1446 = vunpack.c.l.s4 1966171168
    %v1447 = vunpack.c.0.s8 %v1446
    %v1448 = vlaneseq
    %v1449 = vshrl.u32 %v1448, 7
    %v1450 = vsub.s32 %v1447, %v1449
    %v1451 = vrot.slane %v1429, %v1450
    %v1453 = vunpack.c.l.s4 1966171168
    %v1454 = vunpack.c.0.s8 %v1453
    %v1455 = vlaneseq
    %v1456 = vshrl.u32 %v1455, 7
    %v1457 = vsub.s32 %v1454, %v1456
    %v1458 = vrot.slane %v1430, %v1457
    %v1459 = vcombine.low %v1437, %v1444
    %v1460 = vcombine.low %v1451, %v1458
    %v1462 = vunpack.c.l.s4 1966171168
    %v1463 = vunpack.c.0.s8 %v1462
    %v1464 = vlaneseq
    %v1465 = vshrl.u32 %v1464, 7
    %v1466 = vsub.s32 %v1463, %v1465
    %v1467 = vrot.slane %v1459, %v1466
    %v1469 = vunpack.c.l.s4 1966171168
    %v1470 = vunpack.c.0.s8 %v1469
    %v1471 = vlaneseq
    %v1472 = vshrl.u32 %v1471, 7
    %v1473 = vsub.s32 %v1470, %v1472
    %v1474 = vrot.slane %v1460, %v1473
    %v1475 = vcombine.low %v1467, %v1474
    %v1476 = vcombine.low %v1376, %v1377
    %v1478 = vunpack.c.l.s4 1966171168
    %v1479 = vunpack.c.0.s8 %v1478
    %v1480 = vlaneseq
    %v1481 = vshrl.u32 %v1480, 7
    %v1482 = vsub.s32 %v1479, %v1481
    %v1483 = vrot.slane %v1476, %v1482
    %v1485 = vunpack.c.l.s4 1966171168
    %v1486 = vunpack.c.0.s8 %v1485
    %v1487 = vlaneseq
    %v1488 = vshrl.u32 %v1487, 7
    %v1489 = vsub.s32 %v1486, %v1488
    %v1490 = vrot.slane %v1483, %v1489
    %v1494 = vpack.c.bf16 %v1475, %v1426
    %v1495 = vpack.c.bf16 %v1490, %v1490
    %v1496 = vld [vmem:[%s1 + $0xa0] sm:$0xf]
    %v1497 = vld [vmem:[%s1 + $0xa4] sm:$0xf]
    %v1498 = vld [vmem:[%s1 + $0xa8] sm:$0xf]
    %v1499 = vld [vmem:[%s1 + $0xac] sm:$0xf]
    %v1504 = vunpack.c.l.b16 %v1496
    %v1505 = vunpack.c.l.b16 %v1497
    %v1506 = vunpack.c.l.b16 %v1498
    %v1507 = vunpack.c.l.b16 %v1499
    %v1508 = vpack.c.b16 %v1505, %v1504
    %v1509 = vpack.c.b16 %v1507, %v1506
    %v1513 = vsel %vm1089, %v1494, 0
    %v1516 = vsel %vm1089, %v1495, 0
    %1518 = vmatprep.subr.bf16.mxu0 0
    %1519 = vmatpush1.bf16.msra.mxu0 0
    %1520 = vmatprep.subr.bf16.mxu0 0
    %1521 = vmatpush1.bf16.msra.mxu0 0
    %1522 = vmatprep.subr.bf16.mxu0 0
    %1523 = vmatpush1.bf16.msra.mxu0 0
    %1524 = vmatprep.subr.bf16.mxu0 0
    %1525 = vmatpush1.bf16.msra.mxu0 0
    %1526 = vmatprep.subr.bf16.mxu0 0
    %1527 = vmatpush1.bf16.msra.mxu0 0
    %1528 = vmatprep.subr.bf16.mxu0 0
    %1529 = vmatpush1.bf16.msra.mxu0 0
    %1530 = vmatprep.subr.bf16.mxu0 0
    %1531 = vmatpush1.bf16.msra.mxu0 %v1509
    %1532 = vmatprep.subr.bf16.mxu0 0
    %1533 = vmatpush1.bf16.msra.mxu0 %v1508
    %1534 = vmatprep.subr.bf16.mxu0 0
    %1535 = vmatpush2.bf16.msra.mxu0 0
    %1536 = vmatprep.subr.bf16.mxu0 0
    %1537 = vmatpush2.bf16.msra.mxu0 0
    %1538 = vmatprep.subr.bf16.mxu0 0
    %1539 = vmatpush2.bf16.msra.mxu0 0
    %1540 = vmatprep.subr.bf16.mxu0 0
    %1541 = vmatpush2.bf16.msra.mxu0 0
    %1542 = vmatprep.subr.bf16.mxu0 0
    %1543 = vmatpush2.bf16.msra.mxu0 0
    %1544 = vmatprep.subr.bf16.mxu0 0
    %1545 = vmatpush2.bf16.msra.mxu0 0
    %1546 = vmatprep.subr.bf16.mxu0 0
    %1547 = vmatpush2.bf16.msra.mxu0 0
    %1548 = vmatprep.subr.bf16.mxu0 0
    %1549 = vmatpush2.bf16.msra.mxu0 0
    %1550 = vmatprep.mubr.bf16.mxu0 0
    %1551 = vmatmul.mubr.bf16.gmra.mxu0 %v1513
    %v1552 = vpop.f32.mrf.mxu0
    %v1553 = vadd.f32 0.0, %v1552
    %v1554 = vpop.f32.mrf.mxu0
    %v1555 = vpop.f32.mrf.mxu0
    %v1556 = vadd.f32 0.0, %v1555
    %v1557 = vpop.f32.mrf.mxu0
    %1558 = vmatprep.mubr.bf16.mxu0 0
    %1559 = vmatmul.mubr.bf16.gmra.mxu0 %v1516
    %v1560 = vpop.f32.mrf.mxu0
    %v1561 = vadd.f32 0.0, %v1560
    %v1562 = vpop.f32.mrf.mxu0
    %v1563 = vpop.f32.mrf.mxu0
    %v1564 = vpop.f32.mrf.mxu0
    %1565 = vdwg.mxu0
    %v1566 = vadd.f32 %v1197, %v1553
    %v1567 = vadd.f32 %v1200, %v1556
    %v1568 = vadd.f32 %v1205, %v1561
    %v1569 = vrot.slane %v461, 5
    %v1570 = vrot.slane %v463, 5
    %v1571 = vrot.slane %v465, 5
    %v1572 = vrot.slane %v469, 5
    %v1573 = vrot.slane %v471, 5
    %v1574 = vrot.slane %v473, 5
    %v1581 = vsel %vm507, %v787, %v1210
    %v1582 = vsel %vm507, %v788, %v1211
    %v1583 = vsel %vm507, %v789, %v1212
    %v1584 = vsel %vm507, %v790, %v1213
    %v1585 = vsel %vm507, %v791, %v1214
    %v1586 = vsel %vm507, %v792, %v1215
    %v1587 = vsel %vm514, %v1581, %v1569
    %v1588 = vsel %vm514, %v1582, %v1570
    %v1589 = vsel %vm514, %v1583, %v1571
    %v1590 = vsel %vm514, %v1584, %v1572
    %v1591 = vsel %vm514, %v1585, %v1573
    %v1592 = vsel %vm514, %v1586, %v1574
    %v1600 = vunpack.c.l.s4 1966171168
    %v1601 = vunpack.c.0.s8 %v1600
    %v1602 = vlaneseq
    %v1603 = vshrl.u32 %v1602, 7
    %v1604 = vsub.s32 %v1601, %v1603
    %v1605 = vrot.slane %v1587, %v1604
    %v1606 = vcombine.high %v1605, %v1605
    %v1608 = vunpack.c.l.s4 1966171168
    %v1609 = vunpack.c.0.s8 %v1608
    %v1610 = vlaneseq
    %v1611 = vshrl.u32 %v1610, 7
    %v1612 = vsub.s32 %v1609, %v1611
    %v1613 = vrot.slane %v1605, %v1612
    %v1615 = vunpack.c.l.s4 1966171168
    %v1616 = vunpack.c.0.s8 %v1615
    %v1617 = vlaneseq
    %v1618 = vshrl.u32 %v1617, 7
    %v1619 = vsub.s32 %v1616, %v1618
    %v1620 = vrot.slane %v1606, %v1619
    %v1621 = vcombine.high %v1613, %v1613
    %v1623 = vunpack.c.l.s4 1966171168
    %v1624 = vunpack.c.0.s8 %v1623
    %v1625 = vlaneseq
    %v1626 = vshrl.u32 %v1625, 7
    %v1627 = vsub.s32 %v1624, %v1626
    %v1628 = vrot.slane %v1588, %v1627
    %v1629 = vcombine.high %v1628, %v1628
    %v1631 = vunpack.c.l.s4 1966171168
    %v1632 = vunpack.c.0.s8 %v1631
    %v1633 = vlaneseq
    %v1634 = vshrl.u32 %v1633, 7
    %v1635 = vsub.s32 %v1632, %v1634
    %v1636 = vrot.slane %v1628, %v1635
    %v1638 = vunpack.c.l.s4 1966171168
    %v1639 = vunpack.c.0.s8 %v1638
    %v1640 = vlaneseq
    %v1641 = vshrl.u32 %v1640, 7
    %v1642 = vsub.s32 %v1639, %v1641
    %v1643 = vrot.slane %v1629, %v1642
    %v1644 = vcombine.high %v1636, %v1636
    %v1646 = vunpack.c.l.s4 1966171168
    %v1647 = vunpack.c.0.s8 %v1646
    %v1648 = vlaneseq
    %v1649 = vshrl.u32 %v1648, 7
    %v1650 = vsub.s32 %v1647, %v1649
    %v1651 = vrot.slane %v1589, %v1650
    %v1652 = vcombine.high %v1651, %v1651
    %v1654 = vunpack.c.l.s4 1966171168
    %v1655 = vunpack.c.0.s8 %v1654
    %v1656 = vlaneseq
    %v1657 = vshrl.u32 %v1656, 7
    %v1658 = vsub.s32 %v1655, %v1657
    %v1659 = vrot.slane %v1651, %v1658
    %v1661 = vunpack.c.l.s4 1966171168
    %v1662 = vunpack.c.0.s8 %v1661
    %v1663 = vlaneseq
    %v1664 = vshrl.u32 %v1663, 7
    %v1665 = vsub.s32 %v1662, %v1664
    %v1666 = vrot.slane %v1652, %v1665
    %v1667 = vcombine.high %v1659, %v1659
    %v1669 = vunpack.c.l.s4 1966171168
    %v1670 = vunpack.c.0.s8 %v1669
    %v1671 = vlaneseq
    %v1672 = vshrl.u32 %v1671, 7
    %v1673 = vsub.s32 %v1670, %v1672
    %v1674 = vrot.slane %v1590, %v1673
    %v1675 = vcombine.high %v1674, %v1674
    %v1677 = vunpack.c.l.s4 1966171168
    %v1678 = vunpack.c.0.s8 %v1677
    %v1679 = vlaneseq
    %v1680 = vshrl.u32 %v1679, 7
    %v1681 = vsub.s32 %v1678, %v1680
    %v1682 = vrot.slane %v1674, %v1681
    %v1684 = vunpack.c.l.s4 1966171168
    %v1685 = vunpack.c.0.s8 %v1684
    %v1686 = vlaneseq
    %v1687 = vshrl.u32 %v1686, 7
    %v1688 = vsub.s32 %v1685, %v1687
    %v1689 = vrot.slane %v1675, %v1688
    %v1690 = vcombine.high %v1682, %v1682
    %v1692 = vunpack.c.l.s4 1966171168
    %v1693 = vunpack.c.0.s8 %v1692
    %v1694 = vlaneseq
    %v1695 = vshrl.u32 %v1694, 7
    %v1696 = vsub.s32 %v1693, %v1695
    %v1697 = vrot.slane %v1591, %v1696
    %v1698 = vcombine.high %v1697, %v1697
    %v1700 = vunpack.c.l.s4 1966171168
    %v1701 = vunpack.c.0.s8 %v1700
    %v1702 = vlaneseq
    %v1703 = vshrl.u32 %v1702, 7
    %v1704 = vsub.s32 %v1701, %v1703
    %v1705 = vrot.slane %v1697, %v1704
    %v1707 = vunpack.c.l.s4 1966171168
    %v1708 = vunpack.c.0.s8 %v1707
    %v1709 = vlaneseq
    %v1710 = vshrl.u32 %v1709, 7
    %v1711 = vsub.s32 %v1708, %v1710
    %v1712 = vrot.slane %v1698, %v1711
    %v1713 = vcombine.high %v1705, %v1705
    %v1715 = vunpack.c.l.s4 1966171168
    %v1716 = vunpack.c.0.s8 %v1715
    %v1717 = vlaneseq
    %v1718 = vshrl.u32 %v1717, 7
    %v1719 = vsub.s32 %v1716, %v1718
    %v1720 = vrot.slane %v1592, %v1719
    %v1721 = vcombine.high %v1720, %v1720
    %v1723 = vunpack.c.l.s4 1966171168
    %v1724 = vunpack.c.0.s8 %v1723
    %v1725 = vlaneseq
    %v1726 = vshrl.u32 %v1725, 7
    %v1727 = vsub.s32 %v1724, %v1726
    %v1728 = vrot.slane %v1720, %v1727
    %v1730 = vunpack.c.l.s4 1966171168
    %v1731 = vunpack.c.0.s8 %v1730
    %v1732 = vlaneseq
    %v1733 = vshrl.u32 %v1732, 7
    %v1734 = vsub.s32 %v1731, %v1733
    %v1735 = vrot.slane %v1721, %v1734
    %v1736 = vcombine.high %v1728, %v1728
    %v1737 = vcombine.low %v1613, %v1620
    %v1738 = vcombine.low %v1621, %v1636
    %v1739 = vcombine.low %v1643, %v1644
    %v1740 = vcombine.low %v1659, %v1666
    %v1742 = vunpack.c.l.s4 1966171168
    %v1743 = vunpack.c.0.s8 %v1742
    %v1744 = vlaneseq
    %v1745 = vshrl.u32 %v1744, 7
    %v1746 = vsub.s32 %v1743, %v1745
    %v1747 = vrot.slane %v1737, %v1746
    %v1749 = vunpack.c.l.s4 1966171168
    %v1750 = vunpack.c.0.s8 %v1749
    %v1751 = vlaneseq
    %v1752 = vshrl.u32 %v1751, 7
    %v1753 = vsub.s32 %v1750, %v1752
    %v1754 = vrot.slane %v1738, %v1753
    %v1756 = vunpack.c.l.s4 1966171168
    %v1757 = vunpack.c.0.s8 %v1756
    %v1758 = vlaneseq
    %v1759 = vshrl.u32 %v1758, 7
    %v1760 = vsub.s32 %v1757, %v1759
    %v1761 = vrot.slane %v1739, %v1760
    %v1763 = vunpack.c.l.s4 1966171168
    %v1764 = vunpack.c.0.s8 %v1763
    %v1765 = vlaneseq
    %v1766 = vshrl.u32 %v1765, 7
    %v1767 = vsub.s32 %v1764, %v1766
    %v1768 = vrot.slane %v1740, %v1767
    %v1769 = vcombine.low %v1747, %v1754
    %v1770 = vcombine.low %v1761, %v1768
    %v1772 = vunpack.c.l.s4 1966171168
    %v1773 = vunpack.c.0.s8 %v1772
    %v1774 = vlaneseq
    %v1775 = vshrl.u32 %v1774, 7
    %v1776 = vsub.s32 %v1773, %v1775
    %v1777 = vrot.slane %v1769, %v1776
    %v1779 = vunpack.c.l.s4 1966171168
    %v1780 = vunpack.c.0.s8 %v1779
    %v1781 = vlaneseq
    %v1782 = vshrl.u32 %v1781, 7
    %v1783 = vsub.s32 %v1780, %v1782
    %v1784 = vrot.slane %v1770, %v1783
    %v1785 = vcombine.low %v1777, %v1784
    %v1786 = vcombine.low %v1667, %v1682
    %v1787 = vcombine.low %v1689, %v1690
    %v1788 = vcombine.low %v1705, %v1712
    %v1789 = vcombine.low %v1713, %v1728
    %v1791 = vunpack.c.l.s4 1966171168
    %v1792 = vunpack.c.0.s8 %v1791
    %v1793 = vlaneseq
    %v1794 = vshrl.u32 %v1793, 7
    %v1795 = vsub.s32 %v1792, %v1794
    %v1796 = vrot.slane %v1786, %v1795
    %v1798 = vunpack.c.l.s4 1966171168
    %v1799 = vunpack.c.0.s8 %v1798
    %v1800 = vlaneseq
    %v1801 = vshrl.u32 %v1800, 7
    %v1802 = vsub.s32 %v1799, %v1801
    %v1803 = vrot.slane %v1787, %v1802
    %v1805 = vunpack.c.l.s4 1966171168
    %v1806 = vunpack.c.0.s8 %v1805
    %v1807 = vlaneseq
    %v1808 = vshrl.u32 %v1807, 7
    %v1809 = vsub.s32 %v1806, %v1808
    %v1810 = vrot.slane %v1788, %v1809
    %v1812 = vunpack.c.l.s4 1966171168
    %v1813 = vunpack.c.0.s8 %v1812
    %v1814 = vlaneseq
    %v1815 = vshrl.u32 %v1814, 7
    %v1816 = vsub.s32 %v1813, %v1815
    %v1817 = vrot.slane %v1789, %v1816
    %v1818 = vcombine.low %v1796, %v1803
    %v1819 = vcombine.low %v1810, %v1817
    %v1821 = vunpack.c.l.s4 1966171168
    %v1822 = vunpack.c.0.s8 %v1821
    %v1823 = vlaneseq
    %v1824 = vshrl.u32 %v1823, 7
    %v1825 = vsub.s32 %v1822, %v1824
    %v1826 = vrot.slane %v1818, %v1825
    %v1828 = vunpack.c.l.s4 1966171168
    %v1829 = vunpack.c.0.s8 %v1828
    %v1830 = vlaneseq
    %v1831 = vshrl.u32 %v1830, 7
    %v1832 = vsub.s32 %v1829, %v1831
    %v1833 = vrot.slane %v1819, %v1832
    %v1834 = vcombine.low %v1826, %v1833
    %v1835 = vcombine.low %v1735, %v1736
    %v1837 = vunpack.c.l.s4 1966171168
    %v1838 = vunpack.c.0.s8 %v1837
    %v1839 = vlaneseq
    %v1840 = vshrl.u32 %v1839, 7
    %v1841 = vsub.s32 %v1838, %v1840
    %v1842 = vrot.slane %v1835, %v1841
    %v1844 = vunpack.c.l.s4 1966171168
    %v1845 = vunpack.c.0.s8 %v1844
    %v1846 = vlaneseq
    %v1847 = vshrl.u32 %v1846, 7
    %v1848 = vsub.s32 %v1845, %v1847
    %v1849 = vrot.slane %v1842, %v1848
    %v1853 = vpack.c.bf16 %v1834, %v1785
    %v1854 = vpack.c.bf16 %v1849, %v1849
    %v1855 = vld [vmem:[%s1 + $0xb0] sm:$0xf]
    %v1856 = vld [vmem:[%s1 + $0xb4] sm:$0xf]
    %v1857 = vld [vmem:[%s1 + $0xb8] sm:$0xf]
    %v1858 = vld [vmem:[%s1 + $0xbc] sm:$0xf]
    %v1863 = vunpack.c.l.b16 %v1855
    %v1864 = vunpack.c.l.b16 %v1856
    %v1865 = vunpack.c.l.b16 %v1857
    %v1866 = vunpack.c.l.b16 %v1858
    %v1867 = vpack.c.b16 %v1864, %v1863
    %v1868 = vpack.c.b16 %v1866, %v1865
    %v1872 = vsel %vm1089, %v1853, 0
    %v1875 = vsel %vm1089, %v1854, 0
    %1877 = vmatprep.subr.bf16.mxu0 0
    %1878 = vmatpush1.bf16.msra.mxu0 0
    %1879 = vmatprep.subr.bf16.mxu0 0
    %1880 = vmatpush1.bf16.msra.mxu0 0
    %1881 = vmatprep.subr.bf16.mxu0 0
    %1882 = vmatpush1.bf16.msra.mxu0 0
    %1883 = vmatprep.subr.bf16.mxu0 0
    %1884 = vmatpush1.bf16.msra.mxu0 0
    %1885 = vmatprep.subr.bf16.mxu0 0
    %1886 = vmatpush1.bf16.msra.mxu0 0
    %1887 = vmatprep.subr.bf16.mxu0 0
    %1888 = vmatpush1.bf16.msra.mxu0 0
    %1889 = vmatprep.subr.bf16.mxu0 0
    %1890 = vmatpush1.bf16.msra.mxu0 %v1868
    %1891 = vmatprep.subr.bf16.mxu0 0
    %1892 = vmatpush1.bf16.msra.mxu0 %v1867
    %1893 = vmatprep.subr.bf16.mxu0 0
    %1894 = vmatpush2.bf16.msra.mxu0 0
    %1895 = vmatprep.subr.bf16.mxu0 0
    %1896 = vmatpush2.bf16.msra.mxu0 0
    %1897 = vmatprep.subr.bf16.mxu0 0
    %1898 = vmatpush2.bf16.msra.mxu0 0
    %1899 = vmatprep.subr.bf16.mxu0 0
    %1900 = vmatpush2.bf16.msra.mxu0 0
    %1901 = vmatprep.subr.bf16.mxu0 0
    %1902 = vmatpush2.bf16.msra.mxu0 0
    %1903 = vmatprep.subr.bf16.mxu0 0
    %1904 = vmatpush2.bf16.msra.mxu0 0
    %1905 = vmatprep.subr.bf16.mxu0 0
    %1906 = vmatpush2.bf16.msra.mxu0 0
    %1907 = vmatprep.subr.bf16.mxu0 0
    %1908 = vmatpush2.bf16.msra.mxu0 0
    %1909 = vmatprep.mubr.bf16.mxu0 0
    %1910 = vmatmul.mubr.bf16.gmra.mxu0 %v1872
    %v1911 = vpop.f32.mrf.mxu0
    %v1912 = vadd.f32 0.0, %v1911
    %v1913 = vpop.f32.mrf.mxu0
    %v1914 = vpop.f32.mrf.mxu0
    %v1915 = vadd.f32 0.0, %v1914
    %v1916 = vpop.f32.mrf.mxu0
    %1917 = vmatprep.mubr.bf16.mxu0 0
    %1918 = vmatmul.mubr.bf16.gmra.mxu0 %v1875
    %v1919 = vpop.f32.mrf.mxu0
    %v1920 = vadd.f32 0.0, %v1919
    %v1921 = vpop.f32.mrf.mxu0
    %v1922 = vpop.f32.mrf.mxu0
    %v1923 = vpop.f32.mrf.mxu0
    %1924 = vdwg.mxu0
    %v1925 = vadd.f32 %v1566, %v1912
    %v1926 = vadd.f32 %v1567, %v1915
    %v1927 = vadd.f32 %v1568, %v1920
    %v1934 = vrot.slane %v462, 1
    %v1935 = vrot.slane %v464, 1
    %v1936 = vrot.slane %v466, 1
    %v1937 = vrot.slane %v470, 1
    %v1938 = vrot.slane %v472, 1
    %v1939 = vrot.slane %v474, 1
    %v1946 = vrot.slane %v462, 2
    %v1947 = vrot.slane %v464, 2
    %v1948 = vrot.slane %v466, 2
    %v1949 = vrot.slane %v470, 2
    %v1950 = vrot.slane %v472, 2
    %v1951 = vrot.slane %v474, 2
    %v1958 = vsel %vm507, %v462, %v1934
    %v1959 = vsel %vm507, %v464, %v1935
    %v1960 = vsel %vm507, %v466, %v1936
    %v1961 = vsel %vm507, %v470, %v1937
    %v1962 = vsel %vm507, %v472, %v1938
    %v1963 = vsel %vm507, %v474, %v1939
    %v1964 = vsel %vm514, %v1958, %v1946
    %v1965 = vsel %vm514, %v1959, %v1947
    %v1966 = vsel %vm514, %v1960, %v1948
    %v1967 = vsel %vm514, %v1961, %v1949
    %v1968 = vsel %vm514, %v1962, %v1950
    %v1969 = vsel %vm514, %v1963, %v1951
    %v1977 = vunpack.c.l.s4 1966171168
    %v1978 = vunpack.c.0.s8 %v1977
    %v1979 = vlaneseq
    %v1980 = vshrl.u32 %v1979, 7
    %v1981 = vsub.s32 %v1978, %v1980
    %v1982 = vrot.slane %v1964, %v1981
    %v1983 = vcombine.high %v1982, %v1982
    %v1985 = vunpack.c.l.s4 1966171168
    %v1986 = vunpack.c.0.s8 %v1985
    %v1987 = vlaneseq
    %v1988 = vshrl.u32 %v1987, 7
    %v1989 = vsub.s32 %v1986, %v1988
    %v1990 = vrot.slane %v1982, %v1989
    %v1992 = vunpack.c.l.s4 1966171168
    %v1993 = vunpack.c.0.s8 %v1992
    %v1994 = vlaneseq
    %v1995 = vshrl.u32 %v1994, 7
    %v1996 = vsub.s32 %v1993, %v1995
    %v1997 = vrot.slane %v1983, %v1996
    %v1998 = vcombine.high %v1990, %v1990
    %v2000 = vunpack.c.l.s4 1966171168
    %v2001 = vunpack.c.0.s8 %v2000
    %v2002 = vlaneseq
    %v2003 = vshrl.u32 %v2002, 7
    %v2004 = vsub.s32 %v2001, %v2003
    %v2005 = vrot.slane %v1965, %v2004
    %v2006 = vcombine.high %v2005, %v2005
    %v2008 = vunpack.c.l.s4 1966171168
    %v2009 = vunpack.c.0.s8 %v2008
    %v2010 = vlaneseq
    %v2011 = vshrl.u32 %v2010, 7
    %v2012 = vsub.s32 %v2009, %v2011
    %v2013 = vrot.slane %v2005, %v2012
    %v2015 = vunpack.c.l.s4 1966171168
    %v2016 = vunpack.c.0.s8 %v2015
    %v2017 = vlaneseq
    %v2018 = vshrl.u32 %v2017, 7
    %v2019 = vsub.s32 %v2016, %v2018
    %v2020 = vrot.slane %v2006, %v2019
    %v2021 = vcombine.high %v2013, %v2013
    %v2023 = vunpack.c.l.s4 1966171168
    %v2024 = vunpack.c.0.s8 %v2023
    %v2025 = vlaneseq
    %v2026 = vshrl.u32 %v2025, 7
    %v2027 = vsub.s32 %v2024, %v2026
    %v2028 = vrot.slane %v1966, %v2027
    %v2029 = vcombine.high %v2028, %v2028
    %v2031 = vunpack.c.l.s4 1966171168
    %v2032 = vunpack.c.0.s8 %v2031
    %v2033 = vlaneseq
    %v2034 = vshrl.u32 %v2033, 7
    %v2035 = vsub.s32 %v2032, %v2034
    %v2036 = vrot.slane %v2028, %v2035
    %v2038 = vunpack.c.l.s4 1966171168
    %v2039 = vunpack.c.0.s8 %v2038
    %v2040 = vlaneseq
    %v2041 = vshrl.u32 %v2040, 7
    %v2042 = vsub.s32 %v2039, %v2041
    %v2043 = vrot.slane %v2029, %v2042
    %v2044 = vcombine.high %v2036, %v2036
    %v2046 = vunpack.c.l.s4 1966171168
    %v2047 = vunpack.c.0.s8 %v2046
    %v2048 = vlaneseq
    %v2049 = vshrl.u32 %v2048, 7
    %v2050 = vsub.s32 %v2047, %v2049
    %v2051 = vrot.slane %v1967, %v2050
    %v2052 = vcombine.high %v2051, %v2051
    %v2054 = vunpack.c.l.s4 1966171168
    %v2055 = vunpack.c.0.s8 %v2054
    %v2056 = vlaneseq
    %v2057 = vshrl.u32 %v2056, 7
    %v2058 = vsub.s32 %v2055, %v2057
    %v2059 = vrot.slane %v2051, %v2058
    %v2061 = vunpack.c.l.s4 1966171168
    %v2062 = vunpack.c.0.s8 %v2061
    %v2063 = vlaneseq
    %v2064 = vshrl.u32 %v2063, 7
    %v2065 = vsub.s32 %v2062, %v2064
    %v2066 = vrot.slane %v2052, %v2065
    %v2067 = vcombine.high %v2059, %v2059
    %v2069 = vunpack.c.l.s4 1966171168
    %v2070 = vunpack.c.0.s8 %v2069
    %v2071 = vlaneseq
    %v2072 = vshrl.u32 %v2071, 7
    %v2073 = vsub.s32 %v2070, %v2072
    %v2074 = vrot.slane %v1968, %v2073
    %v2075 = vcombine.high %v2074, %v2074
    %v2077 = vunpack.c.l.s4 1966171168
    %v2078 = vunpack.c.0.s8 %v2077
    %v2079 = vlaneseq
    %v2080 = vshrl.u32 %v2079, 7
    %v2081 = vsub.s32 %v2078, %v2080
    %v2082 = vrot.slane %v2074, %v2081
    %v2084 = vunpack.c.l.s4 1966171168
    %v2085 = vunpack.c.0.s8 %v2084
    %v2086 = vlaneseq
    %v2087 = vshrl.u32 %v2086, 7
    %v2088 = vsub.s32 %v2085, %v2087
    %v2089 = vrot.slane %v2075, %v2088
    %v2090 = vcombine.high %v2082, %v2082
    %v2092 = vunpack.c.l.s4 1966171168
    %v2093 = vunpack.c.0.s8 %v2092
    %v2094 = vlaneseq
    %v2095 = vshrl.u32 %v2094, 7
    %v2096 = vsub.s32 %v2093, %v2095
    %v2097 = vrot.slane %v1969, %v2096
    %v2098 = vcombine.high %v2097, %v2097
    %v2100 = vunpack.c.l.s4 1966171168
    %v2101 = vunpack.c.0.s8 %v2100
    %v2102 = vlaneseq
    %v2103 = vshrl.u32 %v2102, 7
    %v2104 = vsub.s32 %v2101, %v2103
    %v2105 = vrot.slane %v2097, %v2104
    %v2107 = vunpack.c.l.s4 1966171168
    %v2108 = vunpack.c.0.s8 %v2107
    %v2109 = vlaneseq
    %v2110 = vshrl.u32 %v2109, 7
    %v2111 = vsub.s32 %v2108, %v2110
    %v2112 = vrot.slane %v2098, %v2111
    %v2113 = vcombine.high %v2105, %v2105
    %v2114 = vcombine.low %v1990, %v1997
    %v2115 = vcombine.low %v1998, %v2013
    %v2116 = vcombine.low %v2020, %v2021
    %v2117 = vcombine.low %v2036, %v2043
    %v2119 = vunpack.c.l.s4 1966171168
    %v2120 = vunpack.c.0.s8 %v2119
    %v2121 = vlaneseq
    %v2122 = vshrl.u32 %v2121, 7
    %v2123 = vsub.s32 %v2120, %v2122
    %v2124 = vrot.slane %v2114, %v2123
    %v2126 = vunpack.c.l.s4 1966171168
    %v2127 = vunpack.c.0.s8 %v2126
    %v2128 = vlaneseq
    %v2129 = vshrl.u32 %v2128, 7
    %v2130 = vsub.s32 %v2127, %v2129
    %v2131 = vrot.slane %v2115, %v2130
    %v2133 = vunpack.c.l.s4 1966171168
    %v2134 = vunpack.c.0.s8 %v2133
    %v2135 = vlaneseq
    %v2136 = vshrl.u32 %v2135, 7
    %v2137 = vsub.s32 %v2134, %v2136
    %v2138 = vrot.slane %v2116, %v2137
    %v2140 = vunpack.c.l.s4 1966171168
    %v2141 = vunpack.c.0.s8 %v2140
    %v2142 = vlaneseq
    %v2143 = vshrl.u32 %v2142, 7
    %v2144 = vsub.s32 %v2141, %v2143
    %v2145 = vrot.slane %v2117, %v2144
    %v2146 = vcombine.low %v2124, %v2131
    %v2147 = vcombine.low %v2138, %v2145
    %v2149 = vunpack.c.l.s4 1966171168
    %v2150 = vunpack.c.0.s8 %v2149
    %v2151 = vlaneseq
    %v2152 = vshrl.u32 %v2151, 7
    %v2153 = vsub.s32 %v2150, %v2152
    %v2154 = vrot.slane %v2146, %v2153
    %v2156 = vunpack.c.l.s4 1966171168
    %v2157 = vunpack.c.0.s8 %v2156
    %v2158 = vlaneseq
    %v2159 = vshrl.u32 %v2158, 7
    %v2160 = vsub.s32 %v2157, %v2159
    %v2161 = vrot.slane %v2147, %v2160
    %v2162 = vcombine.low %v2154, %v2161
    %v2163 = vcombine.low %v2044, %v2059
    %v2164 = vcombine.low %v2066, %v2067
    %v2165 = vcombine.low %v2082, %v2089
    %v2166 = vcombine.low %v2090, %v2105
    %v2168 = vunpack.c.l.s4 1966171168
    %v2169 = vunpack.c.0.s8 %v2168
    %v2170 = vlaneseq
    %v2171 = vshrl.u32 %v2170, 7
    %v2172 = vsub.s32 %v2169, %v2171
    %v2173 = vrot.slane %v2163, %v2172
    %v2175 = vunpack.c.l.s4 1966171168
    %v2176 = vunpack.c.0.s8 %v2175
    %v2177 = vlaneseq
    %v2178 = vshrl.u32 %v2177, 7
    %v2179 = vsub.s32 %v2176, %v2178
    %v2180 = vrot.slane %v2164, %v2179
    %v2182 = vunpack.c.l.s4 1966171168
    %v2183 = vunpack.c.0.s8 %v2182
    %v2184 = vlaneseq
    %v2185 = vshrl.u32 %v2184, 7
    %v2186 = vsub.s32 %v2183, %v2185
    %v2187 = vrot.slane %v2165, %v2186
    %v2189 = vunpack.c.l.s4 1966171168
    %v2190 = vunpack.c.0.s8 %v2189
    %v2191 = vlaneseq
    %v2192 = vshrl.u32 %v2191, 7
    %v2193 = vsub.s32 %v2190, %v2192
    %v2194 = vrot.slane %v2166, %v2193
    %v2195 = vcombine.low %v2173, %v2180
    %v2196 = vcombine.low %v2187, %v2194
    %v2198 = vunpack.c.l.s4 1966171168
    %v2199 = vunpack.c.0.s8 %v2198
    %v2200 = vlaneseq
    %v2201 = vshrl.u32 %v2200, 7
    %v2202 = vsub.s32 %v2199, %v2201
    %v2203 = vrot.slane %v2195, %v2202
    %v2205 = vunpack.c.l.s4 1966171168
    %v2206 = vunpack.c.0.s8 %v2205
    %v2207 = vlaneseq
    %v2208 = vshrl.u32 %v2207, 7
    %v2209 = vsub.s32 %v2206, %v2208
    %v2210 = vrot.slane %v2196, %v2209
    %v2211 = vcombine.low %v2203, %v2210
    %v2212 = vcombine.low %v2112, %v2113
    %v2214 = vunpack.c.l.s4 1966171168
    %v2215 = vunpack.c.0.s8 %v2214
    %v2216 = vlaneseq
    %v2217 = vshrl.u32 %v2216, 7
    %v2218 = vsub.s32 %v2215, %v2217
    %v2219 = vrot.slane %v2212, %v2218
    %v2221 = vunpack.c.l.s4 1966171168
    %v2222 = vunpack.c.0.s8 %v2221
    %v2223 = vlaneseq
    %v2224 = vshrl.u32 %v2223, 7
    %v2225 = vsub.s32 %v2222, %v2224
    %v2226 = vrot.slane %v2219, %v2225
    %v2230 = vpack.c.bf16 %v2211, %v2162
    %v2231 = vpack.c.bf16 %v2226, %v2226
    %v2232 = vld [vmem:[%s1 + $0xc0] sm:$0xf]
    %v2233 = vld [vmem:[%s1 + $0xc4] sm:$0xf]
    %v2234 = vld [vmem:[%s1 + $0xc8] sm:$0xf]
    %v2235 = vld [vmem:[%s1 + $0xcc] sm:$0xf]
    %v2240 = vunpack.c.l.b16 %v2232
    %v2241 = vunpack.c.l.b16 %v2233
    %v2242 = vunpack.c.l.b16 %v2234
    %v2243 = vunpack.c.l.b16 %v2235
    %v2244 = vpack.c.b16 %v2241, %v2240
    %v2245 = vpack.c.b16 %v2243, %v2242
    %v2249 = vsel %vm1089, %v2230, 0
    %v2252 = vsel %vm1089, %v2231, 0
    %2254 = vmatprep.subr.bf16.mxu0 0
    %2255 = vmatpush1.bf16.msra.mxu0 0
    %2256 = vmatprep.subr.bf16.mxu0 0
    %2257 = vmatpush1.bf16.msra.mxu0 0
    %2258 = vmatprep.subr.bf16.mxu0 0
    %2259 = vmatpush1.bf16.msra.mxu0 0
    %2260 = vmatprep.subr.bf16.mxu0 0
    %2261 = vmatpush1.bf16.msra.mxu0 0
    %2262 = vmatprep.subr.bf16.mxu0 0
    %2263 = vmatpush1.bf16.msra.mxu0 0
    %2264 = vmatprep.subr.bf16.mxu0 0
    %2265 = vmatpush1.bf16.msra.mxu0 0
    %2266 = vmatprep.subr.bf16.mxu0 0
    %2267 = vmatpush1.bf16.msra.mxu0 %v2245
    %2268 = vmatprep.subr.bf16.mxu0 0
    %2269 = vmatpush1.bf16.msra.mxu0 %v2244
    %2270 = vmatprep.subr.bf16.mxu0 0
    %2271 = vmatpush2.bf16.msra.mxu0 0
    %2272 = vmatprep.subr.bf16.mxu0 0
    %2273 = vmatpush2.bf16.msra.mxu0 0
    %2274 = vmatprep.subr.bf16.mxu0 0
    %2275 = vmatpush2.bf16.msra.mxu0 0
    %2276 = vmatprep.subr.bf16.mxu0 0
    %2277 = vmatpush2.bf16.msra.mxu0 0
    %2278 = vmatprep.subr.bf16.mxu0 0
    %2279 = vmatpush2.bf16.msra.mxu0 0
    %2280 = vmatprep.subr.bf16.mxu0 0
    %2281 = vmatpush2.bf16.msra.mxu0 0
    %2282 = vmatprep.subr.bf16.mxu0 0
    %2283 = vmatpush2.bf16.msra.mxu0 0
    %2284 = vmatprep.subr.bf16.mxu0 0
    %2285 = vmatpush2.bf16.msra.mxu0 0
    %2286 = vmatprep.mubr.bf16.mxu0 0
    %2287 = vmatmul.mubr.bf16.gmra.mxu0 %v2249
    %v2288 = vpop.f32.mrf.mxu0
    %v2289 = vadd.f32 0.0, %v2288
    %v2290 = vpop.f32.mrf.mxu0
    %v2291 = vpop.f32.mrf.mxu0
    %v2292 = vadd.f32 0.0, %v2291
    %v2293 = vpop.f32.mrf.mxu0
    %2294 = vmatprep.mubr.bf16.mxu0 0
    %2295 = vmatmul.mubr.bf16.gmra.mxu0 %v2252
    %v2296 = vpop.f32.mrf.mxu0
    %v2297 = vadd.f32 0.0, %v2296
    %v2298 = vpop.f32.mrf.mxu0
    %v2299 = vpop.f32.mrf.mxu0
    %v2300 = vpop.f32.mrf.mxu0
    %2301 = vdwg.mxu0
    %v2302 = vadd.f32 %v1925, %v2289
    %v2303 = vadd.f32 %v1926, %v2292
    %v2304 = vadd.f32 %v1927, %v2297
    %v2305 = vrot.slane %v462, 3
    %v2306 = vrot.slane %v464, 3
    %v2307 = vrot.slane %v466, 3
    %v2308 = vrot.slane %v470, 3
    %v2309 = vrot.slane %v472, 3
    %v2310 = vrot.slane %v474, 3
    %v2317 = vsel %vm507, %v1934, %v1946
    %v2318 = vsel %vm507, %v1935, %v1947
    %v2319 = vsel %vm507, %v1936, %v1948
    %v2320 = vsel %vm507, %v1937, %v1949
    %v2321 = vsel %vm507, %v1938, %v1950
    %v2322 = vsel %vm507, %v1939, %v1951
    %v2323 = vsel %vm514, %v2317, %v2305
    %v2324 = vsel %vm514, %v2318, %v2306
    %v2325 = vsel %vm514, %v2319, %v2307
    %v2326 = vsel %vm514, %v2320, %v2308
    %v2327 = vsel %vm514, %v2321, %v2309
    %v2328 = vsel %vm514, %v2322, %v2310
    %v2336 = vunpack.c.l.s4 1966171168
    %v2337 = vunpack.c.0.s8 %v2336
    %v2338 = vlaneseq
    %v2339 = vshrl.u32 %v2338, 7
    %v2340 = vsub.s32 %v2337, %v2339
    %v2341 = vrot.slane %v2323, %v2340
    %v2342 = vcombine.high %v2341, %v2341
    %v2344 = vunpack.c.l.s4 1966171168
    %v2345 = vunpack.c.0.s8 %v2344
    %v2346 = vlaneseq
    %v2347 = vshrl.u32 %v2346, 7
    %v2348 = vsub.s32 %v2345, %v2347
    %v2349 = vrot.slane %v2341, %v2348
    %v2351 = vunpack.c.l.s4 1966171168
    %v2352 = vunpack.c.0.s8 %v2351
    %v2353 = vlaneseq
    %v2354 = vshrl.u32 %v2353, 7
    %v2355 = vsub.s32 %v2352, %v2354
    %v2356 = vrot.slane %v2342, %v2355
    %v2357 = vcombine.high %v2349, %v2349
    %v2359 = vunpack.c.l.s4 1966171168
    %v2360 = vunpack.c.0.s8 %v2359
    %v2361 = vlaneseq
    %v2362 = vshrl.u32 %v2361, 7
    %v2363 = vsub.s32 %v2360, %v2362
    %v2364 = vrot.slane %v2324, %v2363
    %v2365 = vcombine.high %v2364, %v2364
    %v2367 = vunpack.c.l.s4 1966171168
    %v2368 = vunpack.c.0.s8 %v2367
    %v2369 = vlaneseq
    %v2370 = vshrl.u32 %v2369, 7
    %v2371 = vsub.s32 %v2368, %v2370
    %v2372 = vrot.slane %v2364, %v2371
    %v2374 = vunpack.c.l.s4 1966171168
    %v2375 = vunpack.c.0.s8 %v2374
    %v2376 = vlaneseq
    %v2377 = vshrl.u32 %v2376, 7
    %v2378 = vsub.s32 %v2375, %v2377
    %v2379 = vrot.slane %v2365, %v2378
    %v2380 = vcombine.high %v2372, %v2372
    %v2382 = vunpack.c.l.s4 1966171168
    %v2383 = vunpack.c.0.s8 %v2382
    %v2384 = vlaneseq
    %v2385 = vshrl.u32 %v2384, 7
    %v2386 = vsub.s32 %v2383, %v2385
    %v2387 = vrot.slane %v2325, %v2386
    %v2388 = vcombine.high %v2387, %v2387
    %v2390 = vunpack.c.l.s4 1966171168
    %v2391 = vunpack.c.0.s8 %v2390
    %v2392 = vlaneseq
    %v2393 = vshrl.u32 %v2392, 7
    %v2394 = vsub.s32 %v2391, %v2393
    %v2395 = vrot.slane %v2387, %v2394
    %v2397 = vunpack.c.l.s4 1966171168
    %v2398 = vunpack.c.0.s8 %v2397
    %v2399 = vlaneseq
    %v2400 = vshrl.u32 %v2399, 7
    %v2401 = vsub.s32 %v2398, %v2400
    %v2402 = vrot.slane %v2388, %v2401
    %v2403 = vcombine.high %v2395, %v2395
    %v2405 = vunpack.c.l.s4 1966171168
    %v2406 = vunpack.c.0.s8 %v2405
    %v2407 = vlaneseq
    %v2408 = vshrl.u32 %v2407, 7
    %v2409 = vsub.s32 %v2406, %v2408
    %v2410 = vrot.slane %v2326, %v2409
    %v2411 = vcombine.high %v2410, %v2410
    %v2413 = vunpack.c.l.s4 1966171168
    %v2414 = vunpack.c.0.s8 %v2413
    %v2415 = vlaneseq
    %v2416 = vshrl.u32 %v2415, 7
    %v2417 = vsub.s32 %v2414, %v2416
    %v2418 = vrot.slane %v2410, %v2417
    %v2420 = vunpack.c.l.s4 1966171168
    %v2421 = vunpack.c.0.s8 %v2420
    %v2422 = vlaneseq
    %v2423 = vshrl.u32 %v2422, 7
    %v2424 = vsub.s32 %v2421, %v2423
    %v2425 = vrot.slane %v2411, %v2424
    %v2426 = vcombine.high %v2418, %v2418
    %v2428 = vunpack.c.l.s4 1966171168
    %v2429 = vunpack.c.0.s8 %v2428
    %v2430 = vlaneseq
    %v2431 = vshrl.u32 %v2430, 7
    %v2432 = vsub.s32 %v2429, %v2431
    %v2433 = vrot.slane %v2327, %v2432
    %v2434 = vcombine.high %v2433, %v2433
    %v2436 = vunpack.c.l.s4 1966171168
    %v2437 = vunpack.c.0.s8 %v2436
    %v2438 = vlaneseq
    %v2439 = vshrl.u32 %v2438, 7
    %v2440 = vsub.s32 %v2437, %v2439
    %v2441 = vrot.slane %v2433, %v2440
    %v2443 = vunpack.c.l.s4 1966171168
    %v2444 = vunpack.c.0.s8 %v2443
    %v2445 = vlaneseq
    %v2446 = vshrl.u32 %v2445, 7
    %v2447 = vsub.s32 %v2444, %v2446
    %v2448 = vrot.slane %v2434, %v2447
    %v2449 = vcombine.high %v2441, %v2441
    %v2451 = vunpack.c.l.s4 1966171168
    %v2452 = vunpack.c.0.s8 %v2451
    %v2453 = vlaneseq
    %v2454 = vshrl.u32 %v2453, 7
    %v2455 = vsub.s32 %v2452, %v2454
    %v2456 = vrot.slane %v2328, %v2455
    %v2457 = vcombine.high %v2456, %v2456
    %v2459 = vunpack.c.l.s4 1966171168
    %v2460 = vunpack.c.0.s8 %v2459
    %v2461 = vlaneseq
    %v2462 = vshrl.u32 %v2461, 7
    %v2463 = vsub.s32 %v2460, %v2462
    %v2464 = vrot.slane %v2456, %v2463
    %v2466 = vunpack.c.l.s4 1966171168
    %v2467 = vunpack.c.0.s8 %v2466
    %v2468 = vlaneseq
    %v2469 = vshrl.u32 %v2468, 7
    %v2470 = vsub.s32 %v2467, %v2469
    %v2471 = vrot.slane %v2457, %v2470
    %v2472 = vcombine.high %v2464, %v2464
    %v2473 = vcombine.low %v2349, %v2356
    %v2474 = vcombine.low %v2357, %v2372
    %v2475 = vcombine.low %v2379, %v2380
    %v2476 = vcombine.low %v2395, %v2402
    %v2478 = vunpack.c.l.s4 1966171168
    %v2479 = vunpack.c.0.s8 %v2478
    %v2480 = vlaneseq
    %v2481 = vshrl.u32 %v2480, 7
    %v2482 = vsub.s32 %v2479, %v2481
    %v2483 = vrot.slane %v2473, %v2482
    %v2485 = vunpack.c.l.s4 1966171168
    %v2486 = vunpack.c.0.s8 %v2485
    %v2487 = vlaneseq
    %v2488 = vshrl.u32 %v2487, 7
    %v2489 = vsub.s32 %v2486, %v2488
    %v2490 = vrot.slane %v2474, %v2489
    %v2492 = vunpack.c.l.s4 1966171168
    %v2493 = vunpack.c.0.s8 %v2492
    %v2494 = vlaneseq
    %v2495 = vshrl.u32 %v2494, 7
    %v2496 = vsub.s32 %v2493, %v2495
    %v2497 = vrot.slane %v2475, %v2496
    %v2499 = vunpack.c.l.s4 1966171168
    %v2500 = vunpack.c.0.s8 %v2499
    %v2501 = vlaneseq
    %v2502 = vshrl.u32 %v2501, 7
    %v2503 = vsub.s32 %v2500, %v2502
    %v2504 = vrot.slane %v2476, %v2503
    %v2505 = vcombine.low %v2483, %v2490
    %v2506 = vcombine.low %v2497, %v2504
    %v2508 = vunpack.c.l.s4 1966171168
    %v2509 = vunpack.c.0.s8 %v2508
    %v2510 = vlaneseq
    %v2511 = vshrl.u32 %v2510, 7
    %v2512 = vsub.s32 %v2509, %v2511
    %v2513 = vrot.slane %v2505, %v2512
    %v2515 = vunpack.c.l.s4 1966171168
    %v2516 = vunpack.c.0.s8 %v2515
    %v2517 = vlaneseq
    %v2518 = vshrl.u32 %v2517, 7
    %v2519 = vsub.s32 %v2516, %v2518
    %v2520 = vrot.slane %v2506, %v2519
    %v2521 = vcombine.low %v2513, %v2520
    %v2522 = vcombine.low %v2403, %v2418
    %v2523 = vcombine.low %v2425, %v2426
    %v2524 = vcombine.low %v2441, %v2448
    %v2525 = vcombine.low %v2449, %v2464
    %v2527 = vunpack.c.l.s4 1966171168
    %v2528 = vunpack.c.0.s8 %v2527
    %v2529 = vlaneseq
    %v2530 = vshrl.u32 %v2529, 7
    %v2531 = vsub.s32 %v2528, %v2530
    %v2532 = vrot.slane %v2522, %v2531
    %v2534 = vunpack.c.l.s4 1966171168
    %v2535 = vunpack.c.0.s8 %v2534
    %v2536 = vlaneseq
    %v2537 = vshrl.u32 %v2536, 7
    %v2538 = vsub.s32 %v2535, %v2537
    %v2539 = vrot.slane %v2523, %v2538
    %v2541 = vunpack.c.l.s4 1966171168
    %v2542 = vunpack.c.0.s8 %v2541
    %v2543 = vlaneseq
    %v2544 = vshrl.u32 %v2543, 7
    %v2545 = vsub.s32 %v2542, %v2544
    %v2546 = vrot.slane %v2524, %v2545
    %v2548 = vunpack.c.l.s4 1966171168
    %v2549 = vunpack.c.0.s8 %v2548
    %v2550 = vlaneseq
    %v2551 = vshrl.u32 %v2550, 7
    %v2552 = vsub.s32 %v2549, %v2551
    %v2553 = vrot.slane %v2525, %v2552
    %v2554 = vcombine.low %v2532, %v2539
    %v2555 = vcombine.low %v2546, %v2553
    %v2557 = vunpack.c.l.s4 1966171168
    %v2558 = vunpack.c.0.s8 %v2557
    %v2559 = vlaneseq
    %v2560 = vshrl.u32 %v2559, 7
    %v2561 = vsub.s32 %v2558, %v2560
    %v2562 = vrot.slane %v2554, %v2561
    %v2564 = vunpack.c.l.s4 1966171168
    %v2565 = vunpack.c.0.s8 %v2564
    %v2566 = vlaneseq
    %v2567 = vshrl.u32 %v2566, 7
    %v2568 = vsub.s32 %v2565, %v2567
    %v2569 = vrot.slane %v2555, %v2568
    %v2570 = vcombine.low %v2562, %v2569
    %v2571 = vcombine.low %v2471, %v2472
    %v2573 = vunpack.c.l.s4 1966171168
    %v2574 = vunpack.c.0.s8 %v2573
    %v2575 = vlaneseq
    %v2576 = vshrl.u32 %v2575, 7
    %v2577 = vsub.s32 %v2574, %v2576
    %v2578 = vrot.slane %v2571, %v2577
    %v2580 = vunpack.c.l.s4 1966171168
    %v2581 = vunpack.c.0.s8 %v2580
    %v2582 = vlaneseq
    %v2583 = vshrl.u32 %v2582, 7
    %v2584 = vsub.s32 %v2581, %v2583
    %v2585 = vrot.slane %v2578, %v2584
    %v2589 = vpack.c.bf16 %v2570, %v2521
    %v2590 = vpack.c.bf16 %v2585, %v2585
    %v2591 = vld [vmem:[%s1 + $0xd0] sm:$0xf]
    %v2592 = vld [vmem:[%s1 + $0xd4] sm:$0xf]
    %v2593 = vld [vmem:[%s1 + $0xd8] sm:$0xf]
    %v2594 = vld [vmem:[%s1 + $0xdc] sm:$0xf]
    %v2599 = vunpack.c.l.b16 %v2591
    %v2600 = vunpack.c.l.b16 %v2592
    %v2601 = vunpack.c.l.b16 %v2593
    %v2602 = vunpack.c.l.b16 %v2594
    %v2603 = vpack.c.b16 %v2600, %v2599
    %v2604 = vpack.c.b16 %v2602, %v2601
    %v2608 = vsel %vm1089, %v2589, 0
    %v2611 = vsel %vm1089, %v2590, 0
    %2613 = vmatprep.subr.bf16.mxu0 0
    %2614 = vmatpush1.bf16.msra.mxu0 0
    %2615 = vmatprep.subr.bf16.mxu0 0
    %2616 = vmatpush1.bf16.msra.mxu0 0
    %2617 = vmatprep.subr.bf16.mxu0 0
    %2618 = vmatpush1.bf16.msra.mxu0 0
    %2619 = vmatprep.subr.bf16.mxu0 0
    %2620 = vmatpush1.bf16.msra.mxu0 0
    %2621 = vmatprep.subr.bf16.mxu0 0
    %2622 = vmatpush1.bf16.msra.mxu0 0
    %2623 = vmatprep.subr.bf16.mxu0 0
    %2624 = vmatpush1.bf16.msra.mxu0 0
    %2625 = vmatprep.subr.bf16.mxu0 0
    %2626 = vmatpush1.bf16.msra.mxu0 %v2604
    %2627 = vmatprep.subr.bf16.mxu0 0
    %2628 = vmatpush1.bf16.msra.mxu0 %v2603
    %2629 = vmatprep.subr.bf16.mxu0 0
    %2630 = vmatpush2.bf16.msra.mxu0 0
    %2631 = vmatprep.subr.bf16.mxu0 0
    %2632 = vmatpush2.bf16.msra.mxu0 0
    %2633 = vmatprep.subr.bf16.mxu0 0
    %2634 = vmatpush2.bf16.msra.mxu0 0
    %2635 = vmatprep.subr.bf16.mxu0 0
    %2636 = vmatpush2.bf16.msra.mxu0 0
    %2637 = vmatprep.subr.bf16.mxu0 0
    %2638 = vmatpush2.bf16.msra.mxu0 0
    %2639 = vmatprep.subr.bf16.mxu0 0
    %2640 = vmatpush2.bf16.msra.mxu0 0
    %2641 = vmatprep.subr.bf16.mxu0 0
    %2642 = vmatpush2.bf16.msra.mxu0 0
    %2643 = vmatprep.subr.bf16.mxu0 0
    %2644 = vmatpush2.bf16.msra.mxu0 0
    %2645 = vmatprep.mubr.bf16.mxu0 0
    %2646 = vmatmul.mubr.bf16.gmra.mxu0 %v2608
    %v2647 = vpop.f32.mrf.mxu0
    %v2648 = vadd.f32 0.0, %v2647
    %v2649 = vpop.f32.mrf.mxu0
    %v2650 = vpop.f32.mrf.mxu0
    %v2651 = vadd.f32 0.0, %v2650
    %v2652 = vpop.f32.mrf.mxu0
    %2653 = vmatprep.mubr.bf16.mxu0 0
    %2654 = vmatmul.mubr.bf16.gmra.mxu0 %v2611
    %v2655 = vpop.f32.mrf.mxu0
    %v2656 = vadd.f32 0.0, %v2655
    %v2657 = vpop.f32.mrf.mxu0
    %v2658 = vpop.f32.mrf.mxu0
    %v2659 = vpop.f32.mrf.mxu0
    %2660 = vdwg.mxu0
    %v2661 = vadd.f32 %v2302, %v2648
    %v2662 = vadd.f32 %v2303, %v2651
    %v2663 = vadd.f32 %v2304, %v2656
    %v2664 = vrot.slane %v462, 4
    %v2665 = vrot.slane %v464, 4
    %v2666 = vrot.slane %v466, 4
    %v2667 = vrot.slane %v470, 4
    %v2668 = vrot.slane %v472, 4
    %v2669 = vrot.slane %v474, 4
    %v2676 = vsel %vm507, %v1946, %v2305
    %v2677 = vsel %vm507, %v1947, %v2306
    %v2678 = vsel %vm507, %v1948, %v2307
    %v2679 = vsel %vm507, %v1949, %v2308
    %v2680 = vsel %vm507, %v1950, %v2309
    %v2681 = vsel %vm507, %v1951, %v2310
    %v2682 = vsel %vm514, %v2676, %v2664
    %v2683 = vsel %vm514, %v2677, %v2665
    %v2684 = vsel %vm514, %v2678, %v2666
    %v2685 = vsel %vm514, %v2679, %v2667
    %v2686 = vsel %vm514, %v2680, %v2668
    %v2687 = vsel %vm514, %v2681, %v2669
    %v2695 = vunpack.c.l.s4 1966171168
    %v2696 = vunpack.c.0.s8 %v2695
    %v2697 = vlaneseq
    %v2698 = vshrl.u32 %v2697, 7
    %v2699 = vsub.s32 %v2696, %v2698
    %v2700 = vrot.slane %v2682, %v2699
    %v2701 = vcombine.high %v2700, %v2700
    %v2703 = vunpack.c.l.s4 1966171168
    %v2704 = vunpack.c.0.s8 %v2703
    %v2705 = vlaneseq
    %v2706 = vshrl.u32 %v2705, 7
    %v2707 = vsub.s32 %v2704, %v2706
    %v2708 = vrot.slane %v2700, %v2707
    %v2710 = vunpack.c.l.s4 1966171168
    %v2711 = vunpack.c.0.s8 %v2710
    %v2712 = vlaneseq
    %v2713 = vshrl.u32 %v2712, 7
    %v2714 = vsub.s32 %v2711, %v2713
    %v2715 = vrot.slane %v2701, %v2714
    %v2716 = vcombine.high %v2708, %v2708
    %v2718 = vunpack.c.l.s4 1966171168
    %v2719 = vunpack.c.0.s8 %v2718
    %v2720 = vlaneseq
    %v2721 = vshrl.u32 %v2720, 7
    %v2722 = vsub.s32 %v2719, %v2721
    %v2723 = vrot.slane %v2683, %v2722
    %v2724 = vcombine.high %v2723, %v2723
    %v2726 = vunpack.c.l.s4 1966171168
    %v2727 = vunpack.c.0.s8 %v2726
    %v2728 = vlaneseq
    %v2729 = vshrl.u32 %v2728, 7
    %v2730 = vsub.s32 %v2727, %v2729
    %v2731 = vrot.slane %v2723, %v2730
    %v2733 = vunpack.c.l.s4 1966171168
    %v2734 = vunpack.c.0.s8 %v2733
    %v2735 = vlaneseq
    %v2736 = vshrl.u32 %v2735, 7
    %v2737 = vsub.s32 %v2734, %v2736
    %v2738 = vrot.slane %v2724, %v2737
    %v2739 = vcombine.high %v2731, %v2731
    %v2741 = vunpack.c.l.s4 1966171168
    %v2742 = vunpack.c.0.s8 %v2741
    %v2743 = vlaneseq
    %v2744 = vshrl.u32 %v2743, 7
    %v2745 = vsub.s32 %v2742, %v2744
    %v2746 = vrot.slane %v2684, %v2745
    %v2747 = vcombine.high %v2746, %v2746
    %v2749 = vunpack.c.l.s4 1966171168
    %v2750 = vunpack.c.0.s8 %v2749
    %v2751 = vlaneseq
    %v2752 = vshrl.u32 %v2751, 7
    %v2753 = vsub.s32 %v2750, %v2752
    %v2754 = vrot.slane %v2746, %v2753
    %v2756 = vunpack.c.l.s4 1966171168
    %v2757 = vunpack.c.0.s8 %v2756
    %v2758 = vlaneseq
    %v2759 = vshrl.u32 %v2758, 7
    %v2760 = vsub.s32 %v2757, %v2759
    %v2761 = vrot.slane %v2747, %v2760
    %v2762 = vcombine.high %v2754, %v2754
    %v2764 = vunpack.c.l.s4 1966171168
    %v2765 = vunpack.c.0.s8 %v2764
    %v2766 = vlaneseq
    %v2767 = vshrl.u32 %v2766, 7
    %v2768 = vsub.s32 %v2765, %v2767
    %v2769 = vrot.slane %v2685, %v2768
    %v2770 = vcombine.high %v2769, %v2769
    %v2772 = vunpack.c.l.s4 1966171168
    %v2773 = vunpack.c.0.s8 %v2772
    %v2774 = vlaneseq
    %v2775 = vshrl.u32 %v2774, 7
    %v2776 = vsub.s32 %v2773, %v2775
    %v2777 = vrot.slane %v2769, %v2776
    %v2779 = vunpack.c.l.s4 1966171168
    %v2780 = vunpack.c.0.s8 %v2779
    %v2781 = vlaneseq
    %v2782 = vshrl.u32 %v2781, 7
    %v2783 = vsub.s32 %v2780, %v2782
    %v2784 = vrot.slane %v2770, %v2783
    %v2785 = vcombine.high %v2777, %v2777
    %v2787 = vunpack.c.l.s4 1966171168
    %v2788 = vunpack.c.0.s8 %v2787
    %v2789 = vlaneseq
    %v2790 = vshrl.u32 %v2789, 7
    %v2791 = vsub.s32 %v2788, %v2790
    %v2792 = vrot.slane %v2686, %v2791
    %v2793 = vcombine.high %v2792, %v2792
    %v2795 = vunpack.c.l.s4 1966171168
    %v2796 = vunpack.c.0.s8 %v2795
    %v2797 = vlaneseq
    %v2798 = vshrl.u32 %v2797, 7
    %v2799 = vsub.s32 %v2796, %v2798
    %v2800 = vrot.slane %v2792, %v2799
    %v2802 = vunpack.c.l.s4 1966171168
    %v2803 = vunpack.c.0.s8 %v2802
    %v2804 = vlaneseq
    %v2805 = vshrl.u32 %v2804, 7
    %v2806 = vsub.s32 %v2803, %v2805
    %v2807 = vrot.slane %v2793, %v2806
    %v2808 = vcombine.high %v2800, %v2800
    %v2810 = vunpack.c.l.s4 1966171168
    %v2811 = vunpack.c.0.s8 %v2810
    %v2812 = vlaneseq
    %v2813 = vshrl.u32 %v2812, 7
    %v2814 = vsub.s32 %v2811, %v2813
    %v2815 = vrot.slane %v2687, %v2814
    %v2816 = vcombine.high %v2815, %v2815
    %v2818 = vunpack.c.l.s4 1966171168
    %v2819 = vunpack.c.0.s8 %v2818
    %v2820 = vlaneseq
    %v2821 = vshrl.u32 %v2820, 7
    %v2822 = vsub.s32 %v2819, %v2821
    %v2823 = vrot.slane %v2815, %v2822
    %v2825 = vunpack.c.l.s4 1966171168
    %v2826 = vunpack.c.0.s8 %v2825
    %v2827 = vlaneseq
    %v2828 = vshrl.u32 %v2827, 7
    %v2829 = vsub.s32 %v2826, %v2828
    %v2830 = vrot.slane %v2816, %v2829
    %v2831 = vcombine.high %v2823, %v2823
    %v2832 = vcombine.low %v2708, %v2715
    %v2833 = vcombine.low %v2716, %v2731
    %v2834 = vcombine.low %v2738, %v2739
    %v2835 = vcombine.low %v2754, %v2761
    %v2837 = vunpack.c.l.s4 1966171168
    %v2838 = vunpack.c.0.s8 %v2837
    %v2839 = vlaneseq
    %v2840 = vshrl.u32 %v2839, 7
    %v2841 = vsub.s32 %v2838, %v2840
    %v2842 = vrot.slane %v2832, %v2841
    %v2844 = vunpack.c.l.s4 1966171168
    %v2845 = vunpack.c.0.s8 %v2844
    %v2846 = vlaneseq
    %v2847 = vshrl.u32 %v2846, 7
    %v2848 = vsub.s32 %v2845, %v2847
    %v2849 = vrot.slane %v2833, %v2848
    %v2851 = vunpack.c.l.s4 1966171168
    %v2852 = vunpack.c.0.s8 %v2851
    %v2853 = vlaneseq
    %v2854 = vshrl.u32 %v2853, 7
    %v2855 = vsub.s32 %v2852, %v2854
    %v2856 = vrot.slane %v2834, %v2855
    %v2858 = vunpack.c.l.s4 1966171168
    %v2859 = vunpack.c.0.s8 %v2858
    %v2860 = vlaneseq
    %v2861 = vshrl.u32 %v2860, 7
    %v2862 = vsub.s32 %v2859, %v2861
    %v2863 = vrot.slane %v2835, %v2862
    %v2864 = vcombine.low %v2842, %v2849
    %v2865 = vcombine.low %v2856, %v2863
    %v2867 = vunpack.c.l.s4 1966171168
    %v2868 = vunpack.c.0.s8 %v2867
    %v2869 = vlaneseq
    %v2870 = vshrl.u32 %v2869, 7
    %v2871 = vsub.s32 %v2868, %v2870
    %v2872 = vrot.slane %v2864, %v2871
    %v2874 = vunpack.c.l.s4 1966171168
    %v2875 = vunpack.c.0.s8 %v2874
    %v2876 = vlaneseq
    %v2877 = vshrl.u32 %v2876, 7
    %v2878 = vsub.s32 %v2875, %v2877
    %v2879 = vrot.slane %v2865, %v2878
    %v2880 = vcombine.low %v2872, %v2879
    %v2881 = vcombine.low %v2762, %v2777
    %v2882 = vcombine.low %v2784, %v2785
    %v2883 = vcombine.low %v2800, %v2807
    %v2884 = vcombine.low %v2808, %v2823
    %v2886 = vunpack.c.l.s4 1966171168
    %v2887 = vunpack.c.0.s8 %v2886
    %v2888 = vlaneseq
    %v2889 = vshrl.u32 %v2888, 7
    %v2890 = vsub.s32 %v2887, %v2889
    %v2891 = vrot.slane %v2881, %v2890
    %v2893 = vunpack.c.l.s4 1966171168
    %v2894 = vunpack.c.0.s8 %v2893
    %v2895 = vlaneseq
    %v2896 = vshrl.u32 %v2895, 7
    %v2897 = vsub.s32 %v2894, %v2896
    %v2898 = vrot.slane %v2882, %v2897
    %v2900 = vunpack.c.l.s4 1966171168
    %v2901 = vunpack.c.0.s8 %v2900
    %v2902 = vlaneseq
    %v2903 = vshrl.u32 %v2902, 7
    %v2904 = vsub.s32 %v2901, %v2903
    %v2905 = vrot.slane %v2883, %v2904
    %v2907 = vunpack.c.l.s4 1966171168
    %v2908 = vunpack.c.0.s8 %v2907
    %v2909 = vlaneseq
    %v2910 = vshrl.u32 %v2909, 7
    %v2911 = vsub.s32 %v2908, %v2910
    %v2912 = vrot.slane %v2884, %v2911
    %v2913 = vcombine.low %v2891, %v2898
    %v2914 = vcombine.low %v2905, %v2912
    %v2916 = vunpack.c.l.s4 1966171168
    %v2917 = vunpack.c.0.s8 %v2916
    %v2918 = vlaneseq
    %v2919 = vshrl.u32 %v2918, 7
    %v2920 = vsub.s32 %v2917, %v2919
    %v2921 = vrot.slane %v2913, %v2920
    %v2923 = vunpack.c.l.s4 1966171168
    %v2924 = vunpack.c.0.s8 %v2923
    %v2925 = vlaneseq
    %v2926 = vshrl.u32 %v2925, 7
    %v2927 = vsub.s32 %v2924, %v2926
    %v2928 = vrot.slane %v2914, %v2927
    %v2929 = vcombine.low %v2921, %v2928
    %v2930 = vcombine.low %v2830, %v2831
    %v2932 = vunpack.c.l.s4 1966171168
    %v2933 = vunpack.c.0.s8 %v2932
    %v2934 = vlaneseq
    %v2935 = vshrl.u32 %v2934, 7
    %v2936 = vsub.s32 %v2933, %v2935
    %v2937 = vrot.slane %v2930, %v2936
    %v2939 = vunpack.c.l.s4 1966171168
    %v2940 = vunpack.c.0.s8 %v2939
    %v2941 = vlaneseq
    %v2942 = vshrl.u32 %v2941, 7
    %v2943 = vsub.s32 %v2940, %v2942
    %v2944 = vrot.slane %v2937, %v2943
    %v2948 = vpack.c.bf16 %v2929, %v2880
    %v2949 = vpack.c.bf16 %v2944, %v2944
    %v2950 = vld [vmem:[%s1 + $0xe0] sm:$0xf]
    %v2951 = vld [vmem:[%s1 + $0xe4] sm:$0xf]
    %v2952 = vld [vmem:[%s1 + $0xe8] sm:$0xf]
    %v2953 = vld [vmem:[%s1 + $0xec] sm:$0xf]
    %v2958 = vunpack.c.l.b16 %v2950
    %v2959 = vunpack.c.l.b16 %v2951
    %v2960 = vunpack.c.l.b16 %v2952
    %v2961 = vunpack.c.l.b16 %v2953
    %v2962 = vpack.c.b16 %v2959, %v2958
    %v2963 = vpack.c.b16 %v2961, %v2960
    %v2967 = vsel %vm1089, %v2948, 0
    %v2970 = vsel %vm1089, %v2949, 0
    %2972 = vmatprep.subr.bf16.mxu0 0
    %2973 = vmatpush1.bf16.msra.mxu0 0
    %2974 = vmatprep.subr.bf16.mxu0 0
    %2975 = vmatpush1.bf16.msra.mxu0 0
    %2976 = vmatprep.subr.bf16.mxu0 0
    %2977 = vmatpush1.bf16.msra.mxu0 0
    %2978 = vmatprep.subr.bf16.mxu0 0
    %2979 = vmatpush1.bf16.msra.mxu0 0
    %2980 = vmatprep.subr.bf16.mxu0 0
    %2981 = vmatpush1.bf16.msra.mxu0 0
    %2982 = vmatprep.subr.bf16.mxu0 0
    %2983 = vmatpush1.bf16.msra.mxu0 0
    %2984 = vmatprep.subr.bf16.mxu0 0
    %2985 = vmatpush1.bf16.msra.mxu0 %v2963
    %2986 = vmatprep.subr.bf16.mxu0 0
    %2987 = vmatpush1.bf16.msra.mxu0 %v2962
    %2988 = vmatprep.subr.bf16.mxu0 0
    %2989 = vmatpush2.bf16.msra.mxu0 0
    %2990 = vmatprep.subr.bf16.mxu0 0
    %2991 = vmatpush2.bf16.msra.mxu0 0
    %2992 = vmatprep.subr.bf16.mxu0 0
    %2993 = vmatpush2.bf16.msra.mxu0 0
    %2994 = vmatprep.subr.bf16.mxu0 0
    %2995 = vmatpush2.bf16.msra.mxu0 0
    %2996 = vmatprep.subr.bf16.mxu0 0
    %2997 = vmatpush2.bf16.msra.mxu0 0
    %2998 = vmatprep.subr.bf16.mxu0 0
    %2999 = vmatpush2.bf16.msra.mxu0 0
    %3000 = vmatprep.subr.bf16.mxu0 0
    %3001 = vmatpush2.bf16.msra.mxu0 0
    %3002 = vmatprep.subr.bf16.mxu0 0
    %3003 = vmatpush2.bf16.msra.mxu0 0
    %3004 = vmatprep.mubr.bf16.mxu0 0
    %3005 = vmatmul.mubr.bf16.gmra.mxu0 %v2967
    %v3006 = vpop.f32.mrf.mxu0
    %v3007 = vadd.f32 0.0, %v3006
    %v3008 = vpop.f32.mrf.mxu0
    %v3009 = vpop.f32.mrf.mxu0
    %v3010 = vadd.f32 0.0, %v3009
    %v3011 = vpop.f32.mrf.mxu0
    %3012 = vmatprep.mubr.bf16.mxu0 0
    %3013 = vmatmul.mubr.bf16.gmra.mxu0 %v2970
    %v3014 = vpop.f32.mrf.mxu0
    %v3015 = vadd.f32 0.0, %v3014
    %v3016 = vpop.f32.mrf.mxu0
    %v3017 = vpop.f32.mrf.mxu0
    %v3018 = vpop.f32.mrf.mxu0
    %3019 = vdwg.mxu0
    %v3020 = vadd.f32 %v2661, %v3007
    %v3021 = vadd.f32 %v2662, %v3010
    %v3022 = vadd.f32 %v2663, %v3015
    %v3023 = vrot.slane %v462, 5
    %v3024 = vrot.slane %v464, 5
    %v3025 = vrot.slane %v466, 5
    %v3026 = vrot.slane %v470, 5
    %v3027 = vrot.slane %v472, 5
    %v3028 = vrot.slane %v474, 5
    %v3035 = vsel %vm507, %v2305, %v2664
    %v3036 = vsel %vm507, %v2306, %v2665
    %v3037 = vsel %vm507, %v2307, %v2666
    %v3038 = vsel %vm507, %v2308, %v2667
    %v3039 = vsel %vm507, %v2309, %v2668
    %v3040 = vsel %vm507, %v2310, %v2669
    %v3041 = vsel %vm514, %v3035, %v3023
    %v3042 = vsel %vm514, %v3036, %v3024
    %v3043 = vsel %vm514, %v3037, %v3025
    %v3044 = vsel %vm514, %v3038, %v3026
    %v3045 = vsel %vm514, %v3039, %v3027
    %v3046 = vsel %vm514, %v3040, %v3028
    %v3054 = vunpack.c.l.s4 1966171168
    %v3055 = vunpack.c.0.s8 %v3054
    %v3056 = vlaneseq
    %v3057 = vshrl.u32 %v3056, 7
    %v3058 = vsub.s32 %v3055, %v3057
    %v3059 = vrot.slane %v3041, %v3058
    %v3060 = vcombine.high %v3059, %v3059
    %v3062 = vunpack.c.l.s4 1966171168
    %v3063 = vunpack.c.0.s8 %v3062
    %v3064 = vlaneseq
    %v3065 = vshrl.u32 %v3064, 7
    %v3066 = vsub.s32 %v3063, %v3065
    %v3067 = vrot.slane %v3059, %v3066
    %v3069 = vunpack.c.l.s4 1966171168
    %v3070 = vunpack.c.0.s8 %v3069
    %v3071 = vlaneseq
    %v3072 = vshrl.u32 %v3071, 7
    %v3073 = vsub.s32 %v3070, %v3072
    %v3074 = vrot.slane %v3060, %v3073
    %v3075 = vcombine.high %v3067, %v3067
    %v3077 = vunpack.c.l.s4 1966171168
    %v3078 = vunpack.c.0.s8 %v3077
    %v3079 = vlaneseq
    %v3080 = vshrl.u32 %v3079, 7
    %v3081 = vsub.s32 %v3078, %v3080
    %v3082 = vrot.slane %v3042, %v3081
    %v3083 = vcombine.high %v3082, %v3082
    %v3085 = vunpack.c.l.s4 1966171168
    %v3086 = vunpack.c.0.s8 %v3085
    %v3087 = vlaneseq
    %v3088 = vshrl.u32 %v3087, 7
    %v3089 = vsub.s32 %v3086, %v3088
    %v3090 = vrot.slane %v3082, %v3089
    %v3092 = vunpack.c.l.s4 1966171168
    %v3093 = vunpack.c.0.s8 %v3092
    %v3094 = vlaneseq
    %v3095 = vshrl.u32 %v3094, 7
    %v3096 = vsub.s32 %v3093, %v3095
    %v3097 = vrot.slane %v3083, %v3096
    %v3098 = vcombine.high %v3090, %v3090
    %v3100 = vunpack.c.l.s4 1966171168
    %v3101 = vunpack.c.0.s8 %v3100
    %v3102 = vlaneseq
    %v3103 = vshrl.u32 %v3102, 7
    %v3104 = vsub.s32 %v3101, %v3103
    %v3105 = vrot.slane %v3043, %v3104
    %v3106 = vcombine.high %v3105, %v3105
    %v3108 = vunpack.c.l.s4 1966171168
    %v3109 = vunpack.c.0.s8 %v3108
    %v3110 = vlaneseq
    %v3111 = vshrl.u32 %v3110, 7
    %v3112 = vsub.s32 %v3109, %v3111
    %v3113 = vrot.slane %v3105, %v3112
    %v3115 = vunpack.c.l.s4 1966171168
    %v3116 = vunpack.c.0.s8 %v3115
    %v3117 = vlaneseq
    %v3118 = vshrl.u32 %v3117, 7
    %v3119 = vsub.s32 %v3116, %v3118
    %v3120 = vrot.slane %v3106, %v3119
    %v3121 = vcombine.high %v3113, %v3113
    %v3123 = vunpack.c.l.s4 1966171168
    %v3124 = vunpack.c.0.s8 %v3123
    %v3125 = vlaneseq
    %v3126 = vshrl.u32 %v3125, 7
    %v3127 = vsub.s32 %v3124, %v3126
    %v3128 = vrot.slane %v3044, %v3127
    %v3129 = vcombine.high %v3128, %v3128
    %v3131 = vunpack.c.l.s4 1966171168
    %v3132 = vunpack.c.0.s8 %v3131
    %v3133 = vlaneseq
    %v3134 = vshrl.u32 %v3133, 7
    %v3135 = vsub.s32 %v3132, %v3134
    %v3136 = vrot.slane %v3128, %v3135
    %v3138 = vunpack.c.l.s4 1966171168
    %v3139 = vunpack.c.0.s8 %v3138
    %v3140 = vlaneseq
    %v3141 = vshrl.u32 %v3140, 7
    %v3142 = vsub.s32 %v3139, %v3141
    %v3143 = vrot.slane %v3129, %v3142
    %v3144 = vcombine.high %v3136, %v3136
    %v3146 = vunpack.c.l.s4 1966171168
    %v3147 = vunpack.c.0.s8 %v3146
    %v3148 = vlaneseq
    %v3149 = vshrl.u32 %v3148, 7
    %v3150 = vsub.s32 %v3147, %v3149
    %v3151 = vrot.slane %v3045, %v3150
    %v3152 = vcombine.high %v3151, %v3151
    %v3154 = vunpack.c.l.s4 1966171168
    %v3155 = vunpack.c.0.s8 %v3154
    %v3156 = vlaneseq
    %v3157 = vshrl.u32 %v3156, 7
    %v3158 = vsub.s32 %v3155, %v3157
    %v3159 = vrot.slane %v3151, %v3158
    %v3161 = vunpack.c.l.s4 1966171168
    %v3162 = vunpack.c.0.s8 %v3161
    %v3163 = vlaneseq
    %v3164 = vshrl.u32 %v3163, 7
    %v3165 = vsub.s32 %v3162, %v3164
    %v3166 = vrot.slane %v3152, %v3165
    %v3167 = vcombine.high %v3159, %v3159
    %v3169 = vunpack.c.l.s4 1966171168
    %v3170 = vunpack.c.0.s8 %v3169
    %v3171 = vlaneseq
    %v3172 = vshrl.u32 %v3171, 7
    %v3173 = vsub.s32 %v3170, %v3172
    %v3174 = vrot.slane %v3046, %v3173
    %v3175 = vcombine.high %v3174, %v3174
    %v3177 = vunpack.c.l.s4 1966171168
    %v3178 = vunpack.c.0.s8 %v3177
    %v3179 = vlaneseq
    %v3180 = vshrl.u32 %v3179, 7
    %v3181 = vsub.s32 %v3178, %v3180
    %v3182 = vrot.slane %v3174, %v3181
    %v3184 = vunpack.c.l.s4 1966171168
    %v3185 = vunpack.c.0.s8 %v3184
    %v3186 = vlaneseq
    %v3187 = vshrl.u32 %v3186, 7
    %v3188 = vsub.s32 %v3185, %v3187
    %v3189 = vrot.slane %v3175, %v3188
    %v3190 = vcombine.high %v3182, %v3182
    %v3191 = vcombine.low %v3067, %v3074
    %v3192 = vcombine.low %v3075, %v3090
    %v3193 = vcombine.low %v3097, %v3098
    %v3194 = vcombine.low %v3113, %v3120
    %v3196 = vunpack.c.l.s4 1966171168
    %v3197 = vunpack.c.0.s8 %v3196
    %v3198 = vlaneseq
    %v3199 = vshrl.u32 %v3198, 7
    %v3200 = vsub.s32 %v3197, %v3199
    %v3201 = vrot.slane %v3191, %v3200
    %v3203 = vunpack.c.l.s4 1966171168
    %v3204 = vunpack.c.0.s8 %v3203
    %v3205 = vlaneseq
    %v3206 = vshrl.u32 %v3205, 7
    %v3207 = vsub.s32 %v3204, %v3206
    %v3208 = vrot.slane %v3192, %v3207
    %v3210 = vunpack.c.l.s4 1966171168
    %v3211 = vunpack.c.0.s8 %v3210
    %v3212 = vlaneseq
    %v3213 = vshrl.u32 %v3212, 7
    %v3214 = vsub.s32 %v3211, %v3213
    %v3215 = vrot.slane %v3193, %v3214
    %v3217 = vunpack.c.l.s4 1966171168
    %v3218 = vunpack.c.0.s8 %v3217
    %v3219 = vlaneseq
    %v3220 = vshrl.u32 %v3219, 7
    %v3221 = vsub.s32 %v3218, %v3220
    %v3222 = vrot.slane %v3194, %v3221
    %v3223 = vcombine.low %v3201, %v3208
    %v3224 = vcombine.low %v3215, %v3222
    %v3226 = vunpack.c.l.s4 1966171168
    %v3227 = vunpack.c.0.s8 %v3226
    %v3228 = vlaneseq
    %v3229 = vshrl.u32 %v3228, 7
    %v3230 = vsub.s32 %v3227, %v3229
    %v3231 = vrot.slane %v3223, %v3230
    %v3233 = vunpack.c.l.s4 1966171168
    %v3234 = vunpack.c.0.s8 %v3233
    %v3235 = vlaneseq
    %v3236 = vshrl.u32 %v3235, 7
    %v3237 = vsub.s32 %v3234, %v3236
    %v3238 = vrot.slane %v3224, %v3237
    %v3239 = vcombine.low %v3231, %v3238
    %v3240 = vcombine.low %v3121, %v3136
    %v3241 = vcombine.low %v3143, %v3144
    %v3242 = vcombine.low %v3159, %v3166
    %v3243 = vcombine.low %v3167, %v3182
    %v3245 = vunpack.c.l.s4 1966171168
    %v3246 = vunpack.c.0.s8 %v3245
    %v3247 = vlaneseq
    %v3248 = vshrl.u32 %v3247, 7
    %v3249 = vsub.s32 %v3246, %v3248
    %v3250 = vrot.slane %v3240, %v3249
    %v3252 = vunpack.c.l.s4 1966171168
    %v3253 = vunpack.c.0.s8 %v3252
    %v3254 = vlaneseq
    %v3255 = vshrl.u32 %v3254, 7
    %v3256 = vsub.s32 %v3253, %v3255
    %v3257 = vrot.slane %v3241, %v3256
    %v3259 = vunpack.c.l.s4 1966171168
    %v3260 = vunpack.c.0.s8 %v3259
    %v3261 = vlaneseq
    %v3262 = vshrl.u32 %v3261, 7
    %v3263 = vsub.s32 %v3260, %v3262
    %v3264 = vrot.slane %v3242, %v3263
    %v3266 = vunpack.c.l.s4 1966171168
    %v3267 = vunpack.c.0.s8 %v3266
    %v3268 = vlaneseq
    %v3269 = vshrl.u32 %v3268, 7
    %v3270 = vsub.s32 %v3267, %v3269
    %v3271 = vrot.slane %v3243, %v3270
    %v3272 = vcombine.low %v3250, %v3257
    %v3273 = vcombine.low %v3264, %v3271
    %v3275 = vunpack.c.l.s4 1966171168
    %v3276 = vunpack.c.0.s8 %v3275
    %v3277 = vlaneseq
    %v3278 = vshrl.u32 %v3277, 7
    %v3279 = vsub.s32 %v3276, %v3278
    %v3280 = vrot.slane %v3272, %v3279
    %v3282 = vunpack.c.l.s4 1966171168
    %v3283 = vunpack.c.0.s8 %v3282
    %v3284 = vlaneseq
    %v3285 = vshrl.u32 %v3284, 7
    %v3286 = vsub.s32 %v3283, %v3285
    %v3287 = vrot.slane %v3273, %v3286
    %v3288 = vcombine.low %v3280, %v3287
    %v3289 = vcombine.low %v3189, %v3190
    %v3291 = vunpack.c.l.s4 1966171168
    %v3292 = vunpack.c.0.s8 %v3291
    %v3293 = vlaneseq
    %v3294 = vshrl.u32 %v3293, 7
    %v3295 = vsub.s32 %v3292, %v3294
    %v3296 = vrot.slane %v3289, %v3295
    %v3298 = vunpack.c.l.s4 1966171168
    %v3299 = vunpack.c.0.s8 %v3298
    %v3300 = vlaneseq
    %v3301 = vshrl.u32 %v3300, 7
    %v3302 = vsub.s32 %v3299, %v3301
    %v3303 = vrot.slane %v3296, %v3302
    %v3307 = vpack.c.bf16 %v3288, %v3239
    %v3308 = vpack.c.bf16 %v3303, %v3303
    %v3309 = vld [vmem:[%s1 + $0xf0] sm:$0xf]
    %v3310 = vld [vmem:[%s1 + $0xf4] sm:$0xf]
    %v3311 = vld [vmem:[%s1 + $0xf8] sm:$0xf]
    %v3312 = vld [vmem:[%s1 + $0xfc] sm:$0xf]
    %v3317 = vunpack.c.l.b16 %v3309
    %v3318 = vunpack.c.l.b16 %v3310
    %v3319 = vunpack.c.l.b16 %v3311
    %v3320 = vunpack.c.l.b16 %v3312
    %v3321 = vpack.c.b16 %v3318, %v3317
    %v3322 = vpack.c.b16 %v3320, %v3319
    %v3326 = vsel %vm1089, %v3307, 0
    %v3329 = vsel %vm1089, %v3308, 0
    %3331 = vmatprep.subr.bf16.mxu0 0
    %3332 = vmatpush1.bf16.msra.mxu0 0
    %3333 = vmatprep.subr.bf16.mxu0 0
    %3334 = vmatpush1.bf16.msra.mxu0 0
    %3335 = vmatprep.subr.bf16.mxu0 0
    %3336 = vmatpush1.bf16.msra.mxu0 0
    %3337 = vmatprep.subr.bf16.mxu0 0
    %3338 = vmatpush1.bf16.msra.mxu0 0
    %3339 = vmatprep.subr.bf16.mxu0 0
    %3340 = vmatpush1.bf16.msra.mxu0 0
    %3341 = vmatprep.subr.bf16.mxu0 0
    %3342 = vmatpush1.bf16.msra.mxu0 0
    %3343 = vmatprep.subr.bf16.mxu0 0
    %3344 = vmatpush1.bf16.msra.mxu0 %v3322
    %3345 = vmatprep.subr.bf16.mxu0 0
    %3346 = vmatpush1.bf16.msra.mxu0 %v3321
    %3347 = vmatprep.subr.bf16.mxu0 0
    %3348 = vmatpush2.bf16.msra.mxu0 0
    %3349 = vmatprep.subr.bf16.mxu0 0
    %3350 = vmatpush2.bf16.msra.mxu0 0
    %3351 = vmatprep.subr.bf16.mxu0 0
    %3352 = vmatpush2.bf16.msra.mxu0 0
    %3353 = vmatprep.subr.bf16.mxu0 0
    %3354 = vmatpush2.bf16.msra.mxu0 0
    %3355 = vmatprep.subr.bf16.mxu0 0
    %3356 = vmatpush2.bf16.msra.mxu0 0
    %3357 = vmatprep.subr.bf16.mxu0 0
    %3358 = vmatpush2.bf16.msra.mxu0 0
    %3359 = vmatprep.subr.bf16.mxu0 0
    %3360 = vmatpush2.bf16.msra.mxu0 0
    %3361 = vmatprep.subr.bf16.mxu0 0
    %3362 = vmatpush2.bf16.msra.mxu0 0
    %3363 = vmatprep.mubr.bf16.mxu0 0
    %3364 = vmatmul.mubr.bf16.gmra.mxu0 %v3326
    %v3365 = vpop.f32.mrf.mxu0
    %v3366 = vadd.f32 0.0, %v3365
    %v3367 = vpop.f32.mrf.mxu0
    %v3368 = vpop.f32.mrf.mxu0
    %v3369 = vadd.f32 0.0, %v3368
    %v3370 = vpop.f32.mrf.mxu0
    %3371 = vmatprep.mubr.bf16.mxu0 0
    %3372 = vmatmul.mubr.bf16.gmra.mxu0 %v3329
    %v3373 = vpop.f32.mrf.mxu0
    %v3374 = vadd.f32 0.0, %v3373
    %v3375 = vpop.f32.mrf.mxu0
    %v3376 = vpop.f32.mrf.mxu0
    %v3377 = vpop.f32.mrf.mxu0
    %3378 = vdwg.mxu0
    %v3379 = vadd.f32 %v3020, %v3366
    %v3380 = vadd.f32 %v3021, %v3369
    %v3381 = vadd.f32 %v3022, %v3374
    %v3384 = vrot.slane %v467, 1
    %v3385 = vrot.slane %v475, 1
    %v3388 = vrot.slane %v467, 2
    %v3389 = vrot.slane %v475, 2
    %v3392 = vsel %vm507, %v467, %v3384
    %v3393 = vsel %vm507, %v475, %v3385
    %v3394 = vsel %vm514, %v3392, %v3388
    %v3395 = vsel %vm514, %v3393, %v3389
    %v3399 = vunpack.c.l.s4 1966171168
    %v3400 = vunpack.c.0.s8 %v3399
    %v3401 = vlaneseq
    %v3402 = vshrl.u32 %v3401, 7
    %v3403 = vsub.s32 %v3400, %v3402
    %v3404 = vrot.slane %v3394, %v3403
    %v3405 = vcombine.high %v3404, %v3404
    %v3407 = vunpack.c.l.s4 1966171168
    %v3408 = vunpack.c.0.s8 %v3407
    %v3409 = vlaneseq
    %v3410 = vshrl.u32 %v3409, 7
    %v3411 = vsub.s32 %v3408, %v3410
    %v3412 = vrot.slane %v3404, %v3411
    %v3414 = vunpack.c.l.s4 1966171168
    %v3415 = vunpack.c.0.s8 %v3414
    %v3416 = vlaneseq
    %v3417 = vshrl.u32 %v3416, 7
    %v3418 = vsub.s32 %v3415, %v3417
    %v3419 = vrot.slane %v3405, %v3418
    %v3420 = vcombine.high %v3412, %v3412
    %v3422 = vunpack.c.l.s4 1966171168
    %v3423 = vunpack.c.0.s8 %v3422
    %v3424 = vlaneseq
    %v3425 = vshrl.u32 %v3424, 7
    %v3426 = vsub.s32 %v3423, %v3425
    %v3427 = vrot.slane %v3395, %v3426
    %v3428 = vcombine.high %v3427, %v3427
    %v3430 = vunpack.c.l.s4 1966171168
    %v3431 = vunpack.c.0.s8 %v3430
    %v3432 = vlaneseq
    %v3433 = vshrl.u32 %v3432, 7
    %v3434 = vsub.s32 %v3431, %v3433
    %v3435 = vrot.slane %v3427, %v3434
    %v3437 = vunpack.c.l.s4 1966171168
    %v3438 = vunpack.c.0.s8 %v3437
    %v3439 = vlaneseq
    %v3440 = vshrl.u32 %v3439, 7
    %v3441 = vsub.s32 %v3438, %v3440
    %v3442 = vrot.slane %v3428, %v3441
    %v3443 = vcombine.high %v3435, %v3435
    %v3444 = vcombine.low %v564, %v571
    %v3445 = vcombine.low %v572, %v587
    %v3446 = vcombine.low %v594, %v595
    %v3447 = vcombine.low %v3412, %v3419
    %v3449 = vunpack.c.l.s4 1966171168
    %v3450 = vunpack.c.0.s8 %v3449
    %v3451 = vlaneseq
    %v3452 = vshrl.u32 %v3451, 7
    %v3453 = vsub.s32 %v3450, %v3452
    %v3454 = vrot.slane %v3444, %v3453
    %v3456 = vunpack.c.l.s4 1966171168
    %v3457 = vunpack.c.0.s8 %v3456
    %v3458 = vlaneseq
    %v3459 = vshrl.u32 %v3458, 7
    %v3460 = vsub.s32 %v3457, %v3459
    %v3461 = vrot.slane %v3445, %v3460
    %v3463 = vunpack.c.l.s4 1966171168
    %v3464 = vunpack.c.0.s8 %v3463
    %v3465 = vlaneseq
    %v3466 = vshrl.u32 %v3465, 7
    %v3467 = vsub.s32 %v3464, %v3466
    %v3468 = vrot.slane %v3446, %v3467
    %v3470 = vunpack.c.l.s4 1966171168
    %v3471 = vunpack.c.0.s8 %v3470
    %v3472 = vlaneseq
    %v3473 = vshrl.u32 %v3472, 7
    %v3474 = vsub.s32 %v3471, %v3473
    %v3475 = vrot.slane %v3447, %v3474
    %v3476 = vcombine.low %v3454, %v3461
    %v3477 = vcombine.low %v3468, %v3475
    %v3479 = vunpack.c.l.s4 1966171168
    %v3480 = vunpack.c.0.s8 %v3479
    %v3481 = vlaneseq
    %v3482 = vshrl.u32 %v3481, 7
    %v3483 = vsub.s32 %v3480, %v3482
    %v3484 = vrot.slane %v3476, %v3483
    %v3486 = vunpack.c.l.s4 1966171168
    %v3487 = vunpack.c.0.s8 %v3486
    %v3488 = vlaneseq
    %v3489 = vshrl.u32 %v3488, 7
    %v3490 = vsub.s32 %v3487, %v3489
    %v3491 = vrot.slane %v3477, %v3490
    %v3492 = vcombine.low %v3484, %v3491
    %v3493 = vcombine.low %v3420, %v633
    %v3494 = vcombine.low %v640, %v641
    %v3495 = vcombine.low %v656, %v663
    %v3496 = vcombine.low %v664, %v3435
    %v3498 = vunpack.c.l.s4 1966171168
    %v3499 = vunpack.c.0.s8 %v3498
    %v3500 = vlaneseq
    %v3501 = vshrl.u32 %v3500, 7
    %v3502 = vsub.s32 %v3499, %v3501
    %v3503 = vrot.slane %v3493, %v3502
    %v3505 = vunpack.c.l.s4 1966171168
    %v3506 = vunpack.c.0.s8 %v3505
    %v3507 = vlaneseq
    %v3508 = vshrl.u32 %v3507, 7
    %v3509 = vsub.s32 %v3506, %v3508
    %v3510 = vrot.slane %v3494, %v3509
    %v3512 = vunpack.c.l.s4 1966171168
    %v3513 = vunpack.c.0.s8 %v3512
    %v3514 = vlaneseq
    %v3515 = vshrl.u32 %v3514, 7
    %v3516 = vsub.s32 %v3513, %v3515
    %v3517 = vrot.slane %v3495, %v3516
    %v3519 = vunpack.c.l.s4 1966171168
    %v3520 = vunpack.c.0.s8 %v3519
    %v3521 = vlaneseq
    %v3522 = vshrl.u32 %v3521, 7
    %v3523 = vsub.s32 %v3520, %v3522
    %v3524 = vrot.slane %v3496, %v3523
    %v3525 = vcombine.low %v3503, %v3510
    %v3526 = vcombine.low %v3517, %v3524
    %v3528 = vunpack.c.l.s4 1966171168
    %v3529 = vunpack.c.0.s8 %v3528
    %v3530 = vlaneseq
    %v3531 = vshrl.u32 %v3530, 7
    %v3532 = vsub.s32 %v3529, %v3531
    %v3533 = vrot.slane %v3525, %v3532
    %v3535 = vunpack.c.l.s4 1966171168
    %v3536 = vunpack.c.0.s8 %v3535
    %v3537 = vlaneseq
    %v3538 = vshrl.u32 %v3537, 7
    %v3539 = vsub.s32 %v3536, %v3538
    %v3540 = vrot.slane %v3526, %v3539
    %v3541 = vcombine.low %v3533, %v3540
    %v3542 = vcombine.low %v3442, %v3443
    %v3544 = vunpack.c.l.s4 1966171168
    %v3545 = vunpack.c.0.s8 %v3544
    %v3546 = vlaneseq
    %v3547 = vshrl.u32 %v3546, 7
    %v3548 = vsub.s32 %v3545, %v3547
    %v3549 = vrot.slane %v3542, %v3548
    %v3551 = vunpack.c.l.s4 1966171168
    %v3552 = vunpack.c.0.s8 %v3551
    %v3553 = vlaneseq
    %v3554 = vshrl.u32 %v3553, 7
    %v3555 = vsub.s32 %v3552, %v3554
    %v3556 = vrot.slane %v3549, %v3555
    %v3560 = vpack.c.bf16 %v3541, %v3492
    %v3561 = vpack.c.bf16 %v3556, %v3556
    %v3562 = vld [vmem:[%s1 + $0x100] sm:$0xf]
    %v3563 = vld [vmem:[%s1 + $0x104] sm:$0xf]
    %v3564 = vld [vmem:[%s1 + $0x108] sm:$0xf]
    %v3565 = vld [vmem:[%s1 + $0x10c] sm:$0xf]
    %v3570 = vunpack.c.l.b16 %v3562
    %v3571 = vunpack.c.l.b16 %v3563
    %v3572 = vunpack.c.l.b16 %v3564
    %v3573 = vunpack.c.l.b16 %v3565
    %v3574 = vpack.c.b16 %v3571, %v3570
    %v3575 = vpack.c.b16 %v3573, %v3572
    %v3579 = vsel %vm1089, %v3560, 0
    %v3582 = vsel %vm1089, %v3561, 0
    %3584 = vmatprep.subr.bf16.mxu0 0
    %3585 = vmatpush1.bf16.msra.mxu0 0
    %3586 = vmatprep.subr.bf16.mxu0 0
    %3587 = vmatpush1.bf16.msra.mxu0 0
    %3588 = vmatprep.subr.bf16.mxu0 0
    %3589 = vmatpush1.bf16.msra.mxu0 0
    %3590 = vmatprep.subr.bf16.mxu0 0
    %3591 = vmatpush1.bf16.msra.mxu0 0
    %3592 = vmatprep.subr.bf16.mxu0 0
    %3593 = vmatpush1.bf16.msra.mxu0 0
    %3594 = vmatprep.subr.bf16.mxu0 0
    %3595 = vmatpush1.bf16.msra.mxu0 0
    %3596 = vmatprep.subr.bf16.mxu0 0
    %3597 = vmatpush1.bf16.msra.mxu0 %v3575
    %3598 = vmatprep.subr.bf16.mxu0 0
    %3599 = vmatpush1.bf16.msra.mxu0 %v3574
    %3600 = vmatprep.subr.bf16.mxu0 0
    %3601 = vmatpush2.bf16.msra.mxu0 0
    %3602 = vmatprep.subr.bf16.mxu0 0
    %3603 = vmatpush2.bf16.msra.mxu0 0
    %3604 = vmatprep.subr.bf16.mxu0 0
    %3605 = vmatpush2.bf16.msra.mxu0 0
    %3606 = vmatprep.subr.bf16.mxu0 0
    %3607 = vmatpush2.bf16.msra.mxu0 0
    %3608 = vmatprep.subr.bf16.mxu0 0
    %3609 = vmatpush2.bf16.msra.mxu0 0
    %3610 = vmatprep.subr.bf16.mxu0 0
    %3611 = vmatpush2.bf16.msra.mxu0 0
    %3612 = vmatprep.subr.bf16.mxu0 0
    %3613 = vmatpush2.bf16.msra.mxu0 0
    %3614 = vmatprep.subr.bf16.mxu0 0
    %3615 = vmatpush2.bf16.msra.mxu0 0
    %3616 = vmatprep.mubr.bf16.mxu0 0
    %3617 = vmatmul.mubr.bf16.gmra.mxu0 %v3579
    %v3618 = vpop.f32.mrf.mxu0
    %v3619 = vadd.f32 0.0, %v3618
    %v3620 = vpop.f32.mrf.mxu0
    %v3621 = vpop.f32.mrf.mxu0
    %v3622 = vadd.f32 0.0, %v3621
    %v3623 = vpop.f32.mrf.mxu0
    %3624 = vmatprep.mubr.bf16.mxu0 0
    %3625 = vmatmul.mubr.bf16.gmra.mxu0 %v3582
    %v3626 = vpop.f32.mrf.mxu0
    %v3627 = vadd.f32 0.0, %v3626
    %v3628 = vpop.f32.mrf.mxu0
    %v3629 = vpop.f32.mrf.mxu0
    %v3630 = vpop.f32.mrf.mxu0
    %3631 = vdwg.mxu0
    %v3632 = vadd.f32 %v3379, %v3619
    %v3633 = vadd.f32 %v3380, %v3622
    %v3634 = vadd.f32 %v3381, %v3627
    %v3635 = vrot.slane %v467, 3
    %v3636 = vrot.slane %v475, 3
    %v3639 = vsel %vm507, %v3384, %v3388
    %v3640 = vsel %vm507, %v3385, %v3389
    %v3641 = vsel %vm514, %v3639, %v3635
    %v3642 = vsel %vm514, %v3640, %v3636
    %v3646 = vunpack.c.l.s4 1966171168
    %v3647 = vunpack.c.0.s8 %v3646
    %v3648 = vlaneseq
    %v3649 = vshrl.u32 %v3648, 7
    %v3650 = vsub.s32 %v3647, %v3649
    %v3651 = vrot.slane %v3641, %v3650
    %v3652 = vcombine.high %v3651, %v3651
    %v3654 = vunpack.c.l.s4 1966171168
    %v3655 = vunpack.c.0.s8 %v3654
    %v3656 = vlaneseq
    %v3657 = vshrl.u32 %v3656, 7
    %v3658 = vsub.s32 %v3655, %v3657
    %v3659 = vrot.slane %v3651, %v3658
    %v3661 = vunpack.c.l.s4 1966171168
    %v3662 = vunpack.c.0.s8 %v3661
    %v3663 = vlaneseq
    %v3664 = vshrl.u32 %v3663, 7
    %v3665 = vsub.s32 %v3662, %v3664
    %v3666 = vrot.slane %v3652, %v3665
    %v3667 = vcombine.high %v3659, %v3659
    %v3669 = vunpack.c.l.s4 1966171168
    %v3670 = vunpack.c.0.s8 %v3669
    %v3671 = vlaneseq
    %v3672 = vshrl.u32 %v3671, 7
    %v3673 = vsub.s32 %v3670, %v3672
    %v3674 = vrot.slane %v3642, %v3673
    %v3675 = vcombine.high %v3674, %v3674
    %v3677 = vunpack.c.l.s4 1966171168
    %v3678 = vunpack.c.0.s8 %v3677
    %v3679 = vlaneseq
    %v3680 = vshrl.u32 %v3679, 7
    %v3681 = vsub.s32 %v3678, %v3680
    %v3682 = vrot.slane %v3674, %v3681
    %v3684 = vunpack.c.l.s4 1966171168
    %v3685 = vunpack.c.0.s8 %v3684
    %v3686 = vlaneseq
    %v3687 = vshrl.u32 %v3686, 7
    %v3688 = vsub.s32 %v3685, %v3687
    %v3689 = vrot.slane %v3675, %v3688
    %v3690 = vcombine.high %v3682, %v3682
    %v3691 = vcombine.low %v854, %v861
    %v3692 = vcombine.low %v862, %v877
    %v3693 = vcombine.low %v884, %v885
    %v3694 = vcombine.low %v3659, %v3666
    %v3696 = vunpack.c.l.s4 1966171168
    %v3697 = vunpack.c.0.s8 %v3696
    %v3698 = vlaneseq
    %v3699 = vshrl.u32 %v3698, 7
    %v3700 = vsub.s32 %v3697, %v3699
    %v3701 = vrot.slane %v3691, %v3700
    %v3703 = vunpack.c.l.s4 1966171168
    %v3704 = vunpack.c.0.s8 %v3703
    %v3705 = vlaneseq
    %v3706 = vshrl.u32 %v3705, 7
    %v3707 = vsub.s32 %v3704, %v3706
    %v3708 = vrot.slane %v3692, %v3707
    %v3710 = vunpack.c.l.s4 1966171168
    %v3711 = vunpack.c.0.s8 %v3710
    %v3712 = vlaneseq
    %v3713 = vshrl.u32 %v3712, 7
    %v3714 = vsub.s32 %v3711, %v3713
    %v3715 = vrot.slane %v3693, %v3714
    %v3717 = vunpack.c.l.s4 1966171168
    %v3718 = vunpack.c.0.s8 %v3717
    %v3719 = vlaneseq
    %v3720 = vshrl.u32 %v3719, 7
    %v3721 = vsub.s32 %v3718, %v3720
    %v3722 = vrot.slane %v3694, %v3721
    %v3723 = vcombine.low %v3701, %v3708
    %v3724 = vcombine.low %v3715, %v3722
    %v3726 = vunpack.c.l.s4 1966171168
    %v3727 = vunpack.c.0.s8 %v3726
    %v3728 = vlaneseq
    %v3729 = vshrl.u32 %v3728, 7
    %v3730 = vsub.s32 %v3727, %v3729
    %v3731 = vrot.slane %v3723, %v3730
    %v3733 = vunpack.c.l.s4 1966171168
    %v3734 = vunpack.c.0.s8 %v3733
    %v3735 = vlaneseq
    %v3736 = vshrl.u32 %v3735, 7
    %v3737 = vsub.s32 %v3734, %v3736
    %v3738 = vrot.slane %v3724, %v3737
    %v3739 = vcombine.low %v3731, %v3738
    %v3740 = vcombine.low %v3667, %v923
    %v3741 = vcombine.low %v930, %v931
    %v3742 = vcombine.low %v946, %v953
    %v3743 = vcombine.low %v954, %v3682
    %v3745 = vunpack.c.l.s4 1966171168
    %v3746 = vunpack.c.0.s8 %v3745
    %v3747 = vlaneseq
    %v3748 = vshrl.u32 %v3747, 7
    %v3749 = vsub.s32 %v3746, %v3748
    %v3750 = vrot.slane %v3740, %v3749
    %v3752 = vunpack.c.l.s4 1966171168
    %v3753 = vunpack.c.0.s8 %v3752
    %v3754 = vlaneseq
    %v3755 = vshrl.u32 %v3754, 7
    %v3756 = vsub.s32 %v3753, %v3755
    %v3757 = vrot.slane %v3741, %v3756
    %v3759 = vunpack.c.l.s4 1966171168
    %v3760 = vunpack.c.0.s8 %v3759
    %v3761 = vlaneseq
    %v3762 = vshrl.u32 %v3761, 7
    %v3763 = vsub.s32 %v3760, %v3762
    %v3764 = vrot.slane %v3742, %v3763
    %v3766 = vunpack.c.l.s4 1966171168
    %v3767 = vunpack.c.0.s8 %v3766
    %v3768 = vlaneseq
    %v3769 = vshrl.u32 %v3768, 7
    %v3770 = vsub.s32 %v3767, %v3769
    %v3771 = vrot.slane %v3743, %v3770
    %v3772 = vcombine.low %v3750, %v3757
    %v3773 = vcombine.low %v3764, %v3771
    %v3775 = vunpack.c.l.s4 1966171168
    %v3776 = vunpack.c.0.s8 %v3775
    %v3777 = vlaneseq
    %v3778 = vshrl.u32 %v3777, 7
    %v3779 = vsub.s32 %v3776, %v3778
    %v3780 = vrot.slane %v3772, %v3779
    %v3782 = vunpack.c.l.s4 1966171168
    %v3783 = vunpack.c.0.s8 %v3782
    %v3784 = vlaneseq
    %v3785 = vshrl.u32 %v3784, 7
    %v3786 = vsub.s32 %v3783, %v3785
    %v3787 = vrot.slane %v3773, %v3786
    %v3788 = vcombine.low %v3780, %v3787
    %v3789 = vcombine.low %v3689, %v3690
    %v3791 = vunpack.c.l.s4 1966171168
    %v3792 = vunpack.c.0.s8 %v3791
    %v3793 = vlaneseq
    %v3794 = vshrl.u32 %v3793, 7
    %v3795 = vsub.s32 %v3792, %v3794
    %v3796 = vrot.slane %v3789, %v3795
    %v3798 = vunpack.c.l.s4 1966171168
    %v3799 = vunpack.c.0.s8 %v3798
    %v3800 = vlaneseq
    %v3801 = vshrl.u32 %v3800, 7
    %v3802 = vsub.s32 %v3799, %v3801
    %v3803 = vrot.slane %v3796, %v3802
    %v3807 = vpack.c.bf16 %v3788, %v3739
    %v3808 = vpack.c.bf16 %v3803, %v3803
    %v3809 = vld [vmem:[%s1 + $0x110] sm:$0xf]
    %v3810 = vld [vmem:[%s1 + $0x114] sm:$0xf]
    %v3811 = vld [vmem:[%s1 + $0x118] sm:$0xf]
    %v3812 = vld [vmem:[%s1 + $0x11c] sm:$0xf]
    %v3817 = vunpack.c.l.b16 %v3809
    %v3818 = vunpack.c.l.b16 %v3810
    %v3819 = vunpack.c.l.b16 %v3811
    %v3820 = vunpack.c.l.b16 %v3812
    %v3821 = vpack.c.b16 %v3818, %v3817
    %v3822 = vpack.c.b16 %v3820, %v3819
    %v3826 = vsel %vm1089, %v3807, 0
    %v3829 = vsel %vm1089, %v3808, 0
    %3831 = vmatprep.subr.bf16.mxu0 0
    %3832 = vmatpush1.bf16.msra.mxu0 0
    %3833 = vmatprep.subr.bf16.mxu0 0
    %3834 = vmatpush1.bf16.msra.mxu0 0
    %3835 = vmatprep.subr.bf16.mxu0 0
    %3836 = vmatpush1.bf16.msra.mxu0 0
    %3837 = vmatprep.subr.bf16.mxu0 0
    %3838 = vmatpush1.bf16.msra.mxu0 0
    %3839 = vmatprep.subr.bf16.mxu0 0
    %3840 = vmatpush1.bf16.msra.mxu0 0
    %3841 = vmatprep.subr.bf16.mxu0 0
    %3842 = vmatpush1.bf16.msra.mxu0 0
    %3843 = vmatprep.subr.bf16.mxu0 0
    %3844 = vmatpush1.bf16.msra.mxu0 %v3822
    %3845 = vmatprep.subr.bf16.mxu0 0
    %3846 = vmatpush1.bf16.msra.mxu0 %v3821
    %3847 = vmatprep.subr.bf16.mxu0 0
    %3848 = vmatpush2.bf16.msra.mxu0 0
    %3849 = vmatprep.subr.bf16.mxu0 0
    %3850 = vmatpush2.bf16.msra.mxu0 0
    %3851 = vmatprep.subr.bf16.mxu0 0
    %3852 = vmatpush2.bf16.msra.mxu0 0
    %3853 = vmatprep.subr.bf16.mxu0 0
    %3854 = vmatpush2.bf16.msra.mxu0 0
    %3855 = vmatprep.subr.bf16.mxu0 0
    %3856 = vmatpush2.bf16.msra.mxu0 0
    %3857 = vmatprep.subr.bf16.mxu0 0
    %3858 = vmatpush2.bf16.msra.mxu0 0
    %3859 = vmatprep.subr.bf16.mxu0 0
    %3860 = vmatpush2.bf16.msra.mxu0 0
    %3861 = vmatprep.subr.bf16.mxu0 0
    %3862 = vmatpush2.bf16.msra.mxu0 0
    %3863 = vmatprep.mubr.bf16.mxu0 0
    %3864 = vmatmul.mubr.bf16.gmra.mxu0 %v3826
    %v3865 = vpop.f32.mrf.mxu0
    %v3866 = vadd.f32 0.0, %v3865
    %v3867 = vpop.f32.mrf.mxu0
    %v3868 = vpop.f32.mrf.mxu0
    %v3869 = vadd.f32 0.0, %v3868
    %v3870 = vpop.f32.mrf.mxu0
    %3871 = vmatprep.mubr.bf16.mxu0 0
    %3872 = vmatmul.mubr.bf16.gmra.mxu0 %v3829
    %v3873 = vpop.f32.mrf.mxu0
    %v3874 = vadd.f32 0.0, %v3873
    %v3875 = vpop.f32.mrf.mxu0
    %v3876 = vpop.f32.mrf.mxu0
    %v3877 = vpop.f32.mrf.mxu0
    %3878 = vdwg.mxu0
    %v3879 = vadd.f32 %v3632, %v3866
    %v3880 = vadd.f32 %v3633, %v3869
    %v3881 = vadd.f32 %v3634, %v3874
    %v3882 = vrot.slane %v467, 4
    %v3883 = vrot.slane %v475, 4
    %v3886 = vsel %vm507, %v3388, %v3635
    %v3887 = vsel %vm507, %v3389, %v3636
    %v3888 = vsel %vm514, %v3886, %v3882
    %v3889 = vsel %vm514, %v3887, %v3883
    %v3893 = vunpack.c.l.s4 1966171168
    %v3894 = vunpack.c.0.s8 %v3893
    %v3895 = vlaneseq
    %v3896 = vshrl.u32 %v3895, 7
    %v3897 = vsub.s32 %v3894, %v3896
    %v3898 = vrot.slane %v3888, %v3897
    %v3899 = vcombine.high %v3898, %v3898
    %v3901 = vunpack.c.l.s4 1966171168
    %v3902 = vunpack.c.0.s8 %v3901
    %v3903 = vlaneseq
    %v3904 = vshrl.u32 %v3903, 7
    %v3905 = vsub.s32 %v3902, %v3904
    %v3906 = vrot.slane %v3898, %v3905
    %v3908 = vunpack.c.l.s4 1966171168
    %v3909 = vunpack.c.0.s8 %v3908
    %v3910 = vlaneseq
    %v3911 = vshrl.u32 %v3910, 7
    %v3912 = vsub.s32 %v3909, %v3911
    %v3913 = vrot.slane %v3899, %v3912
    %v3914 = vcombine.high %v3906, %v3906
    %v3916 = vunpack.c.l.s4 1966171168
    %v3917 = vunpack.c.0.s8 %v3916
    %v3918 = vlaneseq
    %v3919 = vshrl.u32 %v3918, 7
    %v3920 = vsub.s32 %v3917, %v3919
    %v3921 = vrot.slane %v3889, %v3920
    %v3922 = vcombine.high %v3921, %v3921
    %v3924 = vunpack.c.l.s4 1966171168
    %v3925 = vunpack.c.0.s8 %v3924
    %v3926 = vlaneseq
    %v3927 = vshrl.u32 %v3926, 7
    %v3928 = vsub.s32 %v3925, %v3927
    %v3929 = vrot.slane %v3921, %v3928
    %v3931 = vunpack.c.l.s4 1966171168
    %v3932 = vunpack.c.0.s8 %v3931
    %v3933 = vlaneseq
    %v3934 = vshrl.u32 %v3933, 7
    %v3935 = vsub.s32 %v3932, %v3934
    %v3936 = vrot.slane %v3922, %v3935
    %v3937 = vcombine.high %v3929, %v3929
    %v3938 = vcombine.low %v1277, %v1284
    %v3939 = vcombine.low %v1285, %v1300
    %v3940 = vcombine.low %v1307, %v1308
    %v3941 = vcombine.low %v3906, %v3913
    %v3943 = vunpack.c.l.s4 1966171168
    %v3944 = vunpack.c.0.s8 %v3943
    %v3945 = vlaneseq
    %v3946 = vshrl.u32 %v3945, 7
    %v3947 = vsub.s32 %v3944, %v3946
    %v3948 = vrot.slane %v3938, %v3947
    %v3950 = vunpack.c.l.s4 1966171168
    %v3951 = vunpack.c.0.s8 %v3950
    %v3952 = vlaneseq
    %v3953 = vshrl.u32 %v3952, 7
    %v3954 = vsub.s32 %v3951, %v3953
    %v3955 = vrot.slane %v3939, %v3954
    %v3957 = vunpack.c.l.s4 1966171168
    %v3958 = vunpack.c.0.s8 %v3957
    %v3959 = vlaneseq
    %v3960 = vshrl.u32 %v3959, 7
    %v3961 = vsub.s32 %v3958, %v3960
    %v3962 = vrot.slane %v3940, %v3961
    %v3964 = vunpack.c.l.s4 1966171168
    %v3965 = vunpack.c.0.s8 %v3964
    %v3966 = vlaneseq
    %v3967 = vshrl.u32 %v3966, 7
    %v3968 = vsub.s32 %v3965, %v3967
    %v3969 = vrot.slane %v3941, %v3968
    %v3970 = vcombine.low %v3948, %v3955
    %v3971 = vcombine.low %v3962, %v3969
    %v3973 = vunpack.c.l.s4 1966171168
    %v3974 = vunpack.c.0.s8 %v3973
    %v3975 = vlaneseq
    %v3976 = vshrl.u32 %v3975, 7
    %v3977 = vsub.s32 %v3974, %v3976
    %v3978 = vrot.slane %v3970, %v3977
    %v3980 = vunpack.c.l.s4 1966171168
    %v3981 = vunpack.c.0.s8 %v3980
    %v3982 = vlaneseq
    %v3983 = vshrl.u32 %v3982, 7
    %v3984 = vsub.s32 %v3981, %v3983
    %v3985 = vrot.slane %v3971, %v3984
    %v3986 = vcombine.low %v3978, %v3985
    %v3987 = vcombine.low %v3914, %v1346
    %v3988 = vcombine.low %v1353, %v1354
    %v3989 = vcombine.low %v1369, %v1376
    %v3990 = vcombine.low %v1377, %v3929
    %v3992 = vunpack.c.l.s4 1966171168
    %v3993 = vunpack.c.0.s8 %v3992
    %v3994 = vlaneseq
    %v3995 = vshrl.u32 %v3994, 7
    %v3996 = vsub.s32 %v3993, %v3995
    %v3997 = vrot.slane %v3987, %v3996
    %v3999 = vunpack.c.l.s4 1966171168
    %v4000 = vunpack.c.0.s8 %v3999
    %v4001 = vlaneseq
    %v4002 = vshrl.u32 %v4001, 7
    %v4003 = vsub.s32 %v4000, %v4002
    %v4004 = vrot.slane %v3988, %v4003
    %v4006 = vunpack.c.l.s4 1966171168
    %v4007 = vunpack.c.0.s8 %v4006
    %v4008 = vlaneseq
    %v4009 = vshrl.u32 %v4008, 7
    %v4010 = vsub.s32 %v4007, %v4009
    %v4011 = vrot.slane %v3989, %v4010
    %v4013 = vunpack.c.l.s4 1966171168
    %v4014 = vunpack.c.0.s8 %v4013
    %v4015 = vlaneseq
    %v4016 = vshrl.u32 %v4015, 7
    %v4017 = vsub.s32 %v4014, %v4016
    %v4018 = vrot.slane %v3990, %v4017
    %v4019 = vcombine.low %v3997, %v4004
    %v4020 = vcombine.low %v4011, %v4018
    %v4022 = vunpack.c.l.s4 1966171168
    %v4023 = vunpack.c.0.s8 %v4022
    %v4024 = vlaneseq
    %v4025 = vshrl.u32 %v4024, 7
    %v4026 = vsub.s32 %v4023, %v4025
    %v4027 = vrot.slane %v4019, %v4026
    %v4029 = vunpack.c.l.s4 1966171168
    %v4030 = vunpack.c.0.s8 %v4029
    %v4031 = vlaneseq
    %v4032 = vshrl.u32 %v4031, 7
    %v4033 = vsub.s32 %v4030, %v4032
    %v4034 = vrot.slane %v4020, %v4033
    %v4035 = vcombine.low %v4027, %v4034
    %v4036 = vcombine.low %v3936, %v3937
    %v4038 = vunpack.c.l.s4 1966171168
    %v4039 = vunpack.c.0.s8 %v4038
    %v4040 = vlaneseq
    %v4041 = vshrl.u32 %v4040, 7
    %v4042 = vsub.s32 %v4039, %v4041
    %v4043 = vrot.slane %v4036, %v4042
    %v4045 = vunpack.c.l.s4 1966171168
    %v4046 = vunpack.c.0.s8 %v4045
    %v4047 = vlaneseq
    %v4048 = vshrl.u32 %v4047, 7
    %v4049 = vsub.s32 %v4046, %v4048
    %v4050 = vrot.slane %v4043, %v4049
    %v4054 = vpack.c.bf16 %v4035, %v3986
    %v4055 = vpack.c.bf16 %v4050, %v4050
    %v4056 = vld [vmem:[%s1 + $0x120] sm:$0xf]
    %v4057 = vld [vmem:[%s1 + $0x124] sm:$0xf]
    %v4058 = vld [vmem:[%s1 + $0x128] sm:$0xf]
    %v4059 = vld [vmem:[%s1 + $0x12c] sm:$0xf]
    %v4064 = vunpack.c.l.b16 %v4056
    %v4065 = vunpack.c.l.b16 %v4057
    %v4066 = vunpack.c.l.b16 %v4058
    %v4067 = vunpack.c.l.b16 %v4059
    %v4068 = vpack.c.b16 %v4065, %v4064
    %v4069 = vpack.c.b16 %v4067, %v4066
    %v4073 = vsel %vm1089, %v4054, 0
    %v4076 = vsel %vm1089, %v4055, 0
    %4078 = vmatprep.subr.bf16.mxu0 0
    %4079 = vmatpush1.bf16.msra.mxu0 0
    %4080 = vmatprep.subr.bf16.mxu0 0
    %4081 = vmatpush1.bf16.msra.mxu0 0
    %4082 = vmatprep.subr.bf16.mxu0 0
    %4083 = vmatpush1.bf16.msra.mxu0 0
    %4084 = vmatprep.subr.bf16.mxu0 0
    %4085 = vmatpush1.bf16.msra.mxu0 0
    %4086 = vmatprep.subr.bf16.mxu0 0
    %4087 = vmatpush1.bf16.msra.mxu0 0
    %4088 = vmatprep.subr.bf16.mxu0 0
    %4089 = vmatpush1.bf16.msra.mxu0 0
    %4090 = vmatprep.subr.bf16.mxu0 0
    %4091 = vmatpush1.bf16.msra.mxu0 %v4069
    %4092 = vmatprep.subr.bf16.mxu0 0
    %4093 = vmatpush1.bf16.msra.mxu0 %v4068
    %4094 = vmatprep.subr.bf16.mxu0 0
    %4095 = vmatpush2.bf16.msra.mxu0 0
    %4096 = vmatprep.subr.bf16.mxu0 0
    %4097 = vmatpush2.bf16.msra.mxu0 0
    %4098 = vmatprep.subr.bf16.mxu0 0
    %4099 = vmatpush2.bf16.msra.mxu0 0
    %4100 = vmatprep.subr.bf16.mxu0 0
    %4101 = vmatpush2.bf16.msra.mxu0 0
    %4102 = vmatprep.subr.bf16.mxu0 0
    %4103 = vmatpush2.bf16.msra.mxu0 0
    %4104 = vmatprep.subr.bf16.mxu0 0
    %4105 = vmatpush2.bf16.msra.mxu0 0
    %4106 = vmatprep.subr.bf16.mxu0 0
    %4107 = vmatpush2.bf16.msra.mxu0 0
    %4108 = vmatprep.subr.bf16.mxu0 0
    %4109 = vmatpush2.bf16.msra.mxu0 0
    %4110 = vmatprep.mubr.bf16.mxu0 0
    %4111 = vmatmul.mubr.bf16.gmra.mxu0 %v4073
    %v4112 = vpop.f32.mrf.mxu0
    %v4113 = vadd.f32 0.0, %v4112
    %v4114 = vpop.f32.mrf.mxu0
    %v4115 = vpop.f32.mrf.mxu0
    %v4116 = vadd.f32 0.0, %v4115
    %v4117 = vpop.f32.mrf.mxu0
    %4118 = vmatprep.mubr.bf16.mxu0 0
    %4119 = vmatmul.mubr.bf16.gmra.mxu0 %v4076
    %v4120 = vpop.f32.mrf.mxu0
    %v4121 = vadd.f32 0.0, %v4120
    %v4122 = vpop.f32.mrf.mxu0
    %v4123 = vpop.f32.mrf.mxu0
    %v4124 = vpop.f32.mrf.mxu0
    %4125 = vdwg.mxu0
    %v4126 = vadd.f32 %v3879, %v4113
    %v4127 = vadd.f32 %v3880, %v4116
    %v4128 = vadd.f32 %v3881, %v4121
    %v4129 = vrot.slane %v467, 5
    %v4130 = vrot.slane %v475, 5
    %v4133 = vsel %vm507, %v3635, %v3882
    %v4134 = vsel %vm507, %v3636, %v3883
    %v4135 = vsel %vm514, %v4133, %v4129
    %v4136 = vsel %vm514, %v4134, %v4130
    %v4140 = vunpack.c.l.s4 1966171168
    %v4141 = vunpack.c.0.s8 %v4140
    %v4142 = vlaneseq
    %v4143 = vshrl.u32 %v4142, 7
    %v4144 = vsub.s32 %v4141, %v4143
    %v4145 = vrot.slane %v4135, %v4144
    %v4146 = vcombine.high %v4145, %v4145
    %v4148 = vunpack.c.l.s4 1966171168
    %v4149 = vunpack.c.0.s8 %v4148
    %v4150 = vlaneseq
    %v4151 = vshrl.u32 %v4150, 7
    %v4152 = vsub.s32 %v4149, %v4151
    %v4153 = vrot.slane %v4145, %v4152
    %v4155 = vunpack.c.l.s4 1966171168
    %v4156 = vunpack.c.0.s8 %v4155
    %v4157 = vlaneseq
    %v4158 = vshrl.u32 %v4157, 7
    %v4159 = vsub.s32 %v4156, %v4158
    %v4160 = vrot.slane %v4146, %v4159
    %v4161 = vcombine.high %v4153, %v4153
    %v4163 = vunpack.c.l.s4 1966171168
    %v4164 = vunpack.c.0.s8 %v4163
    %v4165 = vlaneseq
    %v4166 = vshrl.u32 %v4165, 7
    %v4167 = vsub.s32 %v4164, %v4166
    %v4168 = vrot.slane %v4136, %v4167
    %v4169 = vcombine.high %v4168, %v4168
    %v4171 = vunpack.c.l.s4 1966171168
    %v4172 = vunpack.c.0.s8 %v4171
    %v4173 = vlaneseq
    %v4174 = vshrl.u32 %v4173, 7
    %v4175 = vsub.s32 %v4172, %v4174
    %v4176 = vrot.slane %v4168, %v4175
    %v4178 = vunpack.c.l.s4 1966171168
    %v4179 = vunpack.c.0.s8 %v4178
    %v4180 = vlaneseq
    %v4181 = vshrl.u32 %v4180, 7
    %v4182 = vsub.s32 %v4179, %v4181
    %v4183 = vrot.slane %v4169, %v4182
    %v4184 = vcombine.high %v4176, %v4176
    %v4185 = vcombine.low %v1636, %v1643
    %v4186 = vcombine.low %v1644, %v1659
    %v4187 = vcombine.low %v1666, %v1667
    %v4188 = vcombine.low %v4153, %v4160
    %v4190 = vunpack.c.l.s4 1966171168
    %v4191 = vunpack.c.0.s8 %v4190
    %v4192 = vlaneseq
    %v4193 = vshrl.u32 %v4192, 7
    %v4194 = vsub.s32 %v4191, %v4193
    %v4195 = vrot.slane %v4185, %v4194
    %v4197 = vunpack.c.l.s4 1966171168
    %v4198 = vunpack.c.0.s8 %v4197
    %v4199 = vlaneseq
    %v4200 = vshrl.u32 %v4199, 7
    %v4201 = vsub.s32 %v4198, %v4200
    %v4202 = vrot.slane %v4186, %v4201
    %v4204 = vunpack.c.l.s4 1966171168
    %v4205 = vunpack.c.0.s8 %v4204
    %v4206 = vlaneseq
    %v4207 = vshrl.u32 %v4206, 7
    %v4208 = vsub.s32 %v4205, %v4207
    %v4209 = vrot.slane %v4187, %v4208
    %v4211 = vunpack.c.l.s4 1966171168
    %v4212 = vunpack.c.0.s8 %v4211
    %v4213 = vlaneseq
    %v4214 = vshrl.u32 %v4213, 7
    %v4215 = vsub.s32 %v4212, %v4214
    %v4216 = vrot.slane %v4188, %v4215
    %v4217 = vcombine.low %v4195, %v4202
    %v4218 = vcombine.low %v4209, %v4216
    %v4220 = vunpack.c.l.s4 1966171168
    %v4221 = vunpack.c.0.s8 %v4220
    %v4222 = vlaneseq
    %v4223 = vshrl.u32 %v4222, 7
    %v4224 = vsub.s32 %v4221, %v4223
    %v4225 = vrot.slane %v4217, %v4224
    %v4227 = vunpack.c.l.s4 1966171168
    %v4228 = vunpack.c.0.s8 %v4227
    %v4229 = vlaneseq
    %v4230 = vshrl.u32 %v4229, 7
    %v4231 = vsub.s32 %v4228, %v4230
    %v4232 = vrot.slane %v4218, %v4231
    %v4233 = vcombine.low %v4225, %v4232
    %v4234 = vcombine.low %v4161, %v1705
    %v4235 = vcombine.low %v1712, %v1713
    %v4236 = vcombine.low %v1728, %v1735
    %v4237 = vcombine.low %v1736, %v4176
    %v4239 = vunpack.c.l.s4 1966171168
    %v4240 = vunpack.c.0.s8 %v4239
    %v4241 = vlaneseq
    %v4242 = vshrl.u32 %v4241, 7
    %v4243 = vsub.s32 %v4240, %v4242
    %v4244 = vrot.slane %v4234, %v4243
    %v4246 = vunpack.c.l.s4 1966171168
    %v4247 = vunpack.c.0.s8 %v4246
    %v4248 = vlaneseq
    %v4249 = vshrl.u32 %v4248, 7
    %v4250 = vsub.s32 %v4247, %v4249
    %v4251 = vrot.slane %v4235, %v4250
    %v4253 = vunpack.c.l.s4 1966171168
    %v4254 = vunpack.c.0.s8 %v4253
    %v4255 = vlaneseq
    %v4256 = vshrl.u32 %v4255, 7
    %v4257 = vsub.s32 %v4254, %v4256
    %v4258 = vrot.slane %v4236, %v4257
    %v4260 = vunpack.c.l.s4 1966171168
    %v4261 = vunpack.c.0.s8 %v4260
    %v4262 = vlaneseq
    %v4263 = vshrl.u32 %v4262, 7
    %v4264 = vsub.s32 %v4261, %v4263
    %v4265 = vrot.slane %v4237, %v4264
    %v4266 = vcombine.low %v4244, %v4251
    %v4267 = vcombine.low %v4258, %v4265
    %v4269 = vunpack.c.l.s4 1966171168
    %v4270 = vunpack.c.0.s8 %v4269
    %v4271 = vlaneseq
    %v4272 = vshrl.u32 %v4271, 7
    %v4273 = vsub.s32 %v4270, %v4272
    %v4274 = vrot.slane %v4266, %v4273
    %v4276 = vunpack.c.l.s4 1966171168
    %v4277 = vunpack.c.0.s8 %v4276
    %v4278 = vlaneseq
    %v4279 = vshrl.u32 %v4278, 7
    %v4280 = vsub.s32 %v4277, %v4279
    %v4281 = vrot.slane %v4267, %v4280
    %v4282 = vcombine.low %v4274, %v4281
    %v4283 = vcombine.low %v4183, %v4184
    %v4285 = vunpack.c.l.s4 1966171168
    %v4286 = vunpack.c.0.s8 %v4285
    %v4287 = vlaneseq
    %v4288 = vshrl.u32 %v4287, 7
    %v4289 = vsub.s32 %v4286, %v4288
    %v4290 = vrot.slane %v4283, %v4289
    %v4292 = vunpack.c.l.s4 1966171168
    %v4293 = vunpack.c.0.s8 %v4292
    %v4294 = vlaneseq
    %v4295 = vshrl.u32 %v4294, 7
    %v4296 = vsub.s32 %v4293, %v4295
    %v4297 = vrot.slane %v4290, %v4296
    %v4301 = vpack.c.bf16 %v4282, %v4233
    %v4302 = vpack.c.bf16 %v4297, %v4297
    %v4303 = vld [vmem:[%s1 + $0x130] sm:$0xf]
    %v4304 = vld [vmem:[%s1 + $0x134] sm:$0xf]
    %v4305 = vld [vmem:[%s1 + $0x138] sm:$0xf]
    %v4306 = vld [vmem:[%s1 + $0x13c] sm:$0xf]
    %v4311 = vunpack.c.l.b16 %v4303
    %v4312 = vunpack.c.l.b16 %v4304
    %v4313 = vunpack.c.l.b16 %v4305
    %v4314 = vunpack.c.l.b16 %v4306
    %v4315 = vpack.c.b16 %v4312, %v4311
    %v4316 = vpack.c.b16 %v4314, %v4313
    %v4320 = vsel %vm1089, %v4301, 0
    %v4323 = vsel %vm1089, %v4302, 0
    %4325 = vmatprep.subr.bf16.mxu0 0
    %4326 = vmatpush1.bf16.msra.mxu0 0
    %4327 = vmatprep.subr.bf16.mxu0 0
    %4328 = vmatpush1.bf16.msra.mxu0 0
    %4329 = vmatprep.subr.bf16.mxu0 0
    %4330 = vmatpush1.bf16.msra.mxu0 0
    %4331 = vmatprep.subr.bf16.mxu0 0
    %4332 = vmatpush1.bf16.msra.mxu0 0
    %4333 = vmatprep.subr.bf16.mxu0 0
    %4334 = vmatpush1.bf16.msra.mxu0 0
    %4335 = vmatprep.subr.bf16.mxu0 0
    %4336 = vmatpush1.bf16.msra.mxu0 0
    %4337 = vmatprep.subr.bf16.mxu0 0
    %4338 = vmatpush1.bf16.msra.mxu0 %v4316
    %4339 = vmatprep.subr.bf16.mxu0 0
    %4340 = vmatpush1.bf16.msra.mxu0 %v4315
    %4341 = vmatprep.subr.bf16.mxu0 0
    %4342 = vmatpush2.bf16.msra.mxu0 0
    %4343 = vmatprep.subr.bf16.mxu0 0
    %4344 = vmatpush2.bf16.msra.mxu0 0
    %4345 = vmatprep.subr.bf16.mxu0 0
    %4346 = vmatpush2.bf16.msra.mxu0 0
    %4347 = vmatprep.subr.bf16.mxu0 0
    %4348 = vmatpush2.bf16.msra.mxu0 0
    %4349 = vmatprep.subr.bf16.mxu0 0
    %4350 = vmatpush2.bf16.msra.mxu0 0
    %4351 = vmatprep.subr.bf16.mxu0 0
    %4352 = vmatpush2.bf16.msra.mxu0 0
    %4353 = vmatprep.subr.bf16.mxu0 0
    %4354 = vmatpush2.bf16.msra.mxu0 0
    %4355 = vmatprep.subr.bf16.mxu0 0
    %4356 = vmatpush2.bf16.msra.mxu0 0
    %4357 = vmatprep.mubr.bf16.mxu0 0
    %4358 = vmatmul.mubr.bf16.gmra.mxu0 %v4320
    %v4359 = vpop.f32.mrf.mxu0
    %v4360 = vadd.f32 0.0, %v4359
    %v4361 = vpop.f32.mrf.mxu0
    %v4362 = vpop.f32.mrf.mxu0
    %v4363 = vadd.f32 0.0, %v4362
    %v4364 = vpop.f32.mrf.mxu0
    %4365 = vmatprep.mubr.bf16.mxu0 0
    %4366 = vmatmul.mubr.bf16.gmra.mxu0 %v4323
    %v4367 = vpop.f32.mrf.mxu0
    %v4368 = vadd.f32 0.0, %v4367
    %v4369 = vpop.f32.mrf.mxu0
    %v4370 = vpop.f32.mrf.mxu0
    %v4371 = vpop.f32.mrf.mxu0
    %4372 = vdwg.mxu0
    %v4373 = vadd.f32 %v4126, %v4360
    %v4374 = vadd.f32 %v4127, %v4363
    %v4375 = vadd.f32 %v4128, %v4368
    %v4378 = vrot.slane %v468, 1
    %v4379 = vrot.slane %v476, 1
    %v4382 = vrot.slane %v468, 2
    %v4383 = vrot.slane %v476, 2
    %v4386 = vsel %vm507, %v468, %v4378
    %v4387 = vsel %vm507, %v476, %v4379
    %v4388 = vsel %vm514, %v4386, %v4382
    %v4389 = vsel %vm514, %v4387, %v4383
    %v4393 = vunpack.c.l.s4 1966171168
    %v4394 = vunpack.c.0.s8 %v4393
    %v4395 = vlaneseq
    %v4396 = vshrl.u32 %v4395, 7
    %v4397 = vsub.s32 %v4394, %v4396
    %v4398 = vrot.slane %v4388, %v4397
    %v4399 = vcombine.high %v4398, %v4398
    %v4401 = vunpack.c.l.s4 1966171168
    %v4402 = vunpack.c.0.s8 %v4401
    %v4403 = vlaneseq
    %v4404 = vshrl.u32 %v4403, 7
    %v4405 = vsub.s32 %v4402, %v4404
    %v4406 = vrot.slane %v4398, %v4405
    %v4408 = vunpack.c.l.s4 1966171168
    %v4409 = vunpack.c.0.s8 %v4408
    %v4410 = vlaneseq
    %v4411 = vshrl.u32 %v4410, 7
    %v4412 = vsub.s32 %v4409, %v4411
    %v4413 = vrot.slane %v4399, %v4412
    %v4414 = vcombine.high %v4406, %v4406
    %v4416 = vunpack.c.l.s4 1966171168
    %v4417 = vunpack.c.0.s8 %v4416
    %v4418 = vlaneseq
    %v4419 = vshrl.u32 %v4418, 7
    %v4420 = vsub.s32 %v4417, %v4419
    %v4421 = vrot.slane %v4389, %v4420
    %v4422 = vcombine.high %v4421, %v4421
    %v4424 = vunpack.c.l.s4 1966171168
    %v4425 = vunpack.c.0.s8 %v4424
    %v4426 = vlaneseq
    %v4427 = vshrl.u32 %v4426, 7
    %v4428 = vsub.s32 %v4425, %v4427
    %v4429 = vrot.slane %v4421, %v4428
    %v4431 = vunpack.c.l.s4 1966171168
    %v4432 = vunpack.c.0.s8 %v4431
    %v4433 = vlaneseq
    %v4434 = vshrl.u32 %v4433, 7
    %v4435 = vsub.s32 %v4432, %v4434
    %v4436 = vrot.slane %v4422, %v4435
    %v4437 = vcombine.high %v4429, %v4429
    %v4438 = vcombine.low %v2013, %v2020
    %v4439 = vcombine.low %v2021, %v2036
    %v4440 = vcombine.low %v2043, %v2044
    %v4441 = vcombine.low %v4406, %v4413
    %v4443 = vunpack.c.l.s4 1966171168
    %v4444 = vunpack.c.0.s8 %v4443
    %v4445 = vlaneseq
    %v4446 = vshrl.u32 %v4445, 7
    %v4447 = vsub.s32 %v4444, %v4446
    %v4448 = vrot.slane %v4438, %v4447
    %v4450 = vunpack.c.l.s4 1966171168
    %v4451 = vunpack.c.0.s8 %v4450
    %v4452 = vlaneseq
    %v4453 = vshrl.u32 %v4452, 7
    %v4454 = vsub.s32 %v4451, %v4453
    %v4455 = vrot.slane %v4439, %v4454
    %v4457 = vunpack.c.l.s4 1966171168
    %v4458 = vunpack.c.0.s8 %v4457
    %v4459 = vlaneseq
    %v4460 = vshrl.u32 %v4459, 7
    %v4461 = vsub.s32 %v4458, %v4460
    %v4462 = vrot.slane %v4440, %v4461
    %v4464 = vunpack.c.l.s4 1966171168
    %v4465 = vunpack.c.0.s8 %v4464
    %v4466 = vlaneseq
    %v4467 = vshrl.u32 %v4466, 7
    %v4468 = vsub.s32 %v4465, %v4467
    %v4469 = vrot.slane %v4441, %v4468
    %v4470 = vcombine.low %v4448, %v4455
    %v4471 = vcombine.low %v4462, %v4469
    %v4473 = vunpack.c.l.s4 1966171168
    %v4474 = vunpack.c.0.s8 %v4473
    %v4475 = vlaneseq
    %v4476 = vshrl.u32 %v4475, 7
    %v4477 = vsub.s32 %v4474, %v4476
    %v4478 = vrot.slane %v4470, %v4477
    %v4480 = vunpack.c.l.s4 1966171168
    %v4481 = vunpack.c.0.s8 %v4480
    %v4482 = vlaneseq
    %v4483 = vshrl.u32 %v4482, 7
    %v4484 = vsub.s32 %v4481, %v4483
    %v4485 = vrot.slane %v4471, %v4484
    %v4486 = vcombine.low %v4478, %v4485
    %v4487 = vcombine.low %v4414, %v2082
    %v4488 = vcombine.low %v2089, %v2090
    %v4489 = vcombine.low %v2105, %v2112
    %v4490 = vcombine.low %v2113, %v4429
    %v4492 = vunpack.c.l.s4 1966171168
    %v4493 = vunpack.c.0.s8 %v4492
    %v4494 = vlaneseq
    %v4495 = vshrl.u32 %v4494, 7
    %v4496 = vsub.s32 %v4493, %v4495
    %v4497 = vrot.slane %v4487, %v4496
    %v4499 = vunpack.c.l.s4 1966171168
    %v4500 = vunpack.c.0.s8 %v4499
    %v4501 = vlaneseq
    %v4502 = vshrl.u32 %v4501, 7
    %v4503 = vsub.s32 %v4500, %v4502
    %v4504 = vrot.slane %v4488, %v4503
    %v4506 = vunpack.c.l.s4 1966171168
    %v4507 = vunpack.c.0.s8 %v4506
    %v4508 = vlaneseq
    %v4509 = vshrl.u32 %v4508, 7
    %v4510 = vsub.s32 %v4507, %v4509
    %v4511 = vrot.slane %v4489, %v4510
    %v4513 = vunpack.c.l.s4 1966171168
    %v4514 = vunpack.c.0.s8 %v4513
    %v4515 = vlaneseq
    %v4516 = vshrl.u32 %v4515, 7
    %v4517 = vsub.s32 %v4514, %v4516
    %v4518 = vrot.slane %v4490, %v4517
    %v4519 = vcombine.low %v4497, %v4504
    %v4520 = vcombine.low %v4511, %v4518
    %v4522 = vunpack.c.l.s4 1966171168
    %v4523 = vunpack.c.0.s8 %v4522
    %v4524 = vlaneseq
    %v4525 = vshrl.u32 %v4524, 7
    %v4526 = vsub.s32 %v4523, %v4525
    %v4527 = vrot.slane %v4519, %v4526
    %v4529 = vunpack.c.l.s4 1966171168
    %v4530 = vunpack.c.0.s8 %v4529
    %v4531 = vlaneseq
    %v4532 = vshrl.u32 %v4531, 7
    %v4533 = vsub.s32 %v4530, %v4532
    %v4534 = vrot.slane %v4520, %v4533
    %v4535 = vcombine.low %v4527, %v4534
    %v4536 = vcombine.low %v4436, %v4437
    %v4538 = vunpack.c.l.s4 1966171168
    %v4539 = vunpack.c.0.s8 %v4538
    %v4540 = vlaneseq
    %v4541 = vshrl.u32 %v4540, 7
    %v4542 = vsub.s32 %v4539, %v4541
    %v4543 = vrot.slane %v4536, %v4542
    %v4545 = vunpack.c.l.s4 1966171168
    %v4546 = vunpack.c.0.s8 %v4545
    %v4547 = vlaneseq
    %v4548 = vshrl.u32 %v4547, 7
    %v4549 = vsub.s32 %v4546, %v4548
    %v4550 = vrot.slane %v4543, %v4549
    %v4554 = vpack.c.bf16 %v4535, %v4486
    %v4555 = vpack.c.bf16 %v4550, %v4550
    %v4556 = vld [vmem:[%s1 + $0x140] sm:$0xf]
    %v4557 = vld [vmem:[%s1 + $0x144] sm:$0xf]
    %v4558 = vld [vmem:[%s1 + $0x148] sm:$0xf]
    %v4559 = vld [vmem:[%s1 + $0x14c] sm:$0xf]
    %v4564 = vunpack.c.l.b16 %v4556
    %v4565 = vunpack.c.l.b16 %v4557
    %v4566 = vunpack.c.l.b16 %v4558
    %v4567 = vunpack.c.l.b16 %v4559
    %v4568 = vpack.c.b16 %v4565, %v4564
    %v4569 = vpack.c.b16 %v4567, %v4566
    %v4573 = vsel %vm1089, %v4554, 0
    %v4576 = vsel %vm1089, %v4555, 0
    %4578 = vmatprep.subr.bf16.mxu0 0
    %4579 = vmatpush1.bf16.msra.mxu0 0
    %4580 = vmatprep.subr.bf16.mxu0 0
    %4581 = vmatpush1.bf16.msra.mxu0 0
    %4582 = vmatprep.subr.bf16.mxu0 0
    %4583 = vmatpush1.bf16.msra.mxu0 0
    %4584 = vmatprep.subr.bf16.mxu0 0
    %4585 = vmatpush1.bf16.msra.mxu0 0
    %4586 = vmatprep.subr.bf16.mxu0 0
    %4587 = vmatpush1.bf16.msra.mxu0 0
    %4588 = vmatprep.subr.bf16.mxu0 0
    %4589 = vmatpush1.bf16.msra.mxu0 0
    %4590 = vmatprep.subr.bf16.mxu0 0
    %4591 = vmatpush1.bf16.msra.mxu0 %v4569
    %4592 = vmatprep.subr.bf16.mxu0 0
    %4593 = vmatpush1.bf16.msra.mxu0 %v4568
    %4594 = vmatprep.subr.bf16.mxu0 0
    %4595 = vmatpush2.bf16.msra.mxu0 0
    %4596 = vmatprep.subr.bf16.mxu0 0
    %4597 = vmatpush2.bf16.msra.mxu0 0
    %4598 = vmatprep.subr.bf16.mxu0 0
    %4599 = vmatpush2.bf16.msra.mxu0 0
    %4600 = vmatprep.subr.bf16.mxu0 0
    %4601 = vmatpush2.bf16.msra.mxu0 0
    %4602 = vmatprep.subr.bf16.mxu0 0
    %4603 = vmatpush2.bf16.msra.mxu0 0
    %4604 = vmatprep.subr.bf16.mxu0 0
    %4605 = vmatpush2.bf16.msra.mxu0 0
    %4606 = vmatprep.subr.bf16.mxu0 0
    %4607 = vmatpush2.bf16.msra.mxu0 0
    %4608 = vmatprep.subr.bf16.mxu0 0
    %4609 = vmatpush2.bf16.msra.mxu0 0
    %4610 = vmatprep.mubr.bf16.mxu0 0
    %4611 = vmatmul.mubr.bf16.gmra.mxu0 %v4573
    %v4612 = vpop.f32.mrf.mxu0
    %v4613 = vadd.f32 0.0, %v4612
    %v4614 = vpop.f32.mrf.mxu0
    %v4615 = vpop.f32.mrf.mxu0
    %v4616 = vadd.f32 0.0, %v4615
    %v4617 = vpop.f32.mrf.mxu0
    %4618 = vmatprep.mubr.bf16.mxu0 0
    %4619 = vmatmul.mubr.bf16.gmra.mxu0 %v4576
    %v4620 = vpop.f32.mrf.mxu0
    %v4621 = vadd.f32 0.0, %v4620
    %v4622 = vpop.f32.mrf.mxu0
    %v4623 = vpop.f32.mrf.mxu0
    %v4624 = vpop.f32.mrf.mxu0
    %4625 = vdwg.mxu0
    %v4626 = vadd.f32 %v4373, %v4613
    %v4627 = vadd.f32 %v4374, %v4616
    %v4628 = vadd.f32 %v4375, %v4621
    %v4629 = vrot.slane %v468, 3
    %v4630 = vrot.slane %v476, 3
    %v4633 = vsel %vm507, %v4378, %v4382
    %v4634 = vsel %vm507, %v4379, %v4383
    %v4635 = vsel %vm514, %v4633, %v4629
    %v4636 = vsel %vm514, %v4634, %v4630
    %v4640 = vunpack.c.l.s4 1966171168
    %v4641 = vunpack.c.0.s8 %v4640
    %v4642 = vlaneseq
    %v4643 = vshrl.u32 %v4642, 7
    %v4644 = vsub.s32 %v4641, %v4643
    %v4645 = vrot.slane %v4635, %v4644
    %v4646 = vcombine.high %v4645, %v4645
    %v4648 = vunpack.c.l.s4 1966171168
    %v4649 = vunpack.c.0.s8 %v4648
    %v4650 = vlaneseq
    %v4651 = vshrl.u32 %v4650, 7
    %v4652 = vsub.s32 %v4649, %v4651
    %v4653 = vrot.slane %v4645, %v4652
    %v4655 = vunpack.c.l.s4 1966171168
    %v4656 = vunpack.c.0.s8 %v4655
    %v4657 = vlaneseq
    %v4658 = vshrl.u32 %v4657, 7
    %v4659 = vsub.s32 %v4656, %v4658
    %v4660 = vrot.slane %v4646, %v4659
    %v4661 = vcombine.high %v4653, %v4653
    %v4663 = vunpack.c.l.s4 1966171168
    %v4664 = vunpack.c.0.s8 %v4663
    %v4665 = vlaneseq
    %v4666 = vshrl.u32 %v4665, 7
    %v4667 = vsub.s32 %v4664, %v4666
    %v4668 = vrot.slane %v4636, %v4667
    %v4669 = vcombine.high %v4668, %v4668
    %v4671 = vunpack.c.l.s4 1966171168
    %v4672 = vunpack.c.0.s8 %v4671
    %v4673 = vlaneseq
    %v4674 = vshrl.u32 %v4673, 7
    %v4675 = vsub.s32 %v4672, %v4674
    %v4676 = vrot.slane %v4668, %v4675
    %v4678 = vunpack.c.l.s4 1966171168
    %v4679 = vunpack.c.0.s8 %v4678
    %v4680 = vlaneseq
    %v4681 = vshrl.u32 %v4680, 7
    %v4682 = vsub.s32 %v4679, %v4681
    %v4683 = vrot.slane %v4669, %v4682
    %v4684 = vcombine.high %v4676, %v4676
    %v4685 = vcombine.low %v2372, %v2379
    %v4686 = vcombine.low %v2380, %v2395
    %v4687 = vcombine.low %v2402, %v2403
    %v4688 = vcombine.low %v4653, %v4660
    %v4690 = vunpack.c.l.s4 1966171168
    %v4691 = vunpack.c.0.s8 %v4690
    %v4692 = vlaneseq
    %v4693 = vshrl.u32 %v4692, 7
    %v4694 = vsub.s32 %v4691, %v4693
    %v4695 = vrot.slane %v4685, %v4694
    %v4697 = vunpack.c.l.s4 1966171168
    %v4698 = vunpack.c.0.s8 %v4697
    %v4699 = vlaneseq
    %v4700 = vshrl.u32 %v4699, 7
    %v4701 = vsub.s32 %v4698, %v4700
    %v4702 = vrot.slane %v4686, %v4701
    %v4704 = vunpack.c.l.s4 1966171168
    %v4705 = vunpack.c.0.s8 %v4704
    %v4706 = vlaneseq
    %v4707 = vshrl.u32 %v4706, 7
    %v4708 = vsub.s32 %v4705, %v4707
    %v4709 = vrot.slane %v4687, %v4708
    %v4711 = vunpack.c.l.s4 1966171168
    %v4712 = vunpack.c.0.s8 %v4711
    %v4713 = vlaneseq
    %v4714 = vshrl.u32 %v4713, 7
    %v4715 = vsub.s32 %v4712, %v4714
    %v4716 = vrot.slane %v4688, %v4715
    %v4717 = vcombine.low %v4695, %v4702
    %v4718 = vcombine.low %v4709, %v4716
    %v4720 = vunpack.c.l.s4 1966171168
    %v4721 = vunpack.c.0.s8 %v4720
    %v4722 = vlaneseq
    %v4723 = vshrl.u32 %v4722, 7
    %v4724 = vsub.s32 %v4721, %v4723
    %v4725 = vrot.slane %v4717, %v4724
    %v4727 = vunpack.c.l.s4 1966171168
    %v4728 = vunpack.c.0.s8 %v4727
    %v4729 = vlaneseq
    %v4730 = vshrl.u32 %v4729, 7
    %v4731 = vsub.s32 %v4728, %v4730
    %v4732 = vrot.slane %v4718, %v4731
    %v4733 = vcombine.low %v4725, %v4732
    %v4734 = vcombine.low %v4661, %v2441
    %v4735 = vcombine.low %v2448, %v2449
    %v4736 = vcombine.low %v2464, %v2471
    %v4737 = vcombine.low %v2472, %v4676
    %v4739 = vunpack.c.l.s4 1966171168
    %v4740 = vunpack.c.0.s8 %v4739
    %v4741 = vlaneseq
    %v4742 = vshrl.u32 %v4741, 7
    %v4743 = vsub.s32 %v4740, %v4742
    %v4744 = vrot.slane %v4734, %v4743
    %v4746 = vunpack.c.l.s4 1966171168
    %v4747 = vunpack.c.0.s8 %v4746
    %v4748 = vlaneseq
    %v4749 = vshrl.u32 %v4748, 7
    %v4750 = vsub.s32 %v4747, %v4749
    %v4751 = vrot.slane %v4735, %v4750
    %v4753 = vunpack.c.l.s4 1966171168
    %v4754 = vunpack.c.0.s8 %v4753
    %v4755 = vlaneseq
    %v4756 = vshrl.u32 %v4755, 7
    %v4757 = vsub.s32 %v4754, %v4756
    %v4758 = vrot.slane %v4736, %v4757
    %v4760 = vunpack.c.l.s4 1966171168
    %v4761 = vunpack.c.0.s8 %v4760
    %v4762 = vlaneseq
    %v4763 = vshrl.u32 %v4762, 7
    %v4764 = vsub.s32 %v4761, %v4763
    %v4765 = vrot.slane %v4737, %v4764
    %v4766 = vcombine.low %v4744, %v4751
    %v4767 = vcombine.low %v4758, %v4765
    %v4769 = vunpack.c.l.s4 1966171168
    %v4770 = vunpack.c.0.s8 %v4769
    %v4771 = vlaneseq
    %v4772 = vshrl.u32 %v4771, 7
    %v4773 = vsub.s32 %v4770, %v4772
    %v4774 = vrot.slane %v4766, %v4773
    %v4776 = vunpack.c.l.s4 1966171168
    %v4777 = vunpack.c.0.s8 %v4776
    %v4778 = vlaneseq
    %v4779 = vshrl.u32 %v4778, 7
    %v4780 = vsub.s32 %v4777, %v4779
    %v4781 = vrot.slane %v4767, %v4780
    %v4782 = vcombine.low %v4774, %v4781
    %v4783 = vcombine.low %v4683, %v4684
    %v4785 = vunpack.c.l.s4 1966171168
    %v4786 = vunpack.c.0.s8 %v4785
    %v4787 = vlaneseq
    %v4788 = vshrl.u32 %v4787, 7
    %v4789 = vsub.s32 %v4786, %v4788
    %v4790 = vrot.slane %v4783, %v4789
    %v4792 = vunpack.c.l.s4 1966171168
    %v4793 = vunpack.c.0.s8 %v4792
    %v4794 = vlaneseq
    %v4795 = vshrl.u32 %v4794, 7
    %v4796 = vsub.s32 %v4793, %v4795
    %v4797 = vrot.slane %v4790, %v4796
    %v4801 = vpack.c.bf16 %v4782, %v4733
    %v4802 = vpack.c.bf16 %v4797, %v4797
    %v4803 = vld [vmem:[%s1 + $0x150] sm:$0xf]
    %v4804 = vld [vmem:[%s1 + $0x154] sm:$0xf]
    %v4805 = vld [vmem:[%s1 + $0x158] sm:$0xf]
    %v4806 = vld [vmem:[%s1 + $0x15c] sm:$0xf]
    %v4811 = vunpack.c.l.b16 %v4803
    %v4812 = vunpack.c.l.b16 %v4804
    %v4813 = vunpack.c.l.b16 %v4805
    %v4814 = vunpack.c.l.b16 %v4806
    %v4815 = vpack.c.b16 %v4812, %v4811
    %v4816 = vpack.c.b16 %v4814, %v4813
    %v4820 = vsel %vm1089, %v4801, 0
    %v4823 = vsel %vm1089, %v4802, 0
    %4825 = vmatprep.subr.bf16.mxu0 0
    %4826 = vmatpush1.bf16.msra.mxu0 0
    %4827 = vmatprep.subr.bf16.mxu0 0
    %4828 = vmatpush1.bf16.msra.mxu0 0
    %4829 = vmatprep.subr.bf16.mxu0 0
    %4830 = vmatpush1.bf16.msra.mxu0 0
    %4831 = vmatprep.subr.bf16.mxu0 0
    %4832 = vmatpush1.bf16.msra.mxu0 0
    %4833 = vmatprep.subr.bf16.mxu0 0
    %4834 = vmatpush1.bf16.msra.mxu0 0
    %4835 = vmatprep.subr.bf16.mxu0 0
    %4836 = vmatpush1.bf16.msra.mxu0 0
    %4837 = vmatprep.subr.bf16.mxu0 0
    %4838 = vmatpush1.bf16.msra.mxu0 %v4816
    %4839 = vmatprep.subr.bf16.mxu0 0
    %4840 = vmatpush1.bf16.msra.mxu0 %v4815
    %4841 = vmatprep.subr.bf16.mxu0 0
    %4842 = vmatpush2.bf16.msra.mxu0 0
    %4843 = vmatprep.subr.bf16.mxu0 0
    %4844 = vmatpush2.bf16.msra.mxu0 0
    %4845 = vmatprep.subr.bf16.mxu0 0
    %4846 = vmatpush2.bf16.msra.mxu0 0
    %4847 = vmatprep.subr.bf16.mxu0 0
    %4848 = vmatpush2.bf16.msra.mxu0 0
    %4849 = vmatprep.subr.bf16.mxu0 0
    %4850 = vmatpush2.bf16.msra.mxu0 0
    %4851 = vmatprep.subr.bf16.mxu0 0
    %4852 = vmatpush2.bf16.msra.mxu0 0
    %4853 = vmatprep.subr.bf16.mxu0 0
    %4854 = vmatpush2.bf16.msra.mxu0 0
    %4855 = vmatprep.subr.bf16.mxu0 0
    %4856 = vmatpush2.bf16.msra.mxu0 0
    %4857 = vmatprep.mubr.bf16.mxu0 0
    %4858 = vmatmul.mubr.bf16.gmra.mxu0 %v4820
    %v4859 = vpop.f32.mrf.mxu0
    %v4860 = vadd.f32 0.0, %v4859
    %v4861 = vpop.f32.mrf.mxu0
    %v4862 = vpop.f32.mrf.mxu0
    %v4863 = vadd.f32 0.0, %v4862
    %v4864 = vpop.f32.mrf.mxu0
    %4865 = vmatprep.mubr.bf16.mxu0 0
    %4866 = vmatmul.mubr.bf16.gmra.mxu0 %v4823
    %v4867 = vpop.f32.mrf.mxu0
    %v4868 = vadd.f32 0.0, %v4867
    %v4869 = vpop.f32.mrf.mxu0
    %v4870 = vpop.f32.mrf.mxu0
    %v4871 = vpop.f32.mrf.mxu0
    %4872 = vdwg.mxu0
    %v4873 = vadd.f32 %v4626, %v4860
    %v4874 = vadd.f32 %v4627, %v4863
    %v4875 = vadd.f32 %v4628, %v4868
    %v4876 = vrot.slane %v468, 4
    %v4877 = vrot.slane %v476, 4
    %v4880 = vsel %vm507, %v4382, %v4629
    %v4881 = vsel %vm507, %v4383, %v4630
    %v4882 = vsel %vm514, %v4880, %v4876
    %v4883 = vsel %vm514, %v4881, %v4877
    %v4887 = vunpack.c.l.s4 1966171168
    %v4888 = vunpack.c.0.s8 %v4887
    %v4889 = vlaneseq
    %v4890 = vshrl.u32 %v4889, 7
    %v4891 = vsub.s32 %v4888, %v4890
    %v4892 = vrot.slane %v4882, %v4891
    %v4893 = vcombine.high %v4892, %v4892
    %v4895 = vunpack.c.l.s4 1966171168
    %v4896 = vunpack.c.0.s8 %v4895
    %v4897 = vlaneseq
    %v4898 = vshrl.u32 %v4897, 7
    %v4899 = vsub.s32 %v4896, %v4898
    %v4900 = vrot.slane %v4892, %v4899
    %v4902 = vunpack.c.l.s4 1966171168
    %v4903 = vunpack.c.0.s8 %v4902
    %v4904 = vlaneseq
    %v4905 = vshrl.u32 %v4904, 7
    %v4906 = vsub.s32 %v4903, %v4905
    %v4907 = vrot.slane %v4893, %v4906
    %v4908 = vcombine.high %v4900, %v4900
    %v4910 = vunpack.c.l.s4 1966171168
    %v4911 = vunpack.c.0.s8 %v4910
    %v4912 = vlaneseq
    %v4913 = vshrl.u32 %v4912, 7
    %v4914 = vsub.s32 %v4911, %v4913
    %v4915 = vrot.slane %v4883, %v4914
    %v4916 = vcombine.high %v4915, %v4915
    %v4918 = vunpack.c.l.s4 1966171168
    %v4919 = vunpack.c.0.s8 %v4918
    %v4920 = vlaneseq
    %v4921 = vshrl.u32 %v4920, 7
    %v4922 = vsub.s32 %v4919, %v4921
    %v4923 = vrot.slane %v4915, %v4922
    %v4925 = vunpack.c.l.s4 1966171168
    %v4926 = vunpack.c.0.s8 %v4925
    %v4927 = vlaneseq
    %v4928 = vshrl.u32 %v4927, 7
    %v4929 = vsub.s32 %v4926, %v4928
    %v4930 = vrot.slane %v4916, %v4929
    %v4931 = vcombine.high %v4923, %v4923
    %v4932 = vcombine.low %v2731, %v2738
    %v4933 = vcombine.low %v2739, %v2754
    %v4934 = vcombine.low %v2761, %v2762
    %v4935 = vcombine.low %v4900, %v4907
    %v4937 = vunpack.c.l.s4 1966171168
    %v4938 = vunpack.c.0.s8 %v4937
    %v4939 = vlaneseq
    %v4940 = vshrl.u32 %v4939, 7
    %v4941 = vsub.s32 %v4938, %v4940
    %v4942 = vrot.slane %v4932, %v4941
    %v4944 = vunpack.c.l.s4 1966171168
    %v4945 = vunpack.c.0.s8 %v4944
    %v4946 = vlaneseq
    %v4947 = vshrl.u32 %v4946, 7
    %v4948 = vsub.s32 %v4945, %v4947
    %v4949 = vrot.slane %v4933, %v4948
    %v4951 = vunpack.c.l.s4 1966171168
    %v4952 = vunpack.c.0.s8 %v4951
    %v4953 = vlaneseq
    %v4954 = vshrl.u32 %v4953, 7
    %v4955 = vsub.s32 %v4952, %v4954
    %v4956 = vrot.slane %v4934, %v4955
    %v4958 = vunpack.c.l.s4 1966171168
    %v4959 = vunpack.c.0.s8 %v4958
    %v4960 = vlaneseq
    %v4961 = vshrl.u32 %v4960, 7
    %v4962 = vsub.s32 %v4959, %v4961
    %v4963 = vrot.slane %v4935, %v4962
    %v4964 = vcombine.low %v4942, %v4949
    %v4965 = vcombine.low %v4956, %v4963
    %v4967 = vunpack.c.l.s4 1966171168
    %v4968 = vunpack.c.0.s8 %v4967
    %v4969 = vlaneseq
    %v4970 = vshrl.u32 %v4969, 7
    %v4971 = vsub.s32 %v4968, %v4970
    %v4972 = vrot.slane %v4964, %v4971
    %v4974 = vunpack.c.l.s4 1966171168
    %v4975 = vunpack.c.0.s8 %v4974
    %v4976 = vlaneseq
    %v4977 = vshrl.u32 %v4976, 7
    %v4978 = vsub.s32 %v4975, %v4977
    %v4979 = vrot.slane %v4965, %v4978
    %v4980 = vcombine.low %v4972, %v4979
    %v4981 = vcombine.low %v4908, %v2800
    %v4982 = vcombine.low %v2807, %v2808
    %v4983 = vcombine.low %v2823, %v2830
    %v4984 = vcombine.low %v2831, %v4923
    %v4986 = vunpack.c.l.s4 1966171168
    %v4987 = vunpack.c.0.s8 %v4986
    %v4988 = vlaneseq
    %v4989 = vshrl.u32 %v4988, 7
    %v4990 = vsub.s32 %v4987, %v4989
    %v4991 = vrot.slane %v4981, %v4990
    %v4993 = vunpack.c.l.s4 1966171168
    %v4994 = vunpack.c.0.s8 %v4993
    %v4995 = vlaneseq
    %v4996 = vshrl.u32 %v4995, 7
    %v4997 = vsub.s32 %v4994, %v4996
    %v4998 = vrot.slane %v4982, %v4997
    %v5000 = vunpack.c.l.s4 1966171168
    %v5001 = vunpack.c.0.s8 %v5000
    %v5002 = vlaneseq
    %v5003 = vshrl.u32 %v5002, 7
    %v5004 = vsub.s32 %v5001, %v5003
    %v5005 = vrot.slane %v4983, %v5004
    %v5007 = vunpack.c.l.s4 1966171168
    %v5008 = vunpack.c.0.s8 %v5007
    %v5009 = vlaneseq
    %v5010 = vshrl.u32 %v5009, 7
    %v5011 = vsub.s32 %v5008, %v5010
    %v5012 = vrot.slane %v4984, %v5011
    %v5013 = vcombine.low %v4991, %v4998
    %v5014 = vcombine.low %v5005, %v5012
    %v5016 = vunpack.c.l.s4 1966171168
    %v5017 = vunpack.c.0.s8 %v5016
    %v5018 = vlaneseq
    %v5019 = vshrl.u32 %v5018, 7
    %v5020 = vsub.s32 %v5017, %v5019
    %v5021 = vrot.slane %v5013, %v5020
    %v5023 = vunpack.c.l.s4 1966171168
    %v5024 = vunpack.c.0.s8 %v5023
    %v5025 = vlaneseq
    %v5026 = vshrl.u32 %v5025, 7
    %v5027 = vsub.s32 %v5024, %v5026
    %v5028 = vrot.slane %v5014, %v5027
    %v5029 = vcombine.low %v5021, %v5028
    %v5030 = vcombine.low %v4930, %v4931
    %v5032 = vunpack.c.l.s4 1966171168
    %v5033 = vunpack.c.0.s8 %v5032
    %v5034 = vlaneseq
    %v5035 = vshrl.u32 %v5034, 7
    %v5036 = vsub.s32 %v5033, %v5035
    %v5037 = vrot.slane %v5030, %v5036
    %v5039 = vunpack.c.l.s4 1966171168
    %v5040 = vunpack.c.0.s8 %v5039
    %v5041 = vlaneseq
    %v5042 = vshrl.u32 %v5041, 7
    %v5043 = vsub.s32 %v5040, %v5042
    %v5044 = vrot.slane %v5037, %v5043
    %v5048 = vpack.c.bf16 %v5029, %v4980
    %v5049 = vpack.c.bf16 %v5044, %v5044
    %v5050 = vld [vmem:[%s1 + $0x160] sm:$0xf]
    %v5051 = vld [vmem:[%s1 + $0x164] sm:$0xf]
    %v5052 = vld [vmem:[%s1 + $0x168] sm:$0xf]
    %v5053 = vld [vmem:[%s1 + $0x16c] sm:$0xf]
    %v5058 = vunpack.c.l.b16 %v5050
    %v5059 = vunpack.c.l.b16 %v5051
    %v5060 = vunpack.c.l.b16 %v5052
    %v5061 = vunpack.c.l.b16 %v5053
    %v5062 = vpack.c.b16 %v5059, %v5058
    %v5063 = vpack.c.b16 %v5061, %v5060
    %v5067 = vsel %vm1089, %v5048, 0
    %v5070 = vsel %vm1089, %v5049, 0
    %5072 = vmatprep.subr.bf16.mxu0 0
    %5073 = vmatpush1.bf16.msra.mxu0 0
    %5074 = vmatprep.subr.bf16.mxu0 0
    %5075 = vmatpush1.bf16.msra.mxu0 0
    %5076 = vmatprep.subr.bf16.mxu0 0
    %5077 = vmatpush1.bf16.msra.mxu0 0
    %5078 = vmatprep.subr.bf16.mxu0 0
    %5079 = vmatpush1.bf16.msra.mxu0 0
    %5080 = vmatprep.subr.bf16.mxu0 0
    %5081 = vmatpush1.bf16.msra.mxu0 0
    %5082 = vmatprep.subr.bf16.mxu0 0
    %5083 = vmatpush1.bf16.msra.mxu0 0
    %5084 = vmatprep.subr.bf16.mxu0 0
    %5085 = vmatpush1.bf16.msra.mxu0 %v5063
    %5086 = vmatprep.subr.bf16.mxu0 0
    %5087 = vmatpush1.bf16.msra.mxu0 %v5062
    %5088 = vmatprep.subr.bf16.mxu0 0
    %5089 = vmatpush2.bf16.msra.mxu0 0
    %5090 = vmatprep.subr.bf16.mxu0 0
    %5091 = vmatpush2.bf16.msra.mxu0 0
    %5092 = vmatprep.subr.bf16.mxu0 0
    %5093 = vmatpush2.bf16.msra.mxu0 0
    %5094 = vmatprep.subr.bf16.mxu0 0
    %5095 = vmatpush2.bf16.msra.mxu0 0
    %5096 = vmatprep.subr.bf16.mxu0 0
    %5097 = vmatpush2.bf16.msra.mxu0 0
    %5098 = vmatprep.subr.bf16.mxu0 0
    %5099 = vmatpush2.bf16.msra.mxu0 0
    %5100 = vmatprep.subr.bf16.mxu0 0
    %5101 = vmatpush2.bf16.msra.mxu0 0
    %5102 = vmatprep.subr.bf16.mxu0 0
    %5103 = vmatpush2.bf16.msra.mxu0 0
    %5104 = vmatprep.mubr.bf16.mxu0 0
    %5105 = vmatmul.mubr.bf16.gmra.mxu0 %v5067
    %v5106 = vpop.f32.mrf.mxu0
    %v5107 = vadd.f32 0.0, %v5106
    %v5108 = vpop.f32.mrf.mxu0
    %v5109 = vpop.f32.mrf.mxu0
    %v5110 = vadd.f32 0.0, %v5109
    %v5111 = vpop.f32.mrf.mxu0
    %5112 = vmatprep.mubr.bf16.mxu0 0
    %5113 = vmatmul.mubr.bf16.gmra.mxu0 %v5070
    %v5114 = vpop.f32.mrf.mxu0
    %v5115 = vadd.f32 0.0, %v5114
    %v5116 = vpop.f32.mrf.mxu0
    %v5117 = vpop.f32.mrf.mxu0
    %v5118 = vpop.f32.mrf.mxu0
    %5119 = vdwg.mxu0
    %v5120 = vadd.f32 %v4873, %v5107
    %v5121 = vadd.f32 %v4874, %v5110
    %v5122 = vadd.f32 %v4875, %v5115
    %v5123 = vrot.slane %v468, 5
    %v5124 = vrot.slane %v476, 5
    %v5127 = vsel %vm507, %v4629, %v4876
    %v5128 = vsel %vm507, %v4630, %v4877
    %v5129 = vsel %vm514, %v5127, %v5123
    %v5130 = vsel %vm514, %v5128, %v5124
    %v5134 = vunpack.c.l.s4 1966171168
    %v5135 = vunpack.c.0.s8 %v5134
    %v5136 = vlaneseq
    %v5137 = vshrl.u32 %v5136, 7
    %v5138 = vsub.s32 %v5135, %v5137
    %v5139 = vrot.slane %v5129, %v5138
    %v5140 = vcombine.high %v5139, %v5139
    %v5142 = vunpack.c.l.s4 1966171168
    %v5143 = vunpack.c.0.s8 %v5142
    %v5144 = vlaneseq
    %v5145 = vshrl.u32 %v5144, 7
    %v5146 = vsub.s32 %v5143, %v5145
    %v5147 = vrot.slane %v5139, %v5146
    %v5149 = vunpack.c.l.s4 1966171168
    %v5150 = vunpack.c.0.s8 %v5149
    %v5151 = vlaneseq
    %v5152 = vshrl.u32 %v5151, 7
    %v5153 = vsub.s32 %v5150, %v5152
    %v5154 = vrot.slane %v5140, %v5153
    %v5155 = vcombine.high %v5147, %v5147
    %v5157 = vunpack.c.l.s4 1966171168
    %v5158 = vunpack.c.0.s8 %v5157
    %v5159 = vlaneseq
    %v5160 = vshrl.u32 %v5159, 7
    %v5161 = vsub.s32 %v5158, %v5160
    %v5162 = vrot.slane %v5130, %v5161
    %v5163 = vcombine.high %v5162, %v5162
    %v5165 = vunpack.c.l.s4 1966171168
    %v5166 = vunpack.c.0.s8 %v5165
    %v5167 = vlaneseq
    %v5168 = vshrl.u32 %v5167, 7
    %v5169 = vsub.s32 %v5166, %v5168
    %v5170 = vrot.slane %v5162, %v5169
    %v5172 = vunpack.c.l.s4 1966171168
    %v5173 = vunpack.c.0.s8 %v5172
    %v5174 = vlaneseq
    %v5175 = vshrl.u32 %v5174, 7
    %v5176 = vsub.s32 %v5173, %v5175
    %v5177 = vrot.slane %v5163, %v5176
    %v5178 = vcombine.high %v5170, %v5170
    %v5179 = vcombine.low %v3090, %v3097
    %v5180 = vcombine.low %v3098, %v3113
    %v5181 = vcombine.low %v3120, %v3121
    %v5182 = vcombine.low %v5147, %v5154
    %v5184 = vunpack.c.l.s4 1966171168
    %v5185 = vunpack.c.0.s8 %v5184
    %v5186 = vlaneseq
    %v5187 = vshrl.u32 %v5186, 7
    %v5188 = vsub.s32 %v5185, %v5187
    %v5189 = vrot.slane %v5179, %v5188
    %v5191 = vunpack.c.l.s4 1966171168
    %v5192 = vunpack.c.0.s8 %v5191
    %v5193 = vlaneseq
    %v5194 = vshrl.u32 %v5193, 7
    %v5195 = vsub.s32 %v5192, %v5194
    %v5196 = vrot.slane %v5180, %v5195
    %v5198 = vunpack.c.l.s4 1966171168
    %v5199 = vunpack.c.0.s8 %v5198
    %v5200 = vlaneseq
    %v5201 = vshrl.u32 %v5200, 7
    %v5202 = vsub.s32 %v5199, %v5201
    %v5203 = vrot.slane %v5181, %v5202
    %v5205 = vunpack.c.l.s4 1966171168
    %v5206 = vunpack.c.0.s8 %v5205
    %v5207 = vlaneseq
    %v5208 = vshrl.u32 %v5207, 7
    %v5209 = vsub.s32 %v5206, %v5208
    %v5210 = vrot.slane %v5182, %v5209
    %v5211 = vcombine.low %v5189, %v5196
    %v5212 = vcombine.low %v5203, %v5210
    %v5214 = vunpack.c.l.s4 1966171168
    %v5215 = vunpack.c.0.s8 %v5214
    %v5216 = vlaneseq
    %v5217 = vshrl.u32 %v5216, 7
    %v5218 = vsub.s32 %v5215, %v5217
    %v5219 = vrot.slane %v5211, %v5218
    %v5221 = vunpack.c.l.s4 1966171168
    %v5222 = vunpack.c.0.s8 %v5221
    %v5223 = vlaneseq
    %v5224 = vshrl.u32 %v5223, 7
    %v5225 = vsub.s32 %v5222, %v5224
    %v5226 = vrot.slane %v5212, %v5225
    %v5227 = vcombine.low %v5219, %v5226
    %v5228 = vcombine.low %v5155, %v3159
    %v5229 = vcombine.low %v3166, %v3167
    %v5230 = vcombine.low %v3182, %v3189
    %v5231 = vcombine.low %v3190, %v5170
    %v5233 = vunpack.c.l.s4 1966171168
    %v5234 = vunpack.c.0.s8 %v5233
    %v5235 = vlaneseq
    %v5236 = vshrl.u32 %v5235, 7
    %v5237 = vsub.s32 %v5234, %v5236
    %v5238 = vrot.slane %v5228, %v5237
    %v5240 = vunpack.c.l.s4 1966171168
    %v5241 = vunpack.c.0.s8 %v5240
    %v5242 = vlaneseq
    %v5243 = vshrl.u32 %v5242, 7
    %v5244 = vsub.s32 %v5241, %v5243
    %v5245 = vrot.slane %v5229, %v5244
    %v5247 = vunpack.c.l.s4 1966171168
    %v5248 = vunpack.c.0.s8 %v5247
    %v5249 = vlaneseq
    %v5250 = vshrl.u32 %v5249, 7
    %v5251 = vsub.s32 %v5248, %v5250
    %v5252 = vrot.slane %v5230, %v5251
    %v5254 = vunpack.c.l.s4 1966171168
    %v5255 = vunpack.c.0.s8 %v5254
    %v5256 = vlaneseq
    %v5257 = vshrl.u32 %v5256, 7
    %v5258 = vsub.s32 %v5255, %v5257
    %v5259 = vrot.slane %v5231, %v5258
    %v5260 = vcombine.low %v5238, %v5245
    %v5261 = vcombine.low %v5252, %v5259
    %v5263 = vunpack.c.l.s4 1966171168
    %v5264 = vunpack.c.0.s8 %v5263
    %v5265 = vlaneseq
    %v5266 = vshrl.u32 %v5265, 7
    %v5267 = vsub.s32 %v5264, %v5266
    %v5268 = vrot.slane %v5260, %v5267
    %v5270 = vunpack.c.l.s4 1966171168
    %v5271 = vunpack.c.0.s8 %v5270
    %v5272 = vlaneseq
    %v5273 = vshrl.u32 %v5272, 7
    %v5274 = vsub.s32 %v5271, %v5273
    %v5275 = vrot.slane %v5261, %v5274
    %v5276 = vcombine.low %v5268, %v5275
    %v5277 = vcombine.low %v5177, %v5178
    %v5279 = vunpack.c.l.s4 1966171168
    %v5280 = vunpack.c.0.s8 %v5279
    %v5281 = vlaneseq
    %v5282 = vshrl.u32 %v5281, 7
    %v5283 = vsub.s32 %v5280, %v5282
    %v5284 = vrot.slane %v5277, %v5283
    %v5286 = vunpack.c.l.s4 1966171168
    %v5287 = vunpack.c.0.s8 %v5286
    %v5288 = vlaneseq
    %v5289 = vshrl.u32 %v5288, 7
    %v5290 = vsub.s32 %v5287, %v5289
    %v5291 = vrot.slane %v5284, %v5290
    %v5295 = vpack.c.bf16 %v5276, %v5227
    %v5296 = vpack.c.bf16 %v5291, %v5291
    %v5297 = vld [vmem:[%s1 + $0x170] sm:$0xf]
    %v5298 = vld [vmem:[%s1 + $0x174] sm:$0xf]
    %v5299 = vld [vmem:[%s1 + $0x178] sm:$0xf]
    %v5300 = vld [vmem:[%s1 + $0x17c] sm:$0xf]
    %v5305 = vunpack.c.l.b16 %v5297
    %v5306 = vunpack.c.l.b16 %v5298
    %v5307 = vunpack.c.l.b16 %v5299
    %v5308 = vunpack.c.l.b16 %v5300
    %v5309 = vpack.c.b16 %v5306, %v5305
    %v5310 = vpack.c.b16 %v5308, %v5307
    %v5314 = vsel %vm1089, %v5295, 0
    %v5317 = vsel %vm1089, %v5296, 0
    %5319 = vmatprep.subr.bf16.mxu0 0
    %5320 = vmatpush1.bf16.msra.mxu0 0
    %5321 = vmatprep.subr.bf16.mxu0 0
    %5322 = vmatpush1.bf16.msra.mxu0 0
    %5323 = vmatprep.subr.bf16.mxu0 0
    %5324 = vmatpush1.bf16.msra.mxu0 0
    %5325 = vmatprep.subr.bf16.mxu0 0
    %5326 = vmatpush1.bf16.msra.mxu0 0
    %5327 = vmatprep.subr.bf16.mxu0 0
    %5328 = vmatpush1.bf16.msra.mxu0 0
    %5329 = vmatprep.subr.bf16.mxu0 0
    %5330 = vmatpush1.bf16.msra.mxu0 0
    %5331 = vmatprep.subr.bf16.mxu0 0
    %5332 = vmatpush1.bf16.msra.mxu0 %v5310
    %5333 = vmatprep.subr.bf16.mxu0 0
    %5334 = vmatpush1.bf16.msra.mxu0 %v5309
    %5335 = vmatprep.subr.bf16.mxu0 0
    %5336 = vmatpush2.bf16.msra.mxu0 0
    %5337 = vmatprep.subr.bf16.mxu0 0
    %5338 = vmatpush2.bf16.msra.mxu0 0
    %5339 = vmatprep.subr.bf16.mxu0 0
    %5340 = vmatpush2.bf16.msra.mxu0 0
    %5341 = vmatprep.subr.bf16.mxu0 0
    %5342 = vmatpush2.bf16.msra.mxu0 0
    %5343 = vmatprep.subr.bf16.mxu0 0
    %5344 = vmatpush2.bf16.msra.mxu0 0
    %5345 = vmatprep.subr.bf16.mxu0 0
    %5346 = vmatpush2.bf16.msra.mxu0 0
    %5347 = vmatprep.subr.bf16.mxu0 0
    %5348 = vmatpush2.bf16.msra.mxu0 0
    %5349 = vmatprep.subr.bf16.mxu0 0
    %5350 = vmatpush2.bf16.msra.mxu0 0
    %5351 = vmatprep.mubr.bf16.mxu0 0
    %5352 = vmatmul.mubr.bf16.gmra.mxu0 %v5314
    %v5353 = vpop.f32.mrf.mxu0
    %v5354 = vadd.f32 0.0, %v5353
    %v5355 = vpop.f32.mrf.mxu0
    %v5356 = vpop.f32.mrf.mxu0
    %v5357 = vadd.f32 0.0, %v5356
    %v5358 = vpop.f32.mrf.mxu0
    %5359 = vmatprep.mubr.bf16.mxu0 0
    %5360 = vmatmul.mubr.bf16.gmra.mxu0 %v5317
    %v5361 = vpop.f32.mrf.mxu0
    %v5362 = vadd.f32 0.0, %v5361
    %v5363 = vpop.f32.mrf.mxu0
    %v5364 = vpop.f32.mrf.mxu0
    %v5365 = vpop.f32.mrf.mxu0
    %5366 = vdwg.mxu0
    %v5367 = vadd.f32 %v5120, %v5354
    %v5368 = vadd.f32 %v5121, %v5357
    %v5369 = vadd.f32 %v5122, %v5362
    %v5370 = vadd.f32 %v5367, %v5368
    %v5371 = vsel %vm514, %v5369, 0.0
    %v5372 = vadd.f32 %v5370, %v5371
    %v5373 = vrot.slane %v5372, 4
    %v5374 = vadd.f32 %v5372, %v5373
    %v5375 = vrot.slane %v5374, 2
    %v5376 = vadd.f32 %v5374, %v5375
    %v5377 = vrot.slane %v5376, 1
    %v5378 = vadd.f32 %v5376, %v5377
    %v5379 = vmul.f32 %v5378, 0.055555556
    %v5380 = vsub.f32 %v5367, %v5379
    %v5381 = vsub.f32 %v5368, %v5379
    %v5382 = vsub.f32 %v5369, %v5379
    %v5383 = vmul.f32 %v5380, %v5380
    %v5384 = vmul.f32 %v5381, %v5381
    %v5385 = vmul.f32 %v5382, %v5382
    %v5386 = vadd.f32 %v5383, %v5384
    %v5387 = vsel %vm514, %v5385, 0.0
    %v5388 = vadd.f32 %v5386, %v5387
    %v5389 = vrot.slane %v5388, 4
    %v5390 = vadd.f32 %v5388, %v5389
    %v5391 = vrot.slane %v5390, 2
    %v5392 = vadd.f32 %v5390, %v5391
    %v5393 = vrot.slane %v5392, 1
    %v5394 = vadd.f32 %v5392, %v5393
    %v5395 = vmul.f32 %v5394, 0.055555556
    %v5396 = vadd.f32 %v5395, 1e-05
    %v5397 = vrsqrt.pop %v5396
    %v5398 = vmul.f32 %v19, %v5397
    %v5399 = vlaneseq
    %v5400 = vshrl.u32 %v5399, 7
    %v5401 = vsub.s32 2, %v5400
    %v5402 = vrot.slane %v5398, %v5401
    %v5403 = vmul.f32 %v5380, %v5402
    %v5404 = vmul.f32 %v5381, %v5402
    %v5405 = vmul.f32 %v5382, %v5402
    %v5406 = vlaneseq
    %v5407 = vshrl.u32 %v5406, 7
    %v5408 = vsub.s32 3, %v5407
    %v5409 = vrot.slane %v19, %v5408
    %v5410 = vadd.f32 %v5403, %v5409
    %v5411 = vadd.f32 %v5404, %v5409
    %v5412 = vadd.f32 %v5405, %v5409
    %v5413 = vmax.f32 %v5410, 0.0
    %v5414 = vmax.f32 %v5411, 0.0
    %v5415 = vmax.f32 %v5412, 0.0
    %v5419 = vcombine.high %v5413, %v5413
    %v5421 = vunpack.c.l.s4 1966171168
    %v5422 = vunpack.c.0.s8 %v5421
    %v5423 = vlaneseq
    %v5424 = vshrl.u32 %v5423, 7
    %v5425 = vsub.s32 %v5422, %v5424
    %v5426 = vrot.slane %v5413, %v5425
    %v5428 = vunpack.c.l.s4 1966171168
    %v5429 = vunpack.c.0.s8 %v5428
    %v5430 = vlaneseq
    %v5431 = vshrl.u32 %v5430, 7
    %v5432 = vsub.s32 %v5429, %v5431
    %v5433 = vrot.slane %v5419, %v5432
    %v5434 = vcombine.high %v5426, %v5426
    %v5435 = vcombine.high %v5433, %v5433
    %v5437 = vunpack.c.l.s4 1966171168
    %v5438 = vunpack.c.0.s8 %v5437
    %v5439 = vlaneseq
    %v5440 = vshrl.u32 %v5439, 7
    %v5441 = vsub.s32 %v5438, %v5440
    %v5442 = vrot.slane %v5426, %v5441
    %v5444 = vunpack.c.l.s4 1966171168
    %v5445 = vunpack.c.0.s8 %v5444
    %v5446 = vlaneseq
    %v5447 = vshrl.u32 %v5446, 7
    %v5448 = vsub.s32 %v5445, %v5447
    %v5449 = vrot.slane %v5433, %v5448
    %v5451 = vunpack.c.l.s4 1966171168
    %v5452 = vunpack.c.0.s8 %v5451
    %v5453 = vlaneseq
    %v5454 = vshrl.u32 %v5453, 7
    %v5455 = vsub.s32 %v5452, %v5454
    %v5456 = vrot.slane %v5434, %v5455
    %v5458 = vunpack.c.l.s4 1966171168
    %v5459 = vunpack.c.0.s8 %v5458
    %v5460 = vlaneseq
    %v5461 = vshrl.u32 %v5460, 7
    %v5462 = vsub.s32 %v5459, %v5461
    %v5463 = vrot.slane %v5435, %v5462
    %v5464 = vcombine.high %v5442, %v5442
    %v5465 = vcombine.high %v5449, %v5449
    %v5466 = vcombine.high %v5456, %v5456
    %v5467 = vcombine.high %v5463, %v5463
    %v5468 = vcombine.high %v5414, %v5414
    %v5470 = vunpack.c.l.s4 1966171168
    %v5471 = vunpack.c.0.s8 %v5470
    %v5472 = vlaneseq
    %v5473 = vshrl.u32 %v5472, 7
    %v5474 = vsub.s32 %v5471, %v5473
    %v5475 = vrot.slane %v5414, %v5474
    %v5477 = vunpack.c.l.s4 1966171168
    %v5478 = vunpack.c.0.s8 %v5477
    %v5479 = vlaneseq
    %v5480 = vshrl.u32 %v5479, 7
    %v5481 = vsub.s32 %v5478, %v5480
    %v5482 = vrot.slane %v5468, %v5481
    %v5483 = vcombine.high %v5475, %v5475
    %v5484 = vcombine.high %v5482, %v5482
    %v5486 = vunpack.c.l.s4 1966171168
    %v5487 = vunpack.c.0.s8 %v5486
    %v5488 = vlaneseq
    %v5489 = vshrl.u32 %v5488, 7
    %v5490 = vsub.s32 %v5487, %v5489
    %v5491 = vrot.slane %v5475, %v5490
    %v5493 = vunpack.c.l.s4 1966171168
    %v5494 = vunpack.c.0.s8 %v5493
    %v5495 = vlaneseq
    %v5496 = vshrl.u32 %v5495, 7
    %v5497 = vsub.s32 %v5494, %v5496
    %v5498 = vrot.slane %v5482, %v5497
    %v5500 = vunpack.c.l.s4 1966171168
    %v5501 = vunpack.c.0.s8 %v5500
    %v5502 = vlaneseq
    %v5503 = vshrl.u32 %v5502, 7
    %v5504 = vsub.s32 %v5501, %v5503
    %v5505 = vrot.slane %v5483, %v5504
    %v5507 = vunpack.c.l.s4 1966171168
    %v5508 = vunpack.c.0.s8 %v5507
    %v5509 = vlaneseq
    %v5510 = vshrl.u32 %v5509, 7
    %v5511 = vsub.s32 %v5508, %v5510
    %v5512 = vrot.slane %v5484, %v5511
    %v5513 = vcombine.high %v5491, %v5491
    %v5514 = vcombine.high %v5498, %v5498
    %v5515 = vcombine.high %v5505, %v5505
    %v5516 = vcombine.high %v5512, %v5512
    %v5518 = vunpack.c.l.s4 1966171168
    %v5519 = vunpack.c.0.s8 %v5518
    %v5520 = vlaneseq
    %v5521 = vshrl.u32 %v5520, 7
    %v5522 = vsub.s32 %v5519, %v5521
    %v5523 = vrot.slane %v5415, %v5522
    %v5524 = vcombine.high %v5523, %v5523
    %v5526 = vunpack.c.l.s4 1966171168
    %v5527 = vunpack.c.0.s8 %v5526
    %v5528 = vlaneseq
    %v5529 = vshrl.u32 %v5528, 7
    %v5530 = vsub.s32 %v5527, %v5529
    %v5531 = vrot.slane %v5523, %v5530
    %v5533 = vunpack.c.l.s4 1966171168
    %v5534 = vunpack.c.0.s8 %v5533
    %v5535 = vlaneseq
    %v5536 = vshrl.u32 %v5535, 7
    %v5537 = vsub.s32 %v5534, %v5536
    %v5538 = vrot.slane %v5524, %v5537
    %v5557 = vpack.c.bf16 %v5442, %v5442
    %v5558 = vpack.c.bf16 %v5505, %v5505
    %v5559 = vld [vmem:[%s1 + $0x180] sm:$0xf]
    %v5560 = vld [vmem:[%s1 + $0x184] sm:$0xf]
    %v5561 = vld [vmem:[%s1 + $0x188] sm:$0xf]
    %v5562 = vld [vmem:[%s1 + $0x18c] sm:$0xf]
    %v5563 = vld [vmem:[%s1 + $0x190] sm:$0xf]
    %v5564 = vld [vmem:[%s1 + $0x194] sm:$0xf]
    %v5565 = vld [vmem:[%s1 + $0x198] sm:$0xf]
    %v5566 = vld [vmem:[%s1 + $0x19c] sm:$0xf]
    %v5567 = vpack.c.bf16 %v5456, %v5456
    %v5568 = vpack.c.bf16 %v5513, %v5513
    %v5569 = vld [vmem:[%s1 + $0x1a0] sm:$0xf]
    %v5570 = vld [vmem:[%s1 + $0x1a4] sm:$0xf]
    %v5571 = vld [vmem:[%s1 + $0x1a8] sm:$0xf]
    %v5572 = vld [vmem:[%s1 + $0x1ac] sm:$0xf]
    %v5573 = vld [vmem:[%s1 + $0x1b0] sm:$0xf]
    %v5574 = vld [vmem:[%s1 + $0x1b4] sm:$0xf]
    %v5575 = vld [vmem:[%s1 + $0x1b8] sm:$0xf]
    %v5576 = vld [vmem:[%s1 + $0x1bc] sm:$0xf]
    %v5579 = vunpack.c.l.b16 %v5567
    %v5580 = vunpack.c.l.b16 %v5568
    %v5581 = vrot.slane %v5580, 7
    %vm5582 = vcmask 1041409
    %v5583 = vsel %vm5582, %v5581, %v5579
    %v5584 = vpack.c.b16 %v5583, %v5583
    %v5593 = vunpack.c.l.b16 %v5569
    %v5594 = vunpack.c.l.b16 %v5570
    %v5595 = vunpack.c.l.b16 %v5571
    %v5596 = vunpack.c.l.b16 %v5572
    %v5597 = vunpack.c.l.b16 %v5573
    %v5598 = vunpack.c.l.b16 %v5574
    %v5599 = vunpack.c.l.b16 %v5575
    %v5600 = vunpack.c.l.b16 %v5576
    %v5601 = vpack.c.b16 %v5594, %v5593
    %v5602 = vpack.c.b16 %v5596, %v5595
    %v5603 = vpack.c.b16 %v5598, %v5597
    %v5604 = vpack.c.b16 %v5600, %v5599
    %vm5609 = vcmask 523264
    %v5611 = vsel %vm5609, %v5584, 0
    %5613 = vmatprep.subr.bf16.mxu0 0
    %5614 = vmatpush1.bf16.msra.mxu0 0
    %5615 = vmatprep.subr.bf16.mxu0 0
    %5616 = vmatpush1.bf16.msra.mxu0 0
    %5617 = vmatprep.subr.bf16.mxu0 0
    %5618 = vmatpush1.bf16.msra.mxu0 0
    %5619 = vmatprep.subr.bf16.mxu0 0
    %5620 = vmatpush1.bf16.msra.mxu0 0
    %5621 = vmatprep.subr.bf16.mxu0 0
    %5622 = vmatpush1.bf16.msra.mxu0 %v5604
    %5623 = vmatprep.subr.bf16.mxu0 0
    %5624 = vmatpush1.bf16.msra.mxu0 %v5603
    %5625 = vmatprep.subr.bf16.mxu0 0
    %5626 = vmatpush1.bf16.msra.mxu0 %v5602
    %5627 = vmatprep.subr.bf16.mxu0 0
    %5628 = vmatpush1.bf16.msra.mxu0 %v5601
    %5629 = vmatprep.subr.bf16.mxu0 0
    %5630 = vmatpush2.bf16.msra.mxu0 0
    %5631 = vmatprep.subr.bf16.mxu0 0
    %5632 = vmatpush2.bf16.msra.mxu0 0
    %5633 = vmatprep.subr.bf16.mxu0 0
    %5634 = vmatpush2.bf16.msra.mxu0 0
    %5635 = vmatprep.subr.bf16.mxu0 0
    %5636 = vmatpush2.bf16.msra.mxu0 0
    %5637 = vmatprep.subr.bf16.mxu0 0
    %5638 = vmatpush2.bf16.msra.mxu0 0
    %5639 = vmatprep.subr.bf16.mxu0 0
    %5640 = vmatpush2.bf16.msra.mxu0 0
    %5641 = vmatprep.subr.bf16.mxu0 0
    %5642 = vmatpush2.bf16.msra.mxu0 0
    %5643 = vmatprep.subr.bf16.mxu0 0
    %5644 = vmatpush2.bf16.msra.mxu0 0
    %5645 = vmatprep.mubr.bf16.mxu0 0
    %5646 = vmatmul.mubr.bf16.gmra.mxu0 %v5611
    %v5647 = vpop.f32.mrf.mxu0
    %v5648 = vadd.f32 0.0, %v5647
    %v5649 = vpop.f32.mrf.mxu0
    %v5650 = vpop.f32.mrf.mxu0
    %v5651 = vpop.f32.mrf.mxu0
    %5652 = vdwg.mxu0
    %v5655 = vunpack.c.l.b16 %v5557
    %v5656 = vunpack.c.l.b16 %v5558
    %v5657 = vrot.slane %v5656, 7
    %v5658 = vsel %vm5582, %v5657, %v5655
    %v5659 = vpack.c.b16 %v5658, %v5658
    %v5668 = vunpack.c.l.b16 %v5559
    %v5669 = vunpack.c.l.b16 %v5560
    %v5670 = vunpack.c.l.b16 %v5561
    %v5671 = vunpack.c.l.b16 %v5562
    %v5672 = vunpack.c.l.b16 %v5563
    %v5673 = vunpack.c.l.b16 %v5564
    %v5674 = vunpack.c.l.b16 %v5565
    %v5675 = vunpack.c.l.b16 %v5566
    %v5676 = vpack.c.b16 %v5669, %v5668
    %v5677 = vpack.c.b16 %v5671, %v5670
    %v5678 = vpack.c.b16 %v5673, %v5672
    %v5679 = vpack.c.b16 %v5675, %v5674
    %v5685 = vsel %vm5609, %v5659, 0
    %5687 = vmatprep.subr.bf16.mxu0 0
    %5688 = vmatpush1.bf16.msra.mxu0 0
    %5689 = vmatprep.subr.bf16.mxu0 0
    %5690 = vmatpush1.bf16.msra.mxu0 0
    %5691 = vmatprep.subr.bf16.mxu0 0
    %5692 = vmatpush1.bf16.msra.mxu0 0
    %5693 = vmatprep.subr.bf16.mxu0 0
    %5694 = vmatpush1.bf16.msra.mxu0 0
    %5695 = vmatprep.subr.bf16.mxu0 0
    %5696 = vmatpush1.bf16.msra.mxu0 %v5679
    %5697 = vmatprep.subr.bf16.mxu0 0
    %5698 = vmatpush1.bf16.msra.mxu0 %v5678
    %5699 = vmatprep.subr.bf16.mxu0 0
    %5700 = vmatpush1.bf16.msra.mxu0 %v5677
    %5701 = vmatprep.subr.bf16.mxu0 0
    %5702 = vmatpush1.bf16.msra.mxu0 %v5676
    %5703 = vmatprep.subr.bf16.mxu0 0
    %5704 = vmatpush2.bf16.msra.mxu0 0
    %5705 = vmatprep.subr.bf16.mxu0 0
    %5706 = vmatpush2.bf16.msra.mxu0 0
    %5707 = vmatprep.subr.bf16.mxu0 0
    %5708 = vmatpush2.bf16.msra.mxu0 0
    %5709 = vmatprep.subr.bf16.mxu0 0
    %5710 = vmatpush2.bf16.msra.mxu0 0
    %5711 = vmatprep.subr.bf16.mxu0 0
    %5712 = vmatpush2.bf16.msra.mxu0 0
    %5713 = vmatprep.subr.bf16.mxu0 0
    %5714 = vmatpush2.bf16.msra.mxu0 0
    %5715 = vmatprep.subr.bf16.mxu0 0
    %5716 = vmatpush2.bf16.msra.mxu0 0
    %5717 = vmatprep.subr.bf16.mxu0 0
    %5718 = vmatpush2.bf16.msra.mxu0 0
    %5719 = vmatprep.mubr.bf16.mxu0 0
    %5720 = vmatmul.mubr.bf16.gmra.mxu0 %v5685
    %v5721 = vpop.f32.mrf.mxu0
    %v5722 = vadd.f32 %v5648, %v5721
    %v5723 = vpop.f32.mrf.mxu0
    %v5724 = vpop.f32.mrf.mxu0
    %v5725 = vpop.f32.mrf.mxu0
    %5726 = vdwg.mxu0
    %v5727 = vpack.c.bf16 %v5464, %v5464
    %v5728 = vpack.c.bf16 %v5515, %v5515
    %v5729 = vld [vmem:[%s1 + $0x1c0] sm:$0xf]
    %v5730 = vld [vmem:[%s1 + $0x1c4] sm:$0xf]
    %v5731 = vld [vmem:[%s1 + $0x1c8] sm:$0xf]
    %v5732 = vld [vmem:[%s1 + $0x1cc] sm:$0xf]
    %v5733 = vld [vmem:[%s1 + $0x1d0] sm:$0xf]
    %v5734 = vld [vmem:[%s1 + $0x1d4] sm:$0xf]
    %v5735 = vld [vmem:[%s1 + $0x1d8] sm:$0xf]
    %v5736 = vld [vmem:[%s1 + $0x1dc] sm:$0xf]
    %v5739 = vunpack.c.l.b16 %v5727
    %v5740 = vunpack.c.l.b16 %v5728
    %v5741 = vrot.slane %v5740, 7
    %v5742 = vsel %vm5582, %v5741, %v5739
    %v5743 = vpack.c.b16 %v5742, %v5742
    %v5752 = vunpack.c.l.b16 %v5729
    %v5753 = vunpack.c.l.b16 %v5730
    %v5754 = vunpack.c.l.b16 %v5731
    %v5755 = vunpack.c.l.b16 %v5732
    %v5756 = vunpack.c.l.b16 %v5733
    %v5757 = vunpack.c.l.b16 %v5734
    %v5758 = vunpack.c.l.b16 %v5735
    %v5759 = vunpack.c.l.b16 %v5736
    %v5760 = vpack.c.b16 %v5753, %v5752
    %v5761 = vpack.c.b16 %v5755, %v5754
    %v5762 = vpack.c.b16 %v5757, %v5756
    %v5763 = vpack.c.b16 %v5759, %v5758
    %v5769 = vsel %vm5609, %v5743, 0
    %5771 = vmatprep.subr.bf16.mxu0 0
    %5772 = vmatpush1.bf16.msra.mxu0 0
    %5773 = vmatprep.subr.bf16.mxu0 0
    %5774 = vmatpush1.bf16.msra.mxu0 0
    %5775 = vmatprep.subr.bf16.mxu0 0
    %5776 = vmatpush1.bf16.msra.mxu0 0
    %5777 = vmatprep.subr.bf16.mxu0 0
    %5778 = vmatpush1.bf16.msra.mxu0 0
    %5779 = vmatprep.subr.bf16.mxu0 0
    %5780 = vmatpush1.bf16.msra.mxu0 %v5763
    %5781 = vmatprep.subr.bf16.mxu0 0
    %5782 = vmatpush1.bf16.msra.mxu0 %v5762
    %5783 = vmatprep.subr.bf16.mxu0 0
    %5784 = vmatpush1.bf16.msra.mxu0 %v5761
    %5785 = vmatprep.subr.bf16.mxu0 0
    %5786 = vmatpush1.bf16.msra.mxu0 %v5760
    %5787 = vmatprep.subr.bf16.mxu0 0
    %5788 = vmatpush2.bf16.msra.mxu0 0
    %5789 = vmatprep.subr.bf16.mxu0 0
    %5790 = vmatpush2.bf16.msra.mxu0 0
    %5791 = vmatprep.subr.bf16.mxu0 0
    %5792 = vmatpush2.bf16.msra.mxu0 0
    %5793 = vmatprep.subr.bf16.mxu0 0
    %5794 = vmatpush2.bf16.msra.mxu0 0
    %5795 = vmatprep.subr.bf16.mxu0 0
    %5796 = vmatpush2.bf16.msra.mxu0 0
    %5797 = vmatprep.subr.bf16.mxu0 0
    %5798 = vmatpush2.bf16.msra.mxu0 0
    %5799 = vmatprep.subr.bf16.mxu0 0
    %5800 = vmatpush2.bf16.msra.mxu0 0
    %5801 = vmatprep.subr.bf16.mxu0 0
    %5802 = vmatpush2.bf16.msra.mxu0 0
    %5803 = vmatprep.mubr.bf16.mxu0 0
    %5804 = vmatmul.mubr.bf16.gmra.mxu0 %v5769
    %v5805 = vpop.f32.mrf.mxu0
    %v5806 = vadd.f32 0.0, %v5805
    %v5807 = vpop.f32.mrf.mxu0
    %v5808 = vpop.f32.mrf.mxu0
    %v5809 = vpop.f32.mrf.mxu0
    %5810 = vdwg.mxu0
    %v5811 = vadd.f32 %v5722, %v5806
    %v5812 = vpack.c.bf16 %v5466, %v5466
    %v5813 = vpack.c.bf16 %v5498, %v5498
    %v5814 = vld [vmem:[%s1 + $0x1e0] sm:$0xf]
    %v5815 = vld [vmem:[%s1 + $0x1e4] sm:$0xf]
    %v5816 = vld [vmem:[%s1 + $0x1e8] sm:$0xf]
    %v5817 = vld [vmem:[%s1 + $0x1ec] sm:$0xf]
    %v5818 = vld [vmem:[%s1 + $0x1f0] sm:$0xf]
    %v5819 = vld [vmem:[%s1 + $0x1f4] sm:$0xf]
    %v5820 = vld [vmem:[%s1 + $0x1f8] sm:$0xf]
    %v5821 = vld [vmem:[%s1 + $0x1fc] sm:$0xf]
    %v5824 = vunpack.c.l.b16 %v5812
    %v5825 = vunpack.c.l.b16 %v5813
    %v5826 = vrot.slane %v5825, 7
    %v5827 = vsel %vm5582, %v5826, %v5824
    %v5828 = vpack.c.b16 %v5827, %v5827
    %v5837 = vunpack.c.l.b16 %v5814
    %v5838 = vunpack.c.l.b16 %v5815
    %v5839 = vunpack.c.l.b16 %v5816
    %v5840 = vunpack.c.l.b16 %v5817
    %v5841 = vunpack.c.l.b16 %v5818
    %v5842 = vunpack.c.l.b16 %v5819
    %v5843 = vunpack.c.l.b16 %v5820
    %v5844 = vunpack.c.l.b16 %v5821
    %v5845 = vpack.c.b16 %v5838, %v5837
    %v5846 = vpack.c.b16 %v5840, %v5839
    %v5847 = vpack.c.b16 %v5842, %v5841
    %v5848 = vpack.c.b16 %v5844, %v5843
    %v5854 = vsel %vm5609, %v5828, 0
    %5856 = vmatprep.subr.bf16.mxu0 0
    %5857 = vmatpush1.bf16.msra.mxu0 0
    %5858 = vmatprep.subr.bf16.mxu0 0
    %5859 = vmatpush1.bf16.msra.mxu0 0
    %5860 = vmatprep.subr.bf16.mxu0 0
    %5861 = vmatpush1.bf16.msra.mxu0 0
    %5862 = vmatprep.subr.bf16.mxu0 0
    %5863 = vmatpush1.bf16.msra.mxu0 0
    %5864 = vmatprep.subr.bf16.mxu0 0
    %5865 = vmatpush1.bf16.msra.mxu0 %v5848
    %5866 = vmatprep.subr.bf16.mxu0 0
    %5867 = vmatpush1.bf16.msra.mxu0 %v5847
    %5868 = vmatprep.subr.bf16.mxu0 0
    %5869 = vmatpush1.bf16.msra.mxu0 %v5846
    %5870 = vmatprep.subr.bf16.mxu0 0
    %5871 = vmatpush1.bf16.msra.mxu0 %v5845
    %5872 = vmatprep.subr.bf16.mxu0 0
    %5873 = vmatpush2.bf16.msra.mxu0 0
    %5874 = vmatprep.subr.bf16.mxu0 0
    %5875 = vmatpush2.bf16.msra.mxu0 0
    %5876 = vmatprep.subr.bf16.mxu0 0
    %5877 = vmatpush2.bf16.msra.mxu0 0
    %5878 = vmatprep.subr.bf16.mxu0 0
    %5879 = vmatpush2.bf16.msra.mxu0 0
    %5880 = vmatprep.subr.bf16.mxu0 0
    %5881 = vmatpush2.bf16.msra.mxu0 0
    %5882 = vmatprep.subr.bf16.mxu0 0
    %5883 = vmatpush2.bf16.msra.mxu0 0
    %5884 = vmatprep.subr.bf16.mxu0 0
    %5885 = vmatpush2.bf16.msra.mxu0 0
    %5886 = vmatprep.subr.bf16.mxu0 0
    %5887 = vmatpush2.bf16.msra.mxu0 0
    %5888 = vmatprep.mubr.bf16.mxu0 0
    %5889 = vmatmul.mubr.bf16.gmra.mxu0 %v5854
    %v5890 = vpop.f32.mrf.mxu0
    %v5891 = vadd.f32 0.0, %v5890
    %v5892 = vpop.f32.mrf.mxu0
    %v5893 = vpop.f32.mrf.mxu0
    %v5894 = vpop.f32.mrf.mxu0
    %5895 = vdwg.mxu0
    %v5896 = vadd.f32 %v5811, %v5891
    %v5897 = vpack.c.bf16 %v5449, %v5449
    %v5898 = vpack.c.bf16 %v5512, %v5512
    %v5899 = vld [vmem:[%s1 + $0x200] sm:$0xf]
    %v5900 = vld [vmem:[%s1 + $0x204] sm:$0xf]
    %v5901 = vld [vmem:[%s1 + $0x208] sm:$0xf]
    %v5902 = vld [vmem:[%s1 + $0x20c] sm:$0xf]
    %v5903 = vld [vmem:[%s1 + $0x210] sm:$0xf]
    %v5904 = vld [vmem:[%s1 + $0x214] sm:$0xf]
    %v5905 = vld [vmem:[%s1 + $0x218] sm:$0xf]
    %v5906 = vld [vmem:[%s1 + $0x21c] sm:$0xf]
    %v5909 = vunpack.c.l.b16 %v5897
    %v5910 = vunpack.c.l.b16 %v5898
    %v5911 = vrot.slane %v5910, 7
    %v5912 = vsel %vm5582, %v5911, %v5909
    %v5913 = vpack.c.b16 %v5912, %v5912
    %v5922 = vunpack.c.l.b16 %v5899
    %v5923 = vunpack.c.l.b16 %v5900
    %v5924 = vunpack.c.l.b16 %v5901
    %v5925 = vunpack.c.l.b16 %v5902
    %v5926 = vunpack.c.l.b16 %v5903
    %v5927 = vunpack.c.l.b16 %v5904
    %v5928 = vunpack.c.l.b16 %v5905
    %v5929 = vunpack.c.l.b16 %v5906
    %v5930 = vpack.c.b16 %v5923, %v5922
    %v5931 = vpack.c.b16 %v5925, %v5924
    %v5932 = vpack.c.b16 %v5927, %v5926
    %v5933 = vpack.c.b16 %v5929, %v5928
    %v5939 = vsel %vm5609, %v5913, 0
    %5941 = vmatprep.subr.bf16.mxu0 0
    %5942 = vmatpush1.bf16.msra.mxu0 0
    %5943 = vmatprep.subr.bf16.mxu0 0
    %5944 = vmatpush1.bf16.msra.mxu0 0
    %5945 = vmatprep.subr.bf16.mxu0 0
    %5946 = vmatpush1.bf16.msra.mxu0 0
    %5947 = vmatprep.subr.bf16.mxu0 0
    %5948 = vmatpush1.bf16.msra.mxu0 0
    %5949 = vmatprep.subr.bf16.mxu0 0
    %5950 = vmatpush1.bf16.msra.mxu0 %v5933
    %5951 = vmatprep.subr.bf16.mxu0 0
    %5952 = vmatpush1.bf16.msra.mxu0 %v5932
    %5953 = vmatprep.subr.bf16.mxu0 0
    %5954 = vmatpush1.bf16.msra.mxu0 %v5931
    %5955 = vmatprep.subr.bf16.mxu0 0
    %5956 = vmatpush1.bf16.msra.mxu0 %v5930
    %5957 = vmatprep.subr.bf16.mxu0 0
    %5958 = vmatpush2.bf16.msra.mxu0 0
    %5959 = vmatprep.subr.bf16.mxu0 0
    %5960 = vmatpush2.bf16.msra.mxu0 0
    %5961 = vmatprep.subr.bf16.mxu0 0
    %5962 = vmatpush2.bf16.msra.mxu0 0
    %5963 = vmatprep.subr.bf16.mxu0 0
    %5964 = vmatpush2.bf16.msra.mxu0 0
    %5965 = vmatprep.subr.bf16.mxu0 0
    %5966 = vmatpush2.bf16.msra.mxu0 0
    %5967 = vmatprep.subr.bf16.mxu0 0
    %5968 = vmatpush2.bf16.msra.mxu0 0
    %5969 = vmatprep.subr.bf16.mxu0 0
    %5970 = vmatpush2.bf16.msra.mxu0 0
    %5971 = vmatprep.subr.bf16.mxu0 0
    %5972 = vmatpush2.bf16.msra.mxu0 0
    %5973 = vmatprep.mubr.bf16.mxu0 0
    %5974 = vmatmul.mubr.bf16.gmra.mxu0 %v5939
    %v5975 = vpop.f32.mrf.mxu0
    %v5976 = vadd.f32 0.0, %v5975
    %v5977 = vpop.f32.mrf.mxu0
    %v5978 = vpop.f32.mrf.mxu0
    %v5979 = vpop.f32.mrf.mxu0
    %5980 = vdwg.mxu0
    %v5981 = vadd.f32 %v5896, %v5976
    %v5982 = vpack.c.bf16 %v5463, %v5463
    %v5983 = vpack.c.bf16 %v5514, %v5514
    %v5984 = vld [vmem:[%s1 + $0x220] sm:$0xf]
    %v5985 = vld [vmem:[%s1 + $0x224] sm:$0xf]
    %v5986 = vld [vmem:[%s1 + $0x228] sm:$0xf]
    %v5987 = vld [vmem:[%s1 + $0x22c] sm:$0xf]
    %v5988 = vld [vmem:[%s1 + $0x230] sm:$0xf]
    %v5989 = vld [vmem:[%s1 + $0x234] sm:$0xf]
    %v5990 = vld [vmem:[%s1 + $0x238] sm:$0xf]
    %v5991 = vld [vmem:[%s1 + $0x23c] sm:$0xf]
    %v5994 = vunpack.c.l.b16 %v5982
    %v5995 = vunpack.c.l.b16 %v5983
    %v5996 = vrot.slane %v5995, 7
    %v5997 = vsel %vm5582, %v5996, %v5994
    %v5998 = vpack.c.b16 %v5997, %v5997
    %v6007 = vunpack.c.l.b16 %v5984
    %v6008 = vunpack.c.l.b16 %v5985
    %v6009 = vunpack.c.l.b16 %v5986
    %v6010 = vunpack.c.l.b16 %v5987
    %v6011 = vunpack.c.l.b16 %v5988
    %v6012 = vunpack.c.l.b16 %v5989
    %v6013 = vunpack.c.l.b16 %v5990
    %v6014 = vunpack.c.l.b16 %v5991
    %v6015 = vpack.c.b16 %v6008, %v6007
    %v6016 = vpack.c.b16 %v6010, %v6009
    %v6017 = vpack.c.b16 %v6012, %v6011
    %v6018 = vpack.c.b16 %v6014, %v6013
    %v6024 = vsel %vm5609, %v5998, 0
    %6026 = vmatprep.subr.bf16.mxu0 0
    %6027 = vmatpush1.bf16.msra.mxu0 0
    %6028 = vmatprep.subr.bf16.mxu0 0
    %6029 = vmatpush1.bf16.msra.mxu0 0
    %6030 = vmatprep.subr.bf16.mxu0 0
    %6031 = vmatpush1.bf16.msra.mxu0 0
    %6032 = vmatprep.subr.bf16.mxu0 0
    %6033 = vmatpush1.bf16.msra.mxu0 0
    %6034 = vmatprep.subr.bf16.mxu0 0
    %6035 = vmatpush1.bf16.msra.mxu0 %v6018
    %6036 = vmatprep.subr.bf16.mxu0 0
    %6037 = vmatpush1.bf16.msra.mxu0 %v6017
    %6038 = vmatprep.subr.bf16.mxu0 0
    %6039 = vmatpush1.bf16.msra.mxu0 %v6016
    %6040 = vmatprep.subr.bf16.mxu0 0
    %6041 = vmatpush1.bf16.msra.mxu0 %v6015
    %6042 = vmatprep.subr.bf16.mxu0 0
    %6043 = vmatpush2.bf16.msra.mxu0 0
    %6044 = vmatprep.subr.bf16.mxu0 0
    %6045 = vmatpush2.bf16.msra.mxu0 0
    %6046 = vmatprep.subr.bf16.mxu0 0
    %6047 = vmatpush2.bf16.msra.mxu0 0
    %6048 = vmatprep.subr.bf16.mxu0 0
    %6049 = vmatpush2.bf16.msra.mxu0 0
    %6050 = vmatprep.subr.bf16.mxu0 0
    %6051 = vmatpush2.bf16.msra.mxu0 0
    %6052 = vmatprep.subr.bf16.mxu0 0
    %6053 = vmatpush2.bf16.msra.mxu0 0
    %6054 = vmatprep.subr.bf16.mxu0 0
    %6055 = vmatpush2.bf16.msra.mxu0 0
    %6056 = vmatprep.subr.bf16.mxu0 0
    %6057 = vmatpush2.bf16.msra.mxu0 0
    %6058 = vmatprep.mubr.bf16.mxu0 0
    %6059 = vmatmul.mubr.bf16.gmra.mxu0 %v6024
    %v6060 = vpop.f32.mrf.mxu0
    %v6061 = vadd.f32 0.0, %v6060
    %v6062 = vpop.f32.mrf.mxu0
    %v6063 = vpop.f32.mrf.mxu0
    %v6064 = vpop.f32.mrf.mxu0
    %6065 = vdwg.mxu0
    %v6066 = vadd.f32 %v5981, %v6061
    %v6067 = vpack.c.bf16 %v5465, %v5465
    %v6068 = vpack.c.bf16 %v5516, %v5516
    %v6069 = vld [vmem:[%s1 + $0x240] sm:$0xf]
    %v6070 = vld [vmem:[%s1 + $0x244] sm:$0xf]
    %v6071 = vld [vmem:[%s1 + $0x248] sm:$0xf]
    %v6072 = vld [vmem:[%s1 + $0x24c] sm:$0xf]
    %v6073 = vld [vmem:[%s1 + $0x250] sm:$0xf]
    %v6074 = vld [vmem:[%s1 + $0x254] sm:$0xf]
    %v6075 = vld [vmem:[%s1 + $0x258] sm:$0xf]
    %v6076 = vld [vmem:[%s1 + $0x25c] sm:$0xf]
    %v6079 = vunpack.c.l.b16 %v6067
    %v6080 = vunpack.c.l.b16 %v6068
    %v6081 = vrot.slane %v6080, 7
    %v6082 = vsel %vm5582, %v6081, %v6079
    %v6083 = vpack.c.b16 %v6082, %v6082
    %v6092 = vunpack.c.l.b16 %v6069
    %v6093 = vunpack.c.l.b16 %v6070
    %v6094 = vunpack.c.l.b16 %v6071
    %v6095 = vunpack.c.l.b16 %v6072
    %v6096 = vunpack.c.l.b16 %v6073
    %v6097 = vunpack.c.l.b16 %v6074
    %v6098 = vunpack.c.l.b16 %v6075
    %v6099 = vunpack.c.l.b16 %v6076
    %v6100 = vpack.c.b16 %v6093, %v6092
    %v6101 = vpack.c.b16 %v6095, %v6094
    %v6102 = vpack.c.b16 %v6097, %v6096
    %v6103 = vpack.c.b16 %v6099, %v6098
    %v6109 = vsel %vm5609, %v6083, 0
    %6111 = vmatprep.subr.bf16.mxu0 0
    %6112 = vmatpush1.bf16.msra.mxu0 0
    %6113 = vmatprep.subr.bf16.mxu0 0
    %6114 = vmatpush1.bf16.msra.mxu0 0
    %6115 = vmatprep.subr.bf16.mxu0 0
    %6116 = vmatpush1.bf16.msra.mxu0 0
    %6117 = vmatprep.subr.bf16.mxu0 0
    %6118 = vmatpush1.bf16.msra.mxu0 0
    %6119 = vmatprep.subr.bf16.mxu0 0
    %6120 = vmatpush1.bf16.msra.mxu0 %v6103
    %6121 = vmatprep.subr.bf16.mxu0 0
    %6122 = vmatpush1.bf16.msra.mxu0 %v6102
    %6123 = vmatprep.subr.bf16.mxu0 0
    %6124 = vmatpush1.bf16.msra.mxu0 %v6101
    %6125 = vmatprep.subr.bf16.mxu0 0
    %6126 = vmatpush1.bf16.msra.mxu0 %v6100
    %6127 = vmatprep.subr.bf16.mxu0 0
    %6128 = vmatpush2.bf16.msra.mxu0 0
    %6129 = vmatprep.subr.bf16.mxu0 0
    %6130 = vmatpush2.bf16.msra.mxu0 0
    %6131 = vmatprep.subr.bf16.mxu0 0
    %6132 = vmatpush2.bf16.msra.mxu0 0
    %6133 = vmatprep.subr.bf16.mxu0 0
    %6134 = vmatpush2.bf16.msra.mxu0 0
    %6135 = vmatprep.subr.bf16.mxu0 0
    %6136 = vmatpush2.bf16.msra.mxu0 0
    %6137 = vmatprep.subr.bf16.mxu0 0
    %6138 = vmatpush2.bf16.msra.mxu0 0
    %6139 = vmatprep.subr.bf16.mxu0 0
    %6140 = vmatpush2.bf16.msra.mxu0 0
    %6141 = vmatprep.subr.bf16.mxu0 0
    %6142 = vmatpush2.bf16.msra.mxu0 0
    %6143 = vmatprep.mubr.bf16.mxu0 0
    %6144 = vmatmul.mubr.bf16.gmra.mxu0 %v6109
    %v6145 = vpop.f32.mrf.mxu0
    %v6146 = vadd.f32 0.0, %v6145
    %v6147 = vpop.f32.mrf.mxu0
    %v6148 = vpop.f32.mrf.mxu0
    %v6149 = vpop.f32.mrf.mxu0
    %6150 = vdwg.mxu0
    %v6151 = vadd.f32 %v6066, %v6146
    %v6152 = vpack.c.bf16 %v5467, %v5467
    %v6153 = vpack.c.bf16 %v5531, %v5531
    %v6154 = vld [vmem:[%s1 + $0x260] sm:$0xf]
    %v6155 = vld [vmem:[%s1 + $0x264] sm:$0xf]
    %v6156 = vld [vmem:[%s1 + $0x268] sm:$0xf]
    %v6157 = vld [vmem:[%s1 + $0x26c] sm:$0xf]
    %v6158 = vld [vmem:[%s1 + $0x270] sm:$0xf]
    %v6159 = vld [vmem:[%s1 + $0x274] sm:$0xf]
    %v6160 = vld [vmem:[%s1 + $0x278] sm:$0xf]
    %v6161 = vld [vmem:[%s1 + $0x27c] sm:$0xf]
    %v6164 = vunpack.c.l.b16 %v6152
    %v6165 = vunpack.c.l.b16 %v6153
    %v6166 = vrot.slane %v6165, 7
    %v6167 = vsel %vm5582, %v6166, %v6164
    %v6168 = vpack.c.b16 %v6167, %v6167
    %v6177 = vunpack.c.l.b16 %v6154
    %v6178 = vunpack.c.l.b16 %v6155
    %v6179 = vunpack.c.l.b16 %v6156
    %v6180 = vunpack.c.l.b16 %v6157
    %v6181 = vunpack.c.l.b16 %v6158
    %v6182 = vunpack.c.l.b16 %v6159
    %v6183 = vunpack.c.l.b16 %v6160
    %v6184 = vunpack.c.l.b16 %v6161
    %v6185 = vpack.c.b16 %v6178, %v6177
    %v6186 = vpack.c.b16 %v6180, %v6179
    %v6187 = vpack.c.b16 %v6182, %v6181
    %v6188 = vpack.c.b16 %v6184, %v6183
    %v6194 = vsel %vm5609, %v6168, 0
    %6196 = vmatprep.subr.bf16.mxu0 0
    %6197 = vmatpush1.bf16.msra.mxu0 0
    %6198 = vmatprep.subr.bf16.mxu0 0
    %6199 = vmatpush1.bf16.msra.mxu0 0
    %6200 = vmatprep.subr.bf16.mxu0 0
    %6201 = vmatpush1.bf16.msra.mxu0 0
    %6202 = vmatprep.subr.bf16.mxu0 0
    %6203 = vmatpush1.bf16.msra.mxu0 0
    %6204 = vmatprep.subr.bf16.mxu0 0
    %6205 = vmatpush1.bf16.msra.mxu0 %v6188
    %6206 = vmatprep.subr.bf16.mxu0 0
    %6207 = vmatpush1.bf16.msra.mxu0 %v6187
    %6208 = vmatprep.subr.bf16.mxu0 0
    %6209 = vmatpush1.bf16.msra.mxu0 %v6186
    %6210 = vmatprep.subr.bf16.mxu0 0
    %6211 = vmatpush1.bf16.msra.mxu0 %v6185
    %6212 = vmatprep.subr.bf16.mxu0 0
    %6213 = vmatpush2.bf16.msra.mxu0 0
    %6214 = vmatprep.subr.bf16.mxu0 0
    %6215 = vmatpush2.bf16.msra.mxu0 0
    %6216 = vmatprep.subr.bf16.mxu0 0
    %6217 = vmatpush2.bf16.msra.mxu0 0
    %6218 = vmatprep.subr.bf16.mxu0 0
    %6219 = vmatpush2.bf16.msra.mxu0 0
    %6220 = vmatprep.subr.bf16.mxu0 0
    %6221 = vmatpush2.bf16.msra.mxu0 0
    %6222 = vmatprep.subr.bf16.mxu0 0
    %6223 = vmatpush2.bf16.msra.mxu0 0
    %6224 = vmatprep.subr.bf16.mxu0 0
    %6225 = vmatpush2.bf16.msra.mxu0 0
    %6226 = vmatprep.subr.bf16.mxu0 0
    %6227 = vmatpush2.bf16.msra.mxu0 0
    %6228 = vmatprep.mubr.bf16.mxu0 0
    %6229 = vmatmul.mubr.bf16.gmra.mxu0 %v6194
    %v6230 = vpop.f32.mrf.mxu0
    %v6231 = vadd.f32 0.0, %v6230
    %v6232 = vpop.f32.mrf.mxu0
    %v6233 = vpop.f32.mrf.mxu0
    %v6234 = vpop.f32.mrf.mxu0
    %6235 = vdwg.mxu0
    %v6236 = vadd.f32 %v6151, %v6231
    %v6237 = vpack.c.bf16 %v5491, %v5491
    %v6238 = vpack.c.bf16 %v5538, %v5538
    %v6239 = vld [vmem:[%s1 + $0x280] sm:$0xf]
    %v6240 = vld [vmem:[%s1 + $0x284] sm:$0xf]
    %v6241 = vld [vmem:[%s1 + $0x288] sm:$0xf]
    %v6242 = vld [vmem:[%s1 + $0x28c] sm:$0xf]
    %v6243 = vld [vmem:[%s1 + $0x290] sm:$0xf]
    %v6244 = vld [vmem:[%s1 + $0x294] sm:$0xf]
    %v6245 = vld [vmem:[%s1 + $0x298] sm:$0xf]
    %v6246 = vld [vmem:[%s1 + $0x29c] sm:$0xf]
    %v6249 = vunpack.c.l.b16 %v6237
    %v6250 = vunpack.c.l.b16 %v6238
    %v6251 = vrot.slane %v6250, 7
    %v6252 = vsel %vm5582, %v6251, %v6249
    %v6253 = vpack.c.b16 %v6252, %v6252
    %v6262 = vunpack.c.l.b16 %v6239
    %v6263 = vunpack.c.l.b16 %v6240
    %v6264 = vunpack.c.l.b16 %v6241
    %v6265 = vunpack.c.l.b16 %v6242
    %v6266 = vunpack.c.l.b16 %v6243
    %v6267 = vunpack.c.l.b16 %v6244
    %v6268 = vunpack.c.l.b16 %v6245
    %v6269 = vunpack.c.l.b16 %v6246
    %v6270 = vpack.c.b16 %v6263, %v6262
    %v6271 = vpack.c.b16 %v6265, %v6264
    %v6272 = vpack.c.b16 %v6267, %v6266
    %v6273 = vpack.c.b16 %v6269, %v6268
    %v6279 = vsel %vm5609, %v6253, 0
    %6281 = vmatprep.subr.bf16.mxu0 0
    %6282 = vmatpush1.bf16.msra.mxu0 0
    %6283 = vmatprep.subr.bf16.mxu0 0
    %6284 = vmatpush1.bf16.msra.mxu0 0
    %6285 = vmatprep.subr.bf16.mxu0 0
    %6286 = vmatpush1.bf16.msra.mxu0 0
    %6287 = vmatprep.subr.bf16.mxu0 0
    %6288 = vmatpush1.bf16.msra.mxu0 0
    %6289 = vmatprep.subr.bf16.mxu0 0
    %6290 = vmatpush1.bf16.msra.mxu0 %v6273
    %6291 = vmatprep.subr.bf16.mxu0 0
    %6292 = vmatpush1.bf16.msra.mxu0 %v6272
    %6293 = vmatprep.subr.bf16.mxu0 0
    %6294 = vmatpush1.bf16.msra.mxu0 %v6271
    %6295 = vmatprep.subr.bf16.mxu0 0
    %6296 = vmatpush1.bf16.msra.mxu0 %v6270
    %6297 = vmatprep.subr.bf16.mxu0 0
    %6298 = vmatpush2.bf16.msra.mxu0 0
    %6299 = vmatprep.subr.bf16.mxu0 0
    %6300 = vmatpush2.bf16.msra.mxu0 0
    %6301 = vmatprep.subr.bf16.mxu0 0
    %6302 = vmatpush2.bf16.msra.mxu0 0
    %6303 = vmatprep.subr.bf16.mxu0 0
    %6304 = vmatpush2.bf16.msra.mxu0 0
    %6305 = vmatprep.subr.bf16.mxu0 0
    %6306 = vmatpush2.bf16.msra.mxu0 0
    %6307 = vmatprep.subr.bf16.mxu0 0
    %6308 = vmatpush2.bf16.msra.mxu0 0
    %6309 = vmatprep.subr.bf16.mxu0 0
    %6310 = vmatpush2.bf16.msra.mxu0 0
    %6311 = vmatprep.subr.bf16.mxu0 0
    %6312 = vmatpush2.bf16.msra.mxu0 0
    %6313 = vmatprep.mubr.bf16.mxu0 0
    %6314 = vmatmul.mubr.bf16.gmra.mxu0 %v6279
    %v6315 = vpop.f32.mrf.mxu0
    %v6316 = vadd.f32 0.0, %v6315
    %v6317 = vpop.f32.mrf.mxu0
    %v6318 = vpop.f32.mrf.mxu0
    %v6319 = vpop.f32.mrf.mxu0
    %6320 = vdwg.mxu0
    %v6321 = vadd.f32 %v6236, %v6316
    %v6322 = vsel %vm514, %v6321, 0.0
    %v6323 = vrot.slane %v6322, 4
    %v6324 = vadd.f32 %v6322, %v6323
    %v6325 = vrot.slane %v6324, 2
    %v6326 = vadd.f32 %v6324, %v6325
    %v6327 = vrot.slane %v6326, 1
    %v6328 = vadd.f32 %v6326, %v6327
    %v6329 = vmul.f32 %v6328, 0.5
    %v6330 = vsub.f32 %v6321, %v6329
    %v6331 = vmul.f32 %v6330, %v6330
    %v6332 = vsel %vm514, %v6331, 0.0
    %v6333 = vrot.slane %v6332, 4
    %v6334 = vadd.f32 %v6332, %v6333
    %v6335 = vrot.slane %v6334, 2
    %v6336 = vadd.f32 %v6334, %v6335
    %v6337 = vrot.slane %v6336, 1
    %v6338 = vadd.f32 %v6336, %v6337
    %v6339 = vmul.f32 %v6338, 0.5
    %v6340 = vadd.f32 %v6339, 1e-05
    %v6341 = vrsqrt.pop %v6340
    %v6342 = vmul.f32 %v19, %v6341
    %v6343 = vlaneseq
    %v6344 = vshrl.u32 %v6343, 7
    %v6345 = vsub.s32 4, %v6344
    %v6346 = vrot.slane %v6342, %v6345
    %v6347 = vmul.f32 %v6330, %v6346
    %v6348 = vlaneseq
    %v6349 = vshrl.u32 %v6348, 7
    %v6350 = vsub.s32 5, %v6349
    %v6351 = vrot.slane %v19, %v6350
    %v6352 = vadd.f32 %v6347, %v6351
    %v6353 = vmax.f32 %v6352, 0.0
    %v6354 = vpack.c.bf16 %v6353, %v6353
    %v6355 = vld [vmem:[%s2] sm:$0xff]
    %v6356 = vld [vmem:[%s2 + $0x8] sm:$0xff]
    %v6357 = vld [vmem:[%s2 + $0x10] sm:$0xff]
    %v6358 = vld [vmem:[%s2 + $0x18] sm:$0xff]
    %v6359 = vld [vmem:[%s2 + $0x20] sm:$0xff]
    %v6360 = vld [vmem:[%s2 + $0x28] sm:$0xff]
    %v6361 = vld [vmem:[%s2 + $0x30] sm:$0xff]
    %v6362 = vld [vmem:[%s2 + $0x38] sm:$0xff]
    %v6363 = vlaneseq
    %v6364 = vshrl.u32 %v6363, 7
    %v6365 = vsub.s32 6, %v6364
    %v6366 = vrot.slane %v19, %v6365
    %v6367 = vlaneseq
    %v6368 = vshrl.u32 %v6367, 7
    %v6369 = vsub.s32 6, %v6368
    %v6370 = vrot.slane %v20, %v6369
    %v6379 = vunpack.c.l.b16 %v6355
    %v6380 = vunpack.c.h.b16 %v6355
    %v6381 = vunpack.c.l.b16 %v6356
    %v6382 = vunpack.c.h.b16 %v6356
    %v6383 = vunpack.c.l.b16 %v6357
    %v6384 = vunpack.c.h.b16 %v6357
    %v6385 = vunpack.c.l.b16 %v6358
    %v6386 = vunpack.c.h.b16 %v6358
    %v6387 = vunpack.c.l.b16 %v6359
    %v6388 = vunpack.c.h.b16 %v6359
    %v6389 = vunpack.c.l.b16 %v6360
    %v6390 = vunpack.c.h.b16 %v6360
    %v6391 = vunpack.c.l.b16 %v6361
    %v6392 = vunpack.c.h.b16 %v6361
    %v6393 = vunpack.c.l.b16 %v6362
    %v6394 = vunpack.c.h.b16 %v6362
    %v6395 = vpack.c.b16 %v6381, %v6379
    %v6396 = vpack.c.b16 %v6382, %v6380
    %v6397 = vpack.c.b16 %v6385, %v6383
    %v6398 = vpack.c.b16 %v6386, %v6384
    %v6399 = vpack.c.b16 %v6389, %v6387
    %v6400 = vpack.c.b16 %v6390, %v6388
    %v6401 = vpack.c.b16 %v6393, %v6391
    %v6402 = vpack.c.b16 %v6394, %v6392
    %v6412 = vsel %vm5609, %v6354, 0
    %6414 = vmatprep.subr.bf16.mxu0 0
    %6415 = vmatpush1.bf16.msra.mxu0 0
    %6416 = vmatprep.subr.bf16.mxu0 0
    %6417 = vmatpush1.bf16.msra.mxu0 0
    %6418 = vmatprep.subr.bf16.mxu0 0
    %6419 = vmatpush1.bf16.msra.mxu0 0
    %6420 = vmatprep.subr.bf16.mxu0 0
    %6421 = vmatpush1.bf16.msra.mxu0 0
    %6422 = vmatprep.subr.bf16.mxu0 %v6402
    %6423 = vmatpush1.bf16.msra.mxu0 %v6401
    %6424 = vmatprep.subr.bf16.mxu0 %v6400
    %6425 = vmatpush1.bf16.msra.mxu0 %v6399
    %6426 = vmatprep.subr.bf16.mxu0 %v6398
    %6427 = vmatpush1.bf16.msra.mxu0 %v6397
    %6428 = vmatprep.subr.bf16.mxu0 %v6396
    %6429 = vmatpush1.bf16.msra.mxu0 %v6395
    %6430 = vmatprep.subr.bf16.mxu0 0
    %6431 = vmatpush2.bf16.msra.mxu0 0
    %6432 = vmatprep.subr.bf16.mxu0 0
    %6433 = vmatpush2.bf16.msra.mxu0 0
    %6434 = vmatprep.subr.bf16.mxu0 0
    %6435 = vmatpush2.bf16.msra.mxu0 0
    %6436 = vmatprep.subr.bf16.mxu0 0
    %6437 = vmatpush2.bf16.msra.mxu0 0
    %6438 = vmatprep.subr.bf16.mxu0 0
    %6439 = vmatpush2.bf16.msra.mxu0 0
    %6440 = vmatprep.subr.bf16.mxu0 0
    %6441 = vmatpush2.bf16.msra.mxu0 0
    %6442 = vmatprep.subr.bf16.mxu0 0
    %6443 = vmatpush2.bf16.msra.mxu0 0
    %6444 = vmatprep.subr.bf16.mxu0 0
    %6445 = vmatpush2.bf16.msra.mxu0 0
    %6446 = vmatprep.mubr.bf16.mxu0 0
    %6447 = vmatmul.mubr.bf16.gmra.mxu0 %v6412
    %v6448 = vpop.f32.mrf.mxu0
    %v6449 = vadd.f32 %v6366, %v6448
    %v6450 = vpop.f32.mrf.mxu0
    %v6451 = vadd.f32 %v6370, %v6450
    %v6452 = vpop.f32.mrf.mxu0
    %v6453 = vpop.f32.mrf.mxu0
    %6454 = vdwg.mxu0
    %vm6455 = vcmp.gt.f32.partialorder %v6449, 0.0
    %vm6456 = vcmp.gt.f32.partialorder %v6451, 0.0
    %v6457 = vmul.f32 %v6449, 0.01
    %v6458 = vmul.f32 %v6451, 0.01
    %v6459 = vsel %vm6455, %v6449, %v6457
    %v6460 = vsel %vm6456, %v6451, %v6458
    %v6461 = vpack.c.bf16 %v6459, %v6459
    %v6462 = vpack.c.bf16 %v6460, %v6460
    %v6463 = vld [vmem:[%s1 + $0x2a0] sm:$0xf]
    %v6464 = vld [vmem:[%s1 + $0x2a4] sm:$0xf]
    %v6465 = vld [vmem:[%s1 + $0x2a8] sm:$0xf]
    %v6466 = vld [vmem:[%s1 + $0x2ac] sm:$0xf]
    %v6467 = vld [vmem:[%s1 + $0x2b0] sm:$0xf]
    %v6468 = vld [vmem:[%s1 + $0x2b4] sm:$0xf]
    %v6469 = vld [vmem:[%s1 + $0x2b8] sm:$0xf]
    %v6470 = vld [vmem:[%s1 + $0x2bc] sm:$0xf]
    %v6471 = vld [vmem:[%s1 + $0x2c0] sm:$0xf]
    %v6472 = vld [vmem:[%s1 + $0x2c4] sm:$0xf]
    %v6473 = vld [vmem:[%s1 + $0x2c8] sm:$0xf]
    %v6474 = vld [vmem:[%s1 + $0x2cc] sm:$0xf]
    %v6475 = vld [vmem:[%s1 + $0x2d0] sm:$0xf]
    %v6476 = vld [vmem:[%s1 + $0x2d4] sm:$0xf]
    %v6477 = vld [vmem:[%s1 + $0x2d8] sm:$0xf]
    %v6478 = vld [vmem:[%s1 + $0x2dc] sm:$0xf]
    %v6479 = vld [vmem:[%s1 + $0x2e0] sm:$0xf]
    %v6480 = vld [vmem:[%s1 + $0x2e4] sm:$0xf]
    %v6481 = vld [vmem:[%s1 + $0x2e8] sm:$0xf]
    %v6482 = vld [vmem:[%s1 + $0x2ec] sm:$0xf]
    %v6483 = vld [vmem:[%s1 + $0x2f0] sm:$0xf]
    %v6484 = vld [vmem:[%s1 + $0x2f4] sm:$0xf]
    %v6485 = vld [vmem:[%s1 + $0x2f8] sm:$0xf]
    %v6486 = vld [vmem:[%s1 + $0x2fc] sm:$0xf]
    %v6487 = vld [vmem:[%s1 + $0x300] sm:$0xf]
    %v6488 = vld [vmem:[%s1 + $0x304] sm:$0xf]
    %v6489 = vld [vmem:[%s1 + $0x308] sm:$0xf]
    %v6490 = vld [vmem:[%s1 + $0x30c] sm:$0xf]
    %v6491 = vld [vmem:[%s1 + $0x310] sm:$0xf]
    %v6492 = vld [vmem:[%s1 + $0x314] sm:$0xf]
    %v6493 = vld [vmem:[%s1 + $0x318] sm:$0xf]
    %v6494 = vld [vmem:[%s1 + $0x31c] sm:$0xf]
    %v6495 = vlaneseq
    %v6496 = vshrl.u32 %v6495, 7
    %v6497 = vsub.s32 7, %v6496
    %v6498 = vrot.slane %v19, %v6497
    %v6531 = vunpack.c.l.b16 %v6463
    %v6532 = vunpack.c.l.b16 %v6464
    %v6533 = vunpack.c.l.b16 %v6465
    %v6534 = vunpack.c.l.b16 %v6466
    %v6535 = vunpack.c.l.b16 %v6467
    %v6536 = vunpack.c.l.b16 %v6468
    %v6537 = vunpack.c.l.b16 %v6469
    %v6538 = vunpack.c.l.b16 %v6470
    %v6539 = vunpack.c.l.b16 %v6471
    %v6540 = vunpack.c.l.b16 %v6472
    %v6541 = vunpack.c.l.b16 %v6473
    %v6542 = vunpack.c.l.b16 %v6474
    %v6543 = vunpack.c.l.b16 %v6475
    %v6544 = vunpack.c.l.b16 %v6476
    %v6545 = vunpack.c.l.b16 %v6477
    %v6546 = vunpack.c.l.b16 %v6478
    %v6547 = vunpack.c.l.b16 %v6479
    %v6548 = vunpack.c.l.b16 %v6480
    %v6549 = vunpack.c.l.b16 %v6481
    %v6550 = vunpack.c.l.b16 %v6482
    %v6551 = vunpack.c.l.b16 %v6483
    %v6552 = vunpack.c.l.b16 %v6484
    %v6553 = vunpack.c.l.b16 %v6485
    %v6554 = vunpack.c.l.b16 %v6486
    %v6555 = vunpack.c.l.b16 %v6487
    %v6556 = vunpack.c.l.b16 %v6488
    %v6557 = vunpack.c.l.b16 %v6489
    %v6558 = vunpack.c.l.b16 %v6490
    %v6559 = vunpack.c.l.b16 %v6491
    %v6560 = vunpack.c.l.b16 %v6492
    %v6561 = vunpack.c.l.b16 %v6493
    %v6562 = vunpack.c.l.b16 %v6494
    %v6563 = vpack.c.b16 %v6532, %v6531
    %v6564 = vpack.c.b16 %v6534, %v6533
    %v6565 = vpack.c.b16 %v6536, %v6535
    %v6566 = vpack.c.b16 %v6538, %v6537
    %v6567 = vpack.c.b16 %v6540, %v6539
    %v6568 = vpack.c.b16 %v6542, %v6541
    %v6569 = vpack.c.b16 %v6544, %v6543
    %v6570 = vpack.c.b16 %v6546, %v6545
    %v6571 = vpack.c.b16 %v6548, %v6547
    %v6572 = vpack.c.b16 %v6550, %v6549
    %v6573 = vpack.c.b16 %v6552, %v6551
    %v6574 = vpack.c.b16 %v6554, %v6553
    %v6575 = vpack.c.b16 %v6556, %v6555
    %v6576 = vpack.c.b16 %v6558, %v6557
    %v6577 = vpack.c.b16 %v6560, %v6559
    %v6578 = vpack.c.b16 %v6562, %v6561
    %6595 = vmatprep.subr.bf16.mxu0 0
    %6596 = vmatpush1.bf16.msra.mxu0 %v6570
    %6597 = vmatprep.subr.bf16.mxu0 0
    %6598 = vmatpush1.bf16.msra.mxu0 %v6569
    %6599 = vmatprep.subr.bf16.mxu0 0
    %6600 = vmatpush1.bf16.msra.mxu0 %v6568
    %6601 = vmatprep.subr.bf16.mxu0 0
    %6602 = vmatpush1.bf16.msra.mxu0 %v6567
    %6603 = vmatprep.subr.bf16.mxu0 0
    %6604 = vmatpush1.bf16.msra.mxu0 %v6566
    %6605 = vmatprep.subr.bf16.mxu0 0
    %6606 = vmatpush1.bf16.msra.mxu0 %v6565
    %6607 = vmatprep.subr.bf16.mxu0 0
    %6608 = vmatpush1.bf16.msra.mxu0 %v6564
    %6609 = vmatprep.subr.bf16.mxu0 0
    %6610 = vmatpush1.bf16.msra.mxu0 %v6563
    %6611 = vmatprep.subr.bf16.mxu0 0
    %6612 = vmatpush2.bf16.msra.mxu0 %v6578
    %6613 = vmatprep.subr.bf16.mxu0 0
    %6614 = vmatpush2.bf16.msra.mxu0 %v6577
    %6615 = vmatprep.subr.bf16.mxu0 0
    %6616 = vmatpush2.bf16.msra.mxu0 %v6576
    %6617 = vmatprep.subr.bf16.mxu0 0
    %6618 = vmatpush2.bf16.msra.mxu0 %v6575
    %6619 = vmatprep.subr.bf16.mxu0 0
    %6620 = vmatpush2.bf16.msra.mxu0 %v6574
    %6621 = vmatprep.subr.bf16.mxu0 0
    %6622 = vmatpush2.bf16.msra.mxu0 %v6573
    %6623 = vmatprep.subr.bf16.mxu0 0
    %6624 = vmatpush2.bf16.msra.mxu0 %v6572
    %6625 = vmatprep.subr.bf16.mxu0 0
    %6626 = vmatpush2.bf16.msra.mxu0 %v6571
    %6627 = vmatprep.mubr.bf16.mxu0 %v6462
    %6628 = vmatmul.mubr.bf16.gmra.mxu0 %v6461
    %v6629 = vpop.f32.mrf.mxu0
    %v6630 = vadd.f32 %v6498, %v6629
    %v6631 = vpop.f32.mrf.mxu0
    %v6632 = vpop.f32.mrf.mxu0
    %v6633 = vpop.f32.mrf.mxu0
    %6634 = vdwg.mxu0
    %v6635 = vlaneseq
    %v6636 = vand.u32 %v6635, 127
    %vm6637 = vcmp.lt.s32.totalorder %v6636, 6
    %v6638 = vsel %vm6637, 1, 0
    %v6639 = vcvt.s32.f32 %v6638
    %vm6640 = vcmp.eq.s32.totalorder %v6636, 6
    %v6641 = vsel %vm6640, 1, 0
    %v6642 = vcvt.s32.f32 %v6641
    %v6643 = vmul.f32 %v6630, %v6639
    %v6644 = vsel %vm514, %v6643, 0.0
    %6645 = vadd.xlane.f32.xlu0 %v6644
    %v6646 = vpop.xlane.xlu0 %6645
    %v6647 = vrot.slane %v6646, 4
    %v6648 = vadd.f32 %v6646, %v6647
    %v6649 = vrot.slane %v6648, 2
    %v6650 = vadd.f32 %v6648, %v6649
    %v6651 = vrot.slane %v6650, 1
    %v6652 = vadd.f32 %v6650, %v6651
    %s6653 = vtos %v6652
    %s6654 = smul.f32 %s6653, 0.083333336
    %v6655 = vmul.f32 %v6630, %v6642
    %v6656 = vsel %vm514, %v6655, 0.0
    %6657 = vadd.xlane.f32.xlu0 %v6656
    %v6658 = vpop.xlane.xlu0 %6657
    %v6659 = vadd.f32 %v6630, %v6658
    %v6660 = vstv %s6654
    %v6661 = vsub.f32 %v6659, %v6660
    %v6662 = vmul.f32 %v6661, %v6639
    %6663 = vst [vmem:[#allocation2] sm:$0x3] %v6662
    // Predicated region
    $region18: #{cnn_forward.1} parent=1 // pred_check
      _
    $region19: #{cnn_forward.1} parent=1 // pred_check_branch
      %6665 = sbr.rel (0) target = $region21
    $region20: #{cnn_forward.1} parent=1 // pred_region
      %s6667 = ssub.s32 32, 32
      %6668 = vsyncadd [#allocation3], %s6667
      %s6670 = sshll.u32 [#allocation2], 4
      %s6671 = int_to_ptr.vmem [resolvable:$true] %s6670
      %6673 = dma.vmem_to_hbm [thread:$0]  %s6671, 32, %s4, [#allocation3]
    $region21: #{cnn_forward.1} parent=1 // pred_fallthru
      _
    // Predicated region
    $region22: #{cnn_forward.1} parent=1 // pred_check
      _
    $region23: #{cnn_forward.1} parent=1 // pred_check_branch
      %6675 = sbr.rel (0) target = $region25
    $region24: #{cnn_forward.1} parent=1 // pred_region
      %6676 = dma.done [#allocation3], 32
    $region25: #{cnn_forward.1} parent=1 // pred_fallthru
      _
    %6677 = vsyncpa [#allocation3], 1

</llo_original>
